<compile_context>
chip_gen: v7x
topology: tpu7x:2x2x1
jax: 0.10.0
libtpu: 0.0.40
codegen_flags: <defaults>
</compile_context>

<pallas_src>
import functools

import numpy as np
import jax
import jax.numpy as jnp
from jax.experimental import pallas as pl
from jax.experimental.pallas import tpu as pltpu


def _round_up(x, m):
    return (x + m - 1) // m * m


def _int4_linear_kernel(x_ref, w_ref, sc_ref, szp_ref, bias_ref, o_ref, acc_ref,
                        *, groupsize):
    """One (tm, tn) output tile, accumulated over the K grid axis.

    x_ref    : (tm, tk)         bf16   activation K-tile
    w_ref    : (tk//8, tn)      int32  repacked int4 weights (see _repack_weight)
    sc_ref   : (1, gpt, tn)     f32    per-group scales for this K-tile
    szp_ref  : (1, gpt, tn)     f32    per-group scale*zero for this K-tile
    bias_ref : (1, tn)          f32
    o_ref    : (tm, tn)         output dtype
    acc_ref  : (tm, tn)         f32    VMEM accumulator scratch
    """
    tm, tk = x_ref.shape
    gpt = tk // groupsize            # groups per K tile
    gs8 = groupsize // 8             # packed int32 rows per group
    kk = pl.program_id(2)

    @pl.when(kk == 0)
    def _():
        acc_ref[...] = jnp.zeros_like(acc_ref)

    sc_blk = sc_ref[...]             # (1, gpt, tn) f32  (tiny, load once)
    szp_blk = szp_ref[...]           # (1, gpt, tn) f32

    for gi in range(gpt):            # static unroll over the groups of this K tile
        # ---- unpack one group's int4 weights: 8 static shifts, no interleave ----
        pg = w_ref[gi * gs8:(gi + 1) * gs8, :]                    # (gs8, tn) int32
        # Host-side repack guarantees nibble s of pg[j, :] is q[g*gs + s*gs8 + j, :],
        # so each nibble plane is a contiguous sublane slab and reassembly is a plain
        # concatenation.  The & 0xF also strips the arithmetic-shift sign extension.
        slabs = [(((pg >> (4 * s)) if s else pg) & 0xF) for s in range(8)]
        qg = (jnp.concatenate(slabs, axis=0)                      # (groupsize, tn)
              .astype(jnp.float32).astype(jnp.bfloat16))

        # ---- per-group partial matmul on raw q (bf16 MXU, f32 accumulate) ----
        xg = x_ref[:, gi * groupsize:(gi + 1) * groupsize]        # (tm, gs) bf16
        partial = jnp.dot(xg, qg, preferred_element_type=jnp.float32)  # (tm, tn)
        xsum = jnp.sum(xg.astype(jnp.float32), axis=1, keepdims=True)  # (tm, 1)

        # ---- apply group scale / hoisted zero-point to the partial sums ----
        sc = sc_blk[0, gi:gi + 1, :]                              # (1, tn)
        szp = szp_blk[0, gi:gi + 1, :]                            # (1, tn)
        acc_ref[...] = acc_ref[...] + (sc * partial - szp * xsum)

    @pl.when(kk == pl.num_programs(2) - 1)
    def _():
        o_ref[...] = (acc_ref[...] + bias_ref[...]).astype(o_ref.dtype)


def _repack_weight(weight, in_features, out_features, groupsize):
    """Repack GPTQ int4 weights so each nibble plane is a contiguous slab per group.

    Input : packed[j, n]            nibble s = q[8*j + s, n]
    Output: packed'[g*gs8 + j, n]   nibble s = q[g*groupsize + s*gs8 + j, n]
    (one-time host-side preprocessing; total size is unchanged)
    """
    K, N = in_features, out_features
    gs8 = groupsize // 8
    G = K // groupsize
    w = np.asarray(weight).astype(np.int64) & 0xFFFFFFFF            # unsigned view
    k = np.arange(K)
    q = (w[k // 8, :] >> (4 * (k % 8))[:, None]) & 0xF              # (K, N)
    q = q.reshape(G, 8, gs8, N)                                     # [g, s, j, n]
    out = np.zeros((K // 8, N), dtype=np.int64)
    for s in range(8):
        out |= q[:, s, :, :].reshape(K // 8, N) << (4 * s)
    return jnp.asarray(out.astype(np.uint32).view(np.int32))


@functools.partial(jax.jit, static_argnames=("groupsize", "gpt", "tn", "tk"))
def _int4_forward(x, weight, scales3, szp3, bias, *, groupsize, gpt, tn, tk):
    orig_dtype = x.dtype
    K = x.shape[-1]
    N = weight.shape[1]

    # bf16 activations (torch uses fp16; bf16 is the TPU-native equivalent).
    xr = x.reshape(-1, K).astype(jnp.bfloat16)
    M = xr.shape[0]

    # M tile: <= 256 rows; pad to a multiple of tm so the block shape is legal.
    tm = min(256, _round_up(M, 8))
    Mp = _round_up(M, tm)
    if Mp != M:
        xr = jnp.pad(xr, ((0, Mp - M), (0, 0)))

    out_dtype = orig_dtype if orig_dtype == jnp.bfloat16 else jnp.float32

    out = pl.pallas_call(
        functools.partial(_int4_linear_kernel, groupsize=groupsize),
        out_shape=jax.ShapeDtypeStruct((Mp, N), out_dtype),
        grid=(Mp // tm, N // tn, K // tk),
        in_specs=[
            pl.BlockSpec((tm, tk), lambda i, j, k: (i, k)),          # x (bf16)
            pl.BlockSpec((tk // 8, tn), lambda i, j, k: (k, j)),     # packed int4
            pl.BlockSpec((1, gpt, tn), lambda i, j, k: (k, 0, j)),   # scales
            pl.BlockSpec((1, gpt, tn), lambda i, j, k: (k, 0, j)),   # scale*zero
            pl.BlockSpec((1, tn), lambda i, j, k: (0, j)),           # bias
        ],
        out_specs=pl.BlockSpec((tm, tn), lambda i, j, k: (i, j)),
        scratch_shapes=[pltpu.VMEM((tm, tn), jnp.float32)],
        compiler_params=pltpu.CompilerParams(
            dimension_semantics=("parallel", "parallel", "arbitrary")),
    )(xr, weight, scales3, szp3, bias)

    out = out[:M].reshape(x.shape[:-1] + (N,))
    return out.astype(orig_dtype)


class WeightOnlyInt4Linear:
    """JAX/Pallas mirror of GPTFast WeightOnlyInt4Linear (forward only)."""

    def __init__(self, in_features, out_features, weight, scales, zeros,
                 bias=None, groupsize=128):
        assert in_features % 8 == 0 and groupsize % 8 == 0
        assert in_features % groupsize == 0
        assert weight.shape == (in_features // 8, out_features)
        assert scales.shape == (out_features, in_features // groupsize)
        assert zeros.shape == (out_features, in_features // groupsize)
        self.in_features = in_features
        self.out_features = out_features
        self.groupsize = groupsize

        K, N, g = in_features, out_features, groupsize
        G = K // g

        # K tile: up to 8 groups per step (bounded VMEM, deep weight-DMA pipeline).
        gpt = min(8, G)
        while G % gpt:
            gpt -= 1
        self._gpt = gpt
        self._tk = gpt * g

        # N tile: prefer wide tiles (lane-dense stores, big weight DMAs, fewer steps).
        for cand in (512, 256, 128):
            if N % cand == 0:
                self._tn = cand
                break
        else:
            self._tn = N

        # One-time host-side preprocessing of the static weights / metadata.
        self._weight = _repack_weight(weight, K, N, g)               # (K//8, N) i32
        scales_f = jnp.asarray(scales, jnp.float32)                  # (N, G)
        zeros_f = jnp.asarray(zeros, jnp.float32)                    # (N, G)
        self._scales3 = scales_f.T.reshape(K // self._tk, gpt, N)    # (K/tk, gpt, N)
        self._szp3 = (scales_f * zeros_f).T.reshape(K // self._tk, gpt, N)
        if bias is None:
            bias = jnp.zeros((out_features,), jnp.float16)
        self._bias = jnp.asarray(bias, jnp.float32).reshape(1, N)

    def __call__(self, x):
        return _int4_forward(x, self._weight, self._scales3, self._szp3, self._bias,
                             groupsize=self.groupsize, gpt=self._gpt,
                             tn=self._tn, tk=self._tk)


def _reference(x, packed, scales, zeros, bias, groupsize):
    """Pure-JAX reference with the same int4 matmul semantics (original packing)."""
    K = x.shape[-1]
    k = jnp.arange(K)
    q = (packed[k // 8, :] >> (4 * (k % 8))[:, None]) & 0xF            # (K, N)
    gi = k // groupsize
    w = (q.astype(jnp.float32) - zeros.T.astype(jnp.float32)[gi]) \
        * scales.T.astype(jnp.float32)[gi]
    xr = x.reshape(-1, K).astype(jnp.bfloat16).astype(jnp.float32)
    out = xr @ w + bias.astype(jnp.float32)
    return out.reshape(x.shape[:-1] + (w.shape[-1],)).astype(x.dtype)


if __name__ == "__main__":
    batch, seq = 2, 8
    in_features, out_features, groupsize = 2048, 1024, 128

    key = jax.random.PRNGKey(0)
    kq, ks, kz, kb, kx = jax.random.split(key, 5)

    # Random int4 weights, packed 8-per-int32 along in_features (GPTQ layout).
    q = np.asarray(
        jax.random.randint(kq, (in_features, out_features), 0, 16, dtype=jnp.int32),
        dtype=np.uint32)
    q3 = q.reshape(in_features // 8, 8, out_features)
    packed_u = np.zeros((in_features // 8, out_features), dtype=np.uint32)
    for s in range(8):
        packed_u |= q3[:, s, :] << np.uint32(4 * s)
    weight = jnp.asarray(packed_u.view(np.int32))                      # (K//8, N) i32

    scales = jax.random.uniform(ks, (out_features, in_features // groupsize),
                                jnp.float32, 0.5, 1.5).astype(jnp.float16)
    zeros = jax.random.uniform(kz, (out_features, in_features // groupsize),
                               jnp.float32, 0.0, 15.0).astype(jnp.float16)
    bias = (0.1 * jax.random.normal(kb, (out_features,), jnp.float32)).astype(jnp.float16)
    x = jax.random.normal(kx, (batch, seq, in_features), jnp.float32)

    layer = WeightOnlyInt4Linear(in_features, out_features, weight, scales, zeros,
                                 bias=bias, groupsize=groupsize)
    out = jax.block_until_ready(layer(x))

    ref = _reference(x, weight, scales, zeros, bias, groupsize)
    assert out.shape == (batch, seq, out_features)
    assert out.dtype == x.dtype
    np.testing.assert_allclose(np.asarray(out), np.asarray(ref), rtol=2e-2, atol=5e-1)

    print("KERNEL_OK")
</pallas_src>

<mosaic_0001>
module attributes {stable_mosaic.version = 11 : i64} {
  func.func @_int4_linear_kernel(%arg0: i32, %arg1: i32, %arg2: i32, %arg3: memref<16x1024xbf16, #tpu.memory_space<vmem>>, %arg4: memref<128x512xi32, #tpu.memory_space<vmem>>, %arg5: memref<1x8x512xf32, #tpu.memory_space<vmem>>, %arg6: memref<1x8x512xf32, #tpu.memory_space<vmem>>, %arg7: memref<1x512xf32, #tpu.memory_space<vmem>>, %arg8: memref<16x512xf32, #tpu.memory_space<vmem>>, %arg9: memref<16x512xf32, #tpu.memory_space<vmem>>) attributes {dimension_semantics = [#tpu.dimension_semantics<parallel>, #tpu.dimension_semantics<parallel>, #tpu.dimension_semantics<arbitrary>], iteration_bounds = array<i64: 1, 2, 2>, scalar_prefetch = 0 : i64, scratch_operands = 1 : i64, tpu.core_type = #tpu.core_type<tc>, window_params = [{transform_indices = @transform_0, window_bounds = array<i64: 16, 1024>}, {transform_indices = @transform_1, window_bounds = array<i64: 128, 512>}, {transform_indices = @transform_2, window_bounds = array<i64: 1, 8, 512>}, {transform_indices = @transform_3, window_bounds = array<i64: 1, 8, 512>}, {transform_indices = @transform_4, window_bounds = array<i64: 1, 512>}, {transform_indices = @transform_5, window_bounds = array<i64: 16, 512>}]} {
    %c0_i32 = arith.constant 0 : i32
    %0 = arith.cmpi eq, %arg2, %c0_i32 : i32
    %1 = arith.extui %0 : i1 to i32
    %c0_i32_0 = arith.constant 0 : i32
    %2 = arith.cmpi ne, %1, %c0_i32_0 : i32
    scf.if %2 {
      %cst_184 = arith.constant 0.000000e+00 : f32
      %424 = vector.broadcast %cst_184 : f32 to vector<16x512xf32>
      %c0_185 = arith.constant 0 : index
      %c0_186 = arith.constant 0 : index
      %425 = vector.load %arg9[%c0_185, %c0_186] : memref<16x512xf32, #tpu.memory_space<vmem>>, vector<16x512xf32>
      tpu.vector_store %arg9[%c0_185, %c0_186], %424 {strides = array<i32>} : memref<16x512xf32, #tpu.memory_space<vmem>>, vector<16x512xf32>,
    } else {
    }
    %c0 = arith.constant 0 : index
    %c0_1 = arith.constant 0 : index
    %c0_2 = arith.constant 0 : index
    %3 = vector.load %arg5[%c0, %c0_1, %c0_2] : memref<1x8x512xf32, #tpu.memory_space<vmem>>, vector<1x8x512xf32>
    %c0_3 = arith.constant 0 : index
    %c0_4 = arith.constant 0 : index
    %c0_5 = arith.constant 0 : index
    %4 = vector.load %arg6[%c0_3, %c0_4, %c0_5] : memref<1x8x512xf32, #tpu.memory_space<vmem>>, vector<1x8x512xf32>
    %c0_6 = arith.constant 0 : index
    %c0_7 = arith.constant 0 : index
    %5 = vector.load %arg4[%c0_6, %c0_7] : memref<128x512xi32, #tpu.memory_space<vmem>>, vector<16x512xi32>
    %c15_i32 = arith.constant 15 : i32
    %6 = vector.broadcast %c15_i32 : i32 to vector<16x512xi32>
    %7 = arith.andi %5, %6 : vector<16x512xi32>
    %c4_i32 = arith.constant 4 : i32
    %8 = vector.broadcast %c4_i32 : i32 to vector<16x512xi32>
    %9 = arith.shrsi %5, %8 : vector<16x512xi32>
    %c15_i32_8 = arith.constant 15 : i32
    %10 = vector.broadcast %c15_i32_8 : i32 to vector<16x512xi32>
    %11 = arith.andi %9, %10 : vector<16x512xi32>
    %c8_i32 = arith.constant 8 : i32
    %12 = vector.broadcast %c8_i32 : i32 to vector<16x512xi32>
    %13 = arith.shrsi %5, %12 : vector<16x512xi32>
    %c15_i32_9 = arith.constant 15 : i32
    %14 = vector.broadcast %c15_i32_9 : i32 to vector<16x512xi32>
    %15 = arith.andi %13, %14 : vector<16x512xi32>
    %c12_i32 = arith.constant 12 : i32
    %16 = vector.broadcast %c12_i32 : i32 to vector<16x512xi32>
    %17 = arith.shrsi %5, %16 : vector<16x512xi32>
    %c15_i32_10 = arith.constant 15 : i32
    %18 = vector.broadcast %c15_i32_10 : i32 to vector<16x512xi32>
    %19 = arith.andi %17, %18 : vector<16x512xi32>
    %c16_i32 = arith.constant 16 : i32
    %20 = vector.broadcast %c16_i32 : i32 to vector<16x512xi32>
    %21 = arith.shrsi %5, %20 : vector<16x512xi32>
    %c15_i32_11 = arith.constant 15 : i32
    %22 = vector.broadcast %c15_i32_11 : i32 to vector<16x512xi32>
    %23 = arith.andi %21, %22 : vector<16x512xi32>
    %c20_i32 = arith.constant 20 : i32
    %24 = vector.broadcast %c20_i32 : i32 to vector<16x512xi32>
    %25 = arith.shrsi %5, %24 : vector<16x512xi32>
    %c15_i32_12 = arith.constant 15 : i32
    %26 = vector.broadcast %c15_i32_12 : i32 to vector<16x512xi32>
    %27 = arith.andi %25, %26 : vector<16x512xi32>
    %c24_i32 = arith.constant 24 : i32
    %28 = vector.broadcast %c24_i32 : i32 to vector<16x512xi32>
    %29 = arith.shrsi %5, %28 : vector<16x512xi32>
    %c15_i32_13 = arith.constant 15 : i32
    %30 = vector.broadcast %c15_i32_13 : i32 to vector<16x512xi32>
    %31 = arith.andi %29, %30 : vector<16x512xi32>
    %c28_i32 = arith.constant 28 : i32
    %32 = vector.broadcast %c28_i32 : i32 to vector<16x512xi32>
    %33 = arith.shrsi %5, %32 : vector<16x512xi32>
    %c15_i32_14 = arith.constant 15 : i32
    %34 = vector.broadcast %c15_i32_14 : i32 to vector<16x512xi32>
    %35 = arith.andi %33, %34 : vector<16x512xi32>
    %36 = tpu.concatenate %7, %11, %15, %19, %23, %27, %31, %35 in 0 : vector<16x512xi32>, vector<16x512xi32>, vector<16x512xi32>, vector<16x512xi32>, vector<16x512xi32>, vector<16x512xi32>, vector<16x512xi32>, vector<16x512xi32> -> vector<128x512xi32>
    %37 = arith.sitofp %36 : vector<128x512xi32> to vector<128x512xf32>
    %38 = arith.truncf %37 : vector<128x512xf32> to vector<128x512xbf16>
    %c0_15 = arith.constant 0 : index
    %c0_16 = arith.constant 0 : index
    %39 = vector.load %arg3[%c0_15, %c0_16] : memref<16x1024xbf16, #tpu.memory_space<vmem>>, vector<16x128xbf16>
    %cst = arith.constant dense<0.000000e+00> : vector<16x512xf32>
    %40 = tpu.matmul %39, %38, %cst {dimension_numbers = #tpu.dot_dimension_numbers<[1], [0], [0], [1], [0, 0, 1, 1], [], []>} : vector<16x128xbf16>, vector<128x512xbf16>, vector<16x512xf32> -> vector<16x512xf32>
    %41 = arith.extf %39 : vector<16x128xbf16> to vector<16x128xf32>
    %cst_17 = arith.constant dense<0.000000e+00> : vector<16xf32>
    %42 = vector.multi_reduction <add>, %41, %cst_17 [1] : vector<16x128xf32> to vector<16xf32>
    %43 = vector.shape_cast %42 : vector<16xf32> to vector<16x1xf32>
    %44 = vector.extract_strided_slice %3 {offsets = [0, 0, 0], sizes = [1, 1, 512], strides = [1, 1, 1]} : vector<1x8x512xf32> to vector<1x1x512xf32>
    %45 = vector.shape_cast %44 : vector<1x1x512xf32> to vector<1x512xf32>
    %46 = vector.extract_strided_slice %4 {offsets = [0, 0, 0], sizes = [1, 1, 512], strides = [1, 1, 1]} : vector<1x8x512xf32> to vector<1x1x512xf32>
    %47 = vector.shape_cast %46 : vector<1x1x512xf32> to vector<1x512xf32>
    %c0_18 = arith.constant 0 : index
    %c0_19 = arith.constant 0 : index
    %48 = vector.load %arg9[%c0_18, %c0_19] : memref<16x512xf32, #tpu.memory_space<vmem>>, vector<16x512xf32>
    %49 = vector.broadcast %45 : vector<1x512xf32> to vector<16x512xf32>
    %50 = arith.mulf %49, %40 : vector<16x512xf32>
    %51 = vector.broadcast %47 : vector<1x512xf32> to vector<16x512xf32>
    %52 = vector.broadcast %43 : vector<16x1xf32> to vector<16x512xf32>
    %53 = arith.mulf %51, %52 : vector<16x512xf32>
    %54 = arith.subf %50, %53 : vector<16x512xf32>
    %55 = arith.addf %48, %54 : vector<16x512xf32>
    %c0_20 = arith.constant 0 : index
    %c0_21 = arith.constant 0 : index
    %56 = vector.load %arg9[%c0_20, %c0_21] : memref<16x512xf32, #tpu.memory_space<vmem>>, vector<16x512xf32>
    tpu.vector_store %arg9[%c0_20, %c0_21], %55 {strides = array<i32>} : memref<16x512xf32, #tpu.memory_space<vmem>>, vector<16x512xf32>,
    %c16 = arith.constant 16 : index
    %c0_22 = arith.constant 0 : index
    %57 = vector.load %arg4[%c16, %c0_22] : memref<128x512xi32, #tpu.memory_space<vmem>>, vector<16x512xi32>
    %c15_i32_23 = arith.constant 15 : i32
    %58 = vector.broadcast %c15_i32_23 : i32 to vector<16x512xi32>
    %59 = arith.andi %57, %58 : vector<16x512xi32>
    %c4_i32_24 = arith.constant 4 : i32
    %60 = vector.broadcast %c4_i32_24 : i32 to vector<16x512xi32>
    %61 = arith.shrsi %57, %60 : vector<16x512xi32>
    %c15_i32_25 = arith.constant 15 : i32
    %62 = vector.broadcast %c15_i32_25 : i32 to vector<16x512xi32>
    %63 = arith.andi %61, %62 : vector<16x512xi32>
    %c8_i32_26 = arith.constant 8 : i32
    %64 = vector.broadcast %c8_i32_26 : i32 to vector<16x512xi32>
    %65 = arith.shrsi %57, %64 : vector<16x512xi32>
    %c15_i32_27 = arith.constant 15 : i32
    %66 = vector.broadcast %c15_i32_27 : i32 to vector<16x512xi32>
    %67 = arith.andi %65, %66 : vector<16x512xi32>
    %c12_i32_28 = arith.constant 12 : i32
    %68 = vector.broadcast %c12_i32_28 : i32 to vector<16x512xi32>
    %69 = arith.shrsi %57, %68 : vector<16x512xi32>
    %c15_i32_29 = arith.constant 15 : i32
    %70 = vector.broadcast %c15_i32_29 : i32 to vector<16x512xi32>
    %71 = arith.andi %69, %70 : vector<16x512xi32>
    %c16_i32_30 = arith.constant 16 : i32
    %72 = vector.broadcast %c16_i32_30 : i32 to vector<16x512xi32>
    %73 = arith.shrsi %57, %72 : vector<16x512xi32>
    %c15_i32_31 = arith.constant 15 : i32
    %74 = vector.broadcast %c15_i32_31 : i32 to vector<16x512xi32>
    %75 = arith.andi %73, %74 : vector<16x512xi32>
    %c20_i32_32 = arith.constant 20 : i32
    %76 = vector.broadcast %c20_i32_32 : i32 to vector<16x512xi32>
    %77 = arith.shrsi %57, %76 : vector<16x512xi32>
    %c15_i32_33 = arith.constant 15 : i32
    %78 = vector.broadcast %c15_i32_33 : i32 to vector<16x512xi32>
    %79 = arith.andi %77, %78 : vector<16x512xi32>
    %c24_i32_34 = arith.constant 24 : i32
    %80 = vector.broadcast %c24_i32_34 : i32 to vector<16x512xi32>
    %81 = arith.shrsi %57, %80 : vector<16x512xi32>
    %c15_i32_35 = arith.constant 15 : i32
    %82 = vector.broadcast %c15_i32_35 : i32 to vector<16x512xi32>
    %83 = arith.andi %81, %82 : vector<16x512xi32>
    %c28_i32_36 = arith.constant 28 : i32
    %84 = vector.broadcast %c28_i32_36 : i32 to vector<16x512xi32>
    %85 = arith.shrsi %57, %84 : vector<16x512xi32>
    %c15_i32_37 = arith.constant 15 : i32
    %86 = vector.broadcast %c15_i32_37 : i32 to vector<16x512xi32>
    %87 = arith.andi %85, %86 : vector<16x512xi32>
    %88 = tpu.concatenate %59, %63, %67, %71, %75, %79, %83, %87 in 0 : vector<16x512xi32>, vector<16x512xi32>, vector<16x512xi32>, vector<16x512xi32>, vector<16x512xi32>, vector<16x512xi32>, vector<16x512xi32>, vector<16x512xi32> -> vector<128x512xi32>
    %89 = arith.sitofp %88 : vector<128x512xi32> to vector<128x512xf32>
    %90 = arith.truncf %89 : vector<128x512xf32> to vector<128x512xbf16>
    %c0_38 = arith.constant 0 : index
    %c128 = arith.constant 128 : index
    %91 = vector.load %arg3[%c0_38, %c128] : memref<16x1024xbf16, #tpu.memory_space<vmem>>, vector<16x128xbf16>
    %cst_39 = arith.constant dense<0.000000e+00> : vector<16x512xf32>
    %92 = tpu.matmul %91, %90, %cst_39 {dimension_numbers = #tpu.dot_dimension_numbers<[1], [0], [0], [1], [0, 0, 1, 1], [], []>} : vector<16x128xbf16>, vector<128x512xbf16>, vector<16x512xf32> -> vector<16x512xf32>
    %93 = arith.extf %91 : vector<16x128xbf16> to vector<16x128xf32>
    %cst_40 = arith.constant dense<0.000000e+00> : vector<16xf32>
    %94 = vector.multi_reduction <add>, %93, %cst_40 [1] : vector<16x128xf32> to vector<16xf32>
    %95 = vector.shape_cast %94 : vector<16xf32> to vector<16x1xf32>
    %96 = vector.extract_strided_slice %3 {offsets = [0, 1, 0], sizes = [1, 1, 512], strides = [1, 1, 1]} : vector<1x8x512xf32> to vector<1x1x512xf32>
    %97 = vector.shape_cast %96 : vector<1x1x512xf32> to vector<1x512xf32>
    %98 = vector.extract_strided_slice %4 {offsets = [0, 1, 0], sizes = [1, 1, 512], strides = [1, 1, 1]} : vector<1x8x512xf32> to vector<1x1x512xf32>
    %99 = vector.shape_cast %98 : vector<1x1x512xf32> to vector<1x512xf32>
    %c0_41 = arith.constant 0 : index
    %c0_42 = arith.constant 0 : index
    %100 = vector.load %arg9[%c0_41, %c0_42] : memref<16x512xf32, #tpu.memory_space<vmem>>, vector<16x512xf32>
    %101 = vector.broadcast %97 : vector<1x512xf32> to vector<16x512xf32>
    %102 = arith.mulf %101, %92 : vector<16x512xf32>
    %103 = vector.broadcast %99 : vector<1x512xf32> to vector<16x512xf32>
    %104 = vector.broadcast %95 : vector<16x1xf32> to vector<16x512xf32>
    %105 = arith.mulf %103, %104 : vector<16x512xf32>
    %106 = arith.subf %102, %105 : vector<16x512xf32>
    %107 = arith.addf %100, %106 : vector<16x512xf32>
    %c0_43 = arith.constant 0 : index
    %c0_44 = arith.constant 0 : index
    %108 = vector.load %arg9[%c0_43, %c0_44] : memref<16x512xf32, #tpu.memory_space<vmem>>, vector<16x512xf32>
    tpu.vector_store %arg9[%c0_43, %c0_44], %107 {strides = array<i32>} : memref<16x512xf32, #tpu.memory_space<vmem>>, vector<16x512xf32>,
    %c32 = arith.constant 32 : index
    %c0_45 = arith.constant 0 : index
    %109 = vector.load %arg4[%c32, %c0_45] : memref<128x512xi32, #tpu.memory_space<vmem>>, vector<16x512xi32>
    %c15_i32_46 = arith.constant 15 : i32
    %110 = vector.broadcast %c15_i32_46 : i32 to vector<16x512xi32>
    %111 = arith.andi %109, %110 : vector<16x512xi32>
    %c4_i32_47 = arith.constant 4 : i32
    %112 = vector.broadcast %c4_i32_47 : i32 to vector<16x512xi32>
    %113 = arith.shrsi %109, %112 : vector<16x512xi32>
    %c15_i32_48 = arith.constant 15 : i32
    %114 = vector.broadcast %c15_i32_48 : i32 to vector<16x512xi32>
    %115 = arith.andi %113, %114 : vector<16x512xi32>
    %c8_i32_49 = arith.constant 8 : i32
    %116 = vector.broadcast %c8_i32_49 : i32 to vector<16x512xi32>
    %117 = arith.shrsi %109, %116 : vector<16x512xi32>
    %c15_i32_50 = arith.constant 15 : i32
    %118 = vector.broadcast %c15_i32_50 : i32 to vector<16x512xi32>
    %119 = arith.andi %117, %118 : vector<16x512xi32>
    %c12_i32_51 = arith.constant 12 : i32
    %120 = vector.broadcast %c12_i32_51 : i32 to vector<16x512xi32>
    %121 = arith.shrsi %109, %120 : vector<16x512xi32>
    %c15_i32_52 = arith.constant 15 : i32
    %122 = vector.broadcast %c15_i32_52 : i32 to vector<16x512xi32>
    %123 = arith.andi %121, %122 : vector<16x512xi32>
    %c16_i32_53 = arith.constant 16 : i32
    %124 = vector.broadcast %c16_i32_53 : i32 to vector<16x512xi32>
    %125 = arith.shrsi %109, %124 : vector<16x512xi32>
    %c15_i32_54 = arith.constant 15 : i32
    %126 = vector.broadcast %c15_i32_54 : i32 to vector<16x512xi32>
    %127 = arith.andi %125, %126 : vector<16x512xi32>
    %c20_i32_55 = arith.constant 20 : i32
    %128 = vector.broadcast %c20_i32_55 : i32 to vector<16x512xi32>
    %129 = arith.shrsi %109, %128 : vector<16x512xi32>
    %c15_i32_56 = arith.constant 15 : i32
    %130 = vector.broadcast %c15_i32_56 : i32 to vector<16x512xi32>
    %131 = arith.andi %129, %130 : vector<16x512xi32>
    %c24_i32_57 = arith.constant 24 : i32
    %132 = vector.broadcast %c24_i32_57 : i32 to vector<16x512xi32>
    %133 = arith.shrsi %109, %132 : vector<16x512xi32>
    %c15_i32_58 = arith.constant 15 : i32
    %134 = vector.broadcast %c15_i32_58 : i32 to vector<16x512xi32>
    %135 = arith.andi %133, %134 : vector<16x512xi32>
    %c28_i32_59 = arith.constant 28 : i32
    %136 = vector.broadcast %c28_i32_59 : i32 to vector<16x512xi32>
    %137 = arith.shrsi %109, %136 : vector<16x512xi32>
    %c15_i32_60 = arith.constant 15 : i32
    %138 = vector.broadcast %c15_i32_60 : i32 to vector<16x512xi32>
    %139 = arith.andi %137, %138 : vector<16x512xi32>
    %140 = tpu.concatenate %111, %115, %119, %123, %127, %131, %135, %139 in 0 : vector<16x512xi32>, vector<16x512xi32>, vector<16x512xi32>, vector<16x512xi32>, vector<16x512xi32>, vector<16x512xi32>, vector<16x512xi32>, vector<16x512xi32> -> vector<128x512xi32>
    %141 = arith.sitofp %140 : vector<128x512xi32> to vector<128x512xf32>
    %142 = arith.truncf %141 : vector<128x512xf32> to vector<128x512xbf16>
    %c0_61 = arith.constant 0 : index
    %c256 = arith.constant 256 : index
    %143 = vector.load %arg3[%c0_61, %c256] : memref<16x1024xbf16, #tpu.memory_space<vmem>>, vector<16x128xbf16>
    %cst_62 = arith.constant dense<0.000000e+00> : vector<16x512xf32>
    %144 = tpu.matmul %143, %142, %cst_62 {dimension_numbers = #tpu.dot_dimension_numbers<[1], [0], [0], [1], [0, 0, 1, 1], [], []>} : vector<16x128xbf16>, vector<128x512xbf16>, vector<16x512xf32> -> vector<16x512xf32>
    %145 = arith.extf %143 : vector<16x128xbf16> to vector<16x128xf32>
    %cst_63 = arith.constant dense<0.000000e+00> : vector<16xf32>
    %146 = vector.multi_reduction <add>, %145, %cst_63 [1] : vector<16x128xf32> to vector<16xf32>
    %147 = vector.shape_cast %146 : vector<16xf32> to vector<16x1xf32>
    %148 = vector.extract_strided_slice %3 {offsets = [0, 2, 0], sizes = [1, 1, 512], strides = [1, 1, 1]} : vector<1x8x512xf32> to vector<1x1x512xf32>
    %149 = vector.shape_cast %148 : vector<1x1x512xf32> to vector<1x512xf32>
    %150 = vector.extract_strided_slice %4 {offsets = [0, 2, 0], sizes = [1, 1, 512], strides = [1, 1, 1]} : vector<1x8x512xf32> to vector<1x1x512xf32>
    %151 = vector.shape_cast %150 : vector<1x1x512xf32> to vector<1x512xf32>
    %c0_64 = arith.constant 0 : index
    %c0_65 = arith.constant 0 : index
    %152 = vector.load %arg9[%c0_64, %c0_65] : memref<16x512xf32, #tpu.memory_space<vmem>>, vector<16x512xf32>
    %153 = vector.broadcast %149 : vector<1x512xf32> to vector<16x512xf32>
    %154 = arith.mulf %153, %144 : vector<16x512xf32>
    %155 = vector.broadcast %151 : vector<1x512xf32> to vector<16x512xf32>
    %156 = vector.broadcast %147 : vector<16x1xf32> to vector<16x512xf32>
    %157 = arith.mulf %155, %156 : vector<16x512xf32>
    %158 = arith.subf %154, %157 : vector<16x512xf32>
    %159 = arith.addf %152, %158 : vector<16x512xf32>
    %c0_66 = arith.constant 0 : index
    %c0_67 = arith.constant 0 : index
    %160 = vector.load %arg9[%c0_66, %c0_67] : memref<16x512xf32, #tpu.memory_space<vmem>>, vector<16x512xf32>
    tpu.vector_store %arg9[%c0_66, %c0_67], %159 {strides = array<i32>} : memref<16x512xf32, #tpu.memory_space<vmem>>, vector<16x512xf32>,
    %c48 = arith.constant 48 : index
    %c0_68 = arith.constant 0 : index
    %161 = vector.load %arg4[%c48, %c0_68] : memref<128x512xi32, #tpu.memory_space<vmem>>, vector<16x512xi32>
    %c15_i32_69 = arith.constant 15 : i32
    %162 = vector.broadcast %c15_i32_69 : i32 to vector<16x512xi32>
    %163 = arith.andi %161, %162 : vector<16x512xi32>
    %c4_i32_70 = arith.constant 4 : i32
    %164 = vector.broadcast %c4_i32_70 : i32 to vector<16x512xi32>
    %165 = arith.shrsi %161, %164 : vector<16x512xi32>
    %c15_i32_71 = arith.constant 15 : i32
    %166 = vector.broadcast %c15_i32_71 : i32 to vector<16x512xi32>
    %167 = arith.andi %165, %166 : vector<16x512xi32>
    %c8_i32_72 = arith.constant 8 : i32
    %168 = vector.broadcast %c8_i32_72 : i32 to vector<16x512xi32>
    %169 = arith.shrsi %161, %168 : vector<16x512xi32>
    %c15_i32_73 = arith.constant 15 : i32
    %170 = vector.broadcast %c15_i32_73 : i32 to vector<16x512xi32>
    %171 = arith.andi %169, %170 : vector<16x512xi32>
    %c12_i32_74 = arith.constant 12 : i32
    %172 = vector.broadcast %c12_i32_74 : i32 to vector<16x512xi32>
    %173 = arith.shrsi %161, %172 : vector<16x512xi32>
    %c15_i32_75 = arith.constant 15 : i32
    %174 = vector.broadcast %c15_i32_75 : i32 to vector<16x512xi32>
    %175 = arith.andi %173, %174 : vector<16x512xi32>
    %c16_i32_76 = arith.constant 16 : i32
    %176 = vector.broadcast %c16_i32_76 : i32 to vector<16x512xi32>
    %177 = arith.shrsi %161, %176 : vector<16x512xi32>
    %c15_i32_77 = arith.constant 15 : i32
    %178 = vector.broadcast %c15_i32_77 : i32 to vector<16x512xi32>
    %179 = arith.andi %177, %178 : vector<16x512xi32>
    %c20_i32_78 = arith.constant 20 : i32
    %180 = vector.broadcast %c20_i32_78 : i32 to vector<16x512xi32>
    %181 = arith.shrsi %161, %180 : vector<16x512xi32>
    %c15_i32_79 = arith.constant 15 : i32
    %182 = vector.broadcast %c15_i32_79 : i32 to vector<16x512xi32>
    %183 = arith.andi %181, %182 : vector<16x512xi32>
    %c24_i32_80 = arith.constant 24 : i32
    %184 = vector.broadcast %c24_i32_80 : i32 to vector<16x512xi32>
    %185 = arith.shrsi %161, %184 : vector<16x512xi32>
    %c15_i32_81 = arith.constant 15 : i32
    %186 = vector.broadcast %c15_i32_81 : i32 to vector<16x512xi32>
    %187 = arith.andi %185, %186 : vector<16x512xi32>
    %c28_i32_82 = arith.constant 28 : i32
    %188 = vector.broadcast %c28_i32_82 : i32 to vector<16x512xi32>
    %189 = arith.shrsi %161, %188 : vector<16x512xi32>
    %c15_i32_83 = arith.constant 15 : i32
    %190 = vector.broadcast %c15_i32_83 : i32 to vector<16x512xi32>
    %191 = arith.andi %189, %190 : vector<16x512xi32>
    %192 = tpu.concatenate %163, %167, %171, %175, %179, %183, %187, %191 in 0 : vector<16x512xi32>, vector<16x512xi32>, vector<16x512xi32>, vector<16x512xi32>, vector<16x512xi32>, vector<16x512xi32>, vector<16x512xi32>, vector<16x512xi32> -> vector<128x512xi32>
    %193 = arith.sitofp %192 : vector<128x512xi32> to vector<128x512xf32>
    %194 = arith.truncf %193 : vector<128x512xf32> to vector<128x512xbf16>
    %c0_84 = arith.constant 0 : index
    %c384 = arith.constant 384 : index
    %195 = vector.load %arg3[%c0_84, %c384] : memref<16x1024xbf16, #tpu.memory_space<vmem>>, vector<16x128xbf16>
    %cst_85 = arith.constant dense<0.000000e+00> : vector<16x512xf32>
    %196 = tpu.matmul %195, %194, %cst_85 {dimension_numbers = #tpu.dot_dimension_numbers<[1], [0], [0], [1], [0, 0, 1, 1], [], []>} : vector<16x128xbf16>, vector<128x512xbf16>, vector<16x512xf32> -> vector<16x512xf32>
    %197 = arith.extf %195 : vector<16x128xbf16> to vector<16x128xf32>
    %cst_86 = arith.constant dense<0.000000e+00> : vector<16xf32>
    %198 = vector.multi_reduction <add>, %197, %cst_86 [1] : vector<16x128xf32> to vector<16xf32>
    %199 = vector.shape_cast %198 : vector<16xf32> to vector<16x1xf32>
    %200 = vector.extract_strided_slice %3 {offsets = [0, 3, 0], sizes = [1, 1, 512], strides = [1, 1, 1]} : vector<1x8x512xf32> to vector<1x1x512xf32>
    %201 = vector.shape_cast %200 : vector<1x1x512xf32> to vector<1x512xf32>
    %202 = vector.extract_strided_slice %4 {offsets = [0, 3, 0], sizes = [1, 1, 512], strides = [1, 1, 1]} : vector<1x8x512xf32> to vector<1x1x512xf32>
    %203 = vector.shape_cast %202 : vector<1x1x512xf32> to vector<1x512xf32>
    %c0_87 = arith.constant 0 : index
    %c0_88 = arith.constant 0 : index
    %204 = vector.load %arg9[%c0_87, %c0_88] : memref<16x512xf32, #tpu.memory_space<vmem>>, vector<16x512xf32>
    %205 = vector.broadcast %201 : vector<1x512xf32> to vector<16x512xf32>
    %206 = arith.mulf %205, %196 : vector<16x512xf32>
    %207 = vector.broadcast %203 : vector<1x512xf32> to vector<16x512xf32>
    %208 = vector.broadcast %199 : vector<16x1xf32> to vector<16x512xf32>
    %209 = arith.mulf %207, %208 : vector<16x512xf32>
    %210 = arith.subf %206, %209 : vector<16x512xf32>
    %211 = arith.addf %204, %210 : vector<16x512xf32>
    %c0_89 = arith.constant 0 : index
    %c0_90 = arith.constant 0 : index
    %212 = vector.load %arg9[%c0_89, %c0_90] : memref<16x512xf32, #tpu.memory_space<vmem>>, vector<16x512xf32>
    tpu.vector_store %arg9[%c0_89, %c0_90], %211 {strides = array<i32>} : memref<16x512xf32, #tpu.memory_space<vmem>>, vector<16x512xf32>,
    %c64 = arith.constant 64 : index
    %c0_91 = arith.constant 0 : index
    %213 = vector.load %arg4[%c64, %c0_91] : memref<128x512xi32, #tpu.memory_space<vmem>>, vector<16x512xi32>
    %c15_i32_92 = arith.constant 15 : i32
    %214 = vector.broadcast %c15_i32_92 : i32 to vector<16x512xi32>
    %215 = arith.andi %213, %214 : vector<16x512xi32>
    %c4_i32_93 = arith.constant 4 : i32
    %216 = vector.broadcast %c4_i32_93 : i32 to vector<16x512xi32>
    %217 = arith.shrsi %213, %216 : vector<16x512xi32>
    %c15_i32_94 = arith.constant 15 : i32
    %218 = vector.broadcast %c15_i32_94 : i32 to vector<16x512xi32>
    %219 = arith.andi %217, %218 : vector<16x512xi32>
    %c8_i32_95 = arith.constant 8 : i32
    %220 = vector.broadcast %c8_i32_95 : i32 to vector<16x512xi32>
    %221 = arith.shrsi %213, %220 : vector<16x512xi32>
    %c15_i32_96 = arith.constant 15 : i32
    %222 = vector.broadcast %c15_i32_96 : i32 to vector<16x512xi32>
    %223 = arith.andi %221, %222 : vector<16x512xi32>
    %c12_i32_97 = arith.constant 12 : i32
    %224 = vector.broadcast %c12_i32_97 : i32 to vector<16x512xi32>
    %225 = arith.shrsi %213, %224 : vector<16x512xi32>
    %c15_i32_98 = arith.constant 15 : i32
    %226 = vector.broadcast %c15_i32_98 : i32 to vector<16x512xi32>
    %227 = arith.andi %225, %226 : vector<16x512xi32>
    %c16_i32_99 = arith.constant 16 : i32
    %228 = vector.broadcast %c16_i32_99 : i32 to vector<16x512xi32>
    %229 = arith.shrsi %213, %228 : vector<16x512xi32>
    %c15_i32_100 = arith.constant 15 : i32
    %230 = vector.broadcast %c15_i32_100 : i32 to vector<16x512xi32>
    %231 = arith.andi %229, %230 : vector<16x512xi32>
    %c20_i32_101 = arith.constant 20 : i32
    %232 = vector.broadcast %c20_i32_101 : i32 to vector<16x512xi32>
    %233 = arith.shrsi %213, %232 : vector<16x512xi32>
    %c15_i32_102 = arith.constant 15 : i32
    %234 = vector.broadcast %c15_i32_102 : i32 to vector<16x512xi32>
    %235 = arith.andi %233, %234 : vector<16x512xi32>
    %c24_i32_103 = arith.constant 24 : i32
    %236 = vector.broadcast %c24_i32_103 : i32 to vector<16x512xi32>
    %237 = arith.shrsi %213, %236 : vector<16x512xi32>
    %c15_i32_104 = arith.constant 15 : i32
    %238 = vector.broadcast %c15_i32_104 : i32 to vector<16x512xi32>
    %239 = arith.andi %237, %238 : vector<16x512xi32>
    %c28_i32_105 = arith.constant 28 : i32
    %240 = vector.broadcast %c28_i32_105 : i32 to vector<16x512xi32>
    %241 = arith.shrsi %213, %240 : vector<16x512xi32>
    %c15_i32_106 = arith.constant 15 : i32
    %242 = vector.broadcast %c15_i32_106 : i32 to vector<16x512xi32>
    %243 = arith.andi %241, %242 : vector<16x512xi32>
    %244 = tpu.concatenate %215, %219, %223, %227, %231, %235, %239, %243 in 0 : vector<16x512xi32>, vector<16x512xi32>, vector<16x512xi32>, vector<16x512xi32>, vector<16x512xi32>, vector<16x512xi32>, vector<16x512xi32>, vector<16x512xi32> -> vector<128x512xi32>
    %245 = arith.sitofp %244 : vector<128x512xi32> to vector<128x512xf32>
    %246 = arith.truncf %245 : vector<128x512xf32> to vector<128x512xbf16>
    %c0_107 = arith.constant 0 : index
    %c512 = arith.constant 512 : index
    %247 = vector.load %arg3[%c0_107, %c512] : memref<16x1024xbf16, #tpu.memory_space<vmem>>, vector<16x128xbf16>
    %cst_108 = arith.constant dense<0.000000e+00> : vector<16x512xf32>
    %248 = tpu.matmul %247, %246, %cst_108 {dimension_numbers = #tpu.dot_dimension_numbers<[1], [0], [0], [1], [0, 0, 1, 1], [], []>} : vector<16x128xbf16>, vector<128x512xbf16>, vector<16x512xf32> -> vector<16x512xf32>
    %249 = arith.extf %247 : vector<16x128xbf16> to vector<16x128xf32>
    %cst_109 = arith.constant dense<0.000000e+00> : vector<16xf32>
    %250 = vector.multi_reduction <add>, %249, %cst_109 [1] : vector<16x128xf32> to vector<16xf32>
    %251 = vector.shape_cast %250 : vector<16xf32> to vector<16x1xf32>
    %252 = vector.extract_strided_slice %3 {offsets = [0, 4, 0], sizes = [1, 1, 512], strides = [1, 1, 1]} : vector<1x8x512xf32> to vector<1x1x512xf32>
    %253 = vector.shape_cast %252 : vector<1x1x512xf32> to vector<1x512xf32>
    %254 = vector.extract_strided_slice %4 {offsets = [0, 4, 0], sizes = [1, 1, 512], strides = [1, 1, 1]} : vector<1x8x512xf32> to vector<1x1x512xf32>
    %255 = vector.shape_cast %254 : vector<1x1x512xf32> to vector<1x512xf32>
    %c0_110 = arith.constant 0 : index
    %c0_111 = arith.constant 0 : index
    %256 = vector.load %arg9[%c0_110, %c0_111] : memref<16x512xf32, #tpu.memory_space<vmem>>, vector<16x512xf32>
    %257 = vector.broadcast %253 : vector<1x512xf32> to vector<16x512xf32>
    %258 = arith.mulf %257, %248 : vector<16x512xf32>
    %259 = vector.broadcast %255 : vector<1x512xf32> to vector<16x512xf32>
    %260 = vector.broadcast %251 : vector<16x1xf32> to vector<16x512xf32>
    %261 = arith.mulf %259, %260 : vector<16x512xf32>
    %262 = arith.subf %258, %261 : vector<16x512xf32>
    %263 = arith.addf %256, %262 : vector<16x512xf32>
    %c0_112 = arith.constant 0 : index
    %c0_113 = arith.constant 0 : index
    %264 = vector.load %arg9[%c0_112, %c0_113] : memref<16x512xf32, #tpu.memory_space<vmem>>, vector<16x512xf32>
    tpu.vector_store %arg9[%c0_112, %c0_113], %263 {strides = array<i32>} : memref<16x512xf32, #tpu.memory_space<vmem>>, vector<16x512xf32>,
    %c80 = arith.constant 80 : index
    %c0_114 = arith.constant 0 : index
    %265 = vector.load %arg4[%c80, %c0_114] : memref<128x512xi32, #tpu.memory_space<vmem>>, vector<16x512xi32>
    %c15_i32_115 = arith.constant 15 : i32
    %266 = vector.broadcast %c15_i32_115 : i32 to vector<16x512xi32>
    %267 = arith.andi %265, %266 : vector<16x512xi32>
    %c4_i32_116 = arith.constant 4 : i32
    %268 = vector.broadcast %c4_i32_116 : i32 to vector<16x512xi32>
    %269 = arith.shrsi %265, %268 : vector<16x512xi32>
    %c15_i32_117 = arith.constant 15 : i32
    %270 = vector.broadcast %c15_i32_117 : i32 to vector<16x512xi32>
    %271 = arith.andi %269, %270 : vector<16x512xi32>
    %c8_i32_118 = arith.constant 8 : i32
    %272 = vector.broadcast %c8_i32_118 : i32 to vector<16x512xi32>
    %273 = arith.shrsi %265, %272 : vector<16x512xi32>
    %c15_i32_119 = arith.constant 15 : i32
    %274 = vector.broadcast %c15_i32_119 : i32 to vector<16x512xi32>
    %275 = arith.andi %273, %274 : vector<16x512xi32>
    %c12_i32_120 = arith.constant 12 : i32
    %276 = vector.broadcast %c12_i32_120 : i32 to vector<16x512xi32>
    %277 = arith.shrsi %265, %276 : vector<16x512xi32>
    %c15_i32_121 = arith.constant 15 : i32
    %278 = vector.broadcast %c15_i32_121 : i32 to vector<16x512xi32>
    %279 = arith.andi %277, %278 : vector<16x512xi32>
    %c16_i32_122 = arith.constant 16 : i32
    %280 = vector.broadcast %c16_i32_122 : i32 to vector<16x512xi32>
    %281 = arith.shrsi %265, %280 : vector<16x512xi32>
    %c15_i32_123 = arith.constant 15 : i32
    %282 = vector.broadcast %c15_i32_123 : i32 to vector<16x512xi32>
    %283 = arith.andi %281, %282 : vector<16x512xi32>
    %c20_i32_124 = arith.constant 20 : i32
    %284 = vector.broadcast %c20_i32_124 : i32 to vector<16x512xi32>
    %285 = arith.shrsi %265, %284 : vector<16x512xi32>
    %c15_i32_125 = arith.constant 15 : i32
    %286 = vector.broadcast %c15_i32_125 : i32 to vector<16x512xi32>
    %287 = arith.andi %285, %286 : vector<16x512xi32>
    %c24_i32_126 = arith.constant 24 : i32
    %288 = vector.broadcast %c24_i32_126 : i32 to vector<16x512xi32>
    %289 = arith.shrsi %265, %288 : vector<16x512xi32>
    %c15_i32_127 = arith.constant 15 : i32
    %290 = vector.broadcast %c15_i32_127 : i32 to vector<16x512xi32>
    %291 = arith.andi %289, %290 : vector<16x512xi32>
    %c28_i32_128 = arith.constant 28 : i32
    %292 = vector.broadcast %c28_i32_128 : i32 to vector<16x512xi32>
    %293 = arith.shrsi %265, %292 : vector<16x512xi32>
    %c15_i32_129 = arith.constant 15 : i32
    %294 = vector.broadcast %c15_i32_129 : i32 to vector<16x512xi32>
    %295 = arith.andi %293, %294 : vector<16x512xi32>
    %296 = tpu.concatenate %267, %271, %275, %279, %283, %287, %291, %295 in 0 : vector<16x512xi32>, vector<16x512xi32>, vector<16x512xi32>, vector<16x512xi32>, vector<16x512xi32>, vector<16x512xi32>, vector<16x512xi32>, vector<16x512xi32> -> vector<128x512xi32>
    %297 = arith.sitofp %296 : vector<128x512xi32> to vector<128x512xf32>
    %298 = arith.truncf %297 : vector<128x512xf32> to vector<128x512xbf16>
    %c0_130 = arith.constant 0 : index
    %c640 = arith.constant 640 : index
    %299 = vector.load %arg3[%c0_130, %c640] : memref<16x1024xbf16, #tpu.memory_space<vmem>>, vector<16x128xbf16>
    %cst_131 = arith.constant dense<0.000000e+00> : vector<16x512xf32>
    %300 = tpu.matmul %299, %298, %cst_131 {dimension_numbers = #tpu.dot_dimension_numbers<[1], [0], [0], [1], [0, 0, 1, 1], [], []>} : vector<16x128xbf16>, vector<128x512xbf16>, vector<16x512xf32> -> vector<16x512xf32>
    %301 = arith.extf %299 : vector<16x128xbf16> to vector<16x128xf32>
    %cst_132 = arith.constant dense<0.000000e+00> : vector<16xf32>
    %302 = vector.multi_reduction <add>, %301, %cst_132 [1] : vector<16x128xf32> to vector<16xf32>
    %303 = vector.shape_cast %302 : vector<16xf32> to vector<16x1xf32>
    %304 = vector.extract_strided_slice %3 {offsets = [0, 5, 0], sizes = [1, 1, 512], strides = [1, 1, 1]} : vector<1x8x512xf32> to vector<1x1x512xf32>
    %305 = vector.shape_cast %304 : vector<1x1x512xf32> to vector<1x512xf32>
    %306 = vector.extract_strided_slice %4 {offsets = [0, 5, 0], sizes = [1, 1, 512], strides = [1, 1, 1]} : vector<1x8x512xf32> to vector<1x1x512xf32>
    %307 = vector.shape_cast %306 : vector<1x1x512xf32> to vector<1x512xf32>
    %c0_133 = arith.constant 0 : index
    %c0_134 = arith.constant 0 : index
    %308 = vector.load %arg9[%c0_133, %c0_134] : memref<16x512xf32, #tpu.memory_space<vmem>>, vector<16x512xf32>
    %309 = vector.broadcast %305 : vector<1x512xf32> to vector<16x512xf32>
    %310 = arith.mulf %309, %300 : vector<16x512xf32>
    %311 = vector.broadcast %307 : vector<1x512xf32> to vector<16x512xf32>
    %312 = vector.broadcast %303 : vector<16x1xf32> to vector<16x512xf32>
    %313 = arith.mulf %311, %312 : vector<16x512xf32>
    %314 = arith.subf %310, %313 : vector<16x512xf32>
    %315 = arith.addf %308, %314 : vector<16x512xf32>
    %c0_135 = arith.constant 0 : index
    %c0_136 = arith.constant 0 : index
    %316 = vector.load %arg9[%c0_135, %c0_136] : memref<16x512xf32, #tpu.memory_space<vmem>>, vector<16x512xf32>
    tpu.vector_store %arg9[%c0_135, %c0_136], %315 {strides = array<i32>} : memref<16x512xf32, #tpu.memory_space<vmem>>, vector<16x512xf32>,
    %c96 = arith.constant 96 : index
    %c0_137 = arith.constant 0 : index
    %317 = vector.load %arg4[%c96, %c0_137] : memref<128x512xi32, #tpu.memory_space<vmem>>, vector<16x512xi32>
    %c15_i32_138 = arith.constant 15 : i32
    %318 = vector.broadcast %c15_i32_138 : i32 to vector<16x512xi32>
    %319 = arith.andi %317, %318 : vector<16x512xi32>
    %c4_i32_139 = arith.constant 4 : i32
    %320 = vector.broadcast %c4_i32_139 : i32 to vector<16x512xi32>
    %321 = arith.shrsi %317, %320 : vector<16x512xi32>
    %c15_i32_140 = arith.constant 15 : i32
    %322 = vector.broadcast %c15_i32_140 : i32 to vector<16x512xi32>
    %323 = arith.andi %321, %322 : vector<16x512xi32>
    %c8_i32_141 = arith.constant 8 : i32
    %324 = vector.broadcast %c8_i32_141 : i32 to vector<16x512xi32>
    %325 = arith.shrsi %317, %324 : vector<16x512xi32>
    %c15_i32_142 = arith.constant 15 : i32
    %326 = vector.broadcast %c15_i32_142 : i32 to vector<16x512xi32>
    %327 = arith.andi %325, %326 : vector<16x512xi32>
    %c12_i32_143 = arith.constant 12 : i32
    %328 = vector.broadcast %c12_i32_143 : i32 to vector<16x512xi32>
    %329 = arith.shrsi %317, %328 : vector<16x512xi32>
    %c15_i32_144 = arith.constant 15 : i32
    %330 = vector.broadcast %c15_i32_144 : i32 to vector<16x512xi32>
    %331 = arith.andi %329, %330 : vector<16x512xi32>
    %c16_i32_145 = arith.constant 16 : i32
    %332 = vector.broadcast %c16_i32_145 : i32 to vector<16x512xi32>
    %333 = arith.shrsi %317, %332 : vector<16x512xi32>
    %c15_i32_146 = arith.constant 15 : i32
    %334 = vector.broadcast %c15_i32_146 : i32 to vector<16x512xi32>
    %335 = arith.andi %333, %334 : vector<16x512xi32>
    %c20_i32_147 = arith.constant 20 : i32
    %336 = vector.broadcast %c20_i32_147 : i32 to vector<16x512xi32>
    %337 = arith.shrsi %317, %336 : vector<16x512xi32>
    %c15_i32_148 = arith.constant 15 : i32
    %338 = vector.broadcast %c15_i32_148 : i32 to vector<16x512xi32>
    %339 = arith.andi %337, %338 : vector<16x512xi32>
    %c24_i32_149 = arith.constant 24 : i32
    %340 = vector.broadcast %c24_i32_149 : i32 to vector<16x512xi32>
    %341 = arith.shrsi %317, %340 : vector<16x512xi32>
    %c15_i32_150 = arith.constant 15 : i32
    %342 = vector.broadcast %c15_i32_150 : i32 to vector<16x512xi32>
    %343 = arith.andi %341, %342 : vector<16x512xi32>
    %c28_i32_151 = arith.constant 28 : i32
    %344 = vector.broadcast %c28_i32_151 : i32 to vector<16x512xi32>
    %345 = arith.shrsi %317, %344 : vector<16x512xi32>
    %c15_i32_152 = arith.constant 15 : i32
    %346 = vector.broadcast %c15_i32_152 : i32 to vector<16x512xi32>
    %347 = arith.andi %345, %346 : vector<16x512xi32>
    %348 = tpu.concatenate %319, %323, %327, %331, %335, %339, %343, %347 in 0 : vector<16x512xi32>, vector<16x512xi32>, vector<16x512xi32>, vector<16x512xi32>, vector<16x512xi32>, vector<16x512xi32>, vector<16x512xi32>, vector<16x512xi32> -> vector<128x512xi32>
    %349 = arith.sitofp %348 : vector<128x512xi32> to vector<128x512xf32>
    %350 = arith.truncf %349 : vector<128x512xf32> to vector<128x512xbf16>
    %c0_153 = arith.constant 0 : index
    %c768 = arith.constant 768 : index
    %351 = vector.load %arg3[%c0_153, %c768] : memref<16x1024xbf16, #tpu.memory_space<vmem>>, vector<16x128xbf16>
    %cst_154 = arith.constant dense<0.000000e+00> : vector<16x512xf32>
    %352 = tpu.matmul %351, %350, %cst_154 {dimension_numbers = #tpu.dot_dimension_numbers<[1], [0], [0], [1], [0, 0, 1, 1], [], []>} : vector<16x128xbf16>, vector<128x512xbf16>, vector<16x512xf32> -> vector<16x512xf32>
    %353 = arith.extf %351 : vector<16x128xbf16> to vector<16x128xf32>
    %cst_155 = arith.constant dense<0.000000e+00> : vector<16xf32>
    %354 = vector.multi_reduction <add>, %353, %cst_155 [1] : vector<16x128xf32> to vector<16xf32>
    %355 = vector.shape_cast %354 : vector<16xf32> to vector<16x1xf32>
    %356 = vector.extract_strided_slice %3 {offsets = [0, 6, 0], sizes = [1, 1, 512], strides = [1, 1, 1]} : vector<1x8x512xf32> to vector<1x1x512xf32>
    %357 = vector.shape_cast %356 : vector<1x1x512xf32> to vector<1x512xf32>
    %358 = vector.extract_strided_slice %4 {offsets = [0, 6, 0], sizes = [1, 1, 512], strides = [1, 1, 1]} : vector<1x8x512xf32> to vector<1x1x512xf32>
    %359 = vector.shape_cast %358 : vector<1x1x512xf32> to vector<1x512xf32>
    %c0_156 = arith.constant 0 : index
    %c0_157 = arith.constant 0 : index
    %360 = vector.load %arg9[%c0_156, %c0_157] : memref<16x512xf32, #tpu.memory_space<vmem>>, vector<16x512xf32>
    %361 = vector.broadcast %357 : vector<1x512xf32> to vector<16x512xf32>
    %362 = arith.mulf %361, %352 : vector<16x512xf32>
    %363 = vector.broadcast %359 : vector<1x512xf32> to vector<16x512xf32>
    %364 = vector.broadcast %355 : vector<16x1xf32> to vector<16x512xf32>
    %365 = arith.mulf %363, %364 : vector<16x512xf32>
    %366 = arith.subf %362, %365 : vector<16x512xf32>
    %367 = arith.addf %360, %366 : vector<16x512xf32>
    %c0_158 = arith.constant 0 : index
    %c0_159 = arith.constant 0 : index
    %368 = vector.load %arg9[%c0_158, %c0_159] : memref<16x512xf32, #tpu.memory_space<vmem>>, vector<16x512xf32>
    tpu.vector_store %arg9[%c0_158, %c0_159], %367 {strides = array<i32>} : memref<16x512xf32, #tpu.memory_space<vmem>>, vector<16x512xf32>,
    %c112 = arith.constant 112 : index
    %c0_160 = arith.constant 0 : index
    %369 = vector.load %arg4[%c112, %c0_160] : memref<128x512xi32, #tpu.memory_space<vmem>>, vector<16x512xi32>
    %c15_i32_161 = arith.constant 15 : i32
    %370 = vector.broadcast %c15_i32_161 : i32 to vector<16x512xi32>
    %371 = arith.andi %369, %370 : vector<16x512xi32>
    %c4_i32_162 = arith.constant 4 : i32
    %372 = vector.broadcast %c4_i32_162 : i32 to vector<16x512xi32>
    %373 = arith.shrsi %369, %372 : vector<16x512xi32>
    %c15_i32_163 = arith.constant 15 : i32
    %374 = vector.broadcast %c15_i32_163 : i32 to vector<16x512xi32>
    %375 = arith.andi %373, %374 : vector<16x512xi32>
    %c8_i32_164 = arith.constant 8 : i32
    %376 = vector.broadcast %c8_i32_164 : i32 to vector<16x512xi32>
    %377 = arith.shrsi %369, %376 : vector<16x512xi32>
    %c15_i32_165 = arith.constant 15 : i32
    %378 = vector.broadcast %c15_i32_165 : i32 to vector<16x512xi32>
    %379 = arith.andi %377, %378 : vector<16x512xi32>
    %c12_i32_166 = arith.constant 12 : i32
    %380 = vector.broadcast %c12_i32_166 : i32 to vector<16x512xi32>
    %381 = arith.shrsi %369, %380 : vector<16x512xi32>
    %c15_i32_167 = arith.constant 15 : i32
    %382 = vector.broadcast %c15_i32_167 : i32 to vector<16x512xi32>
    %383 = arith.andi %381, %382 : vector<16x512xi32>
    %c16_i32_168 = arith.constant 16 : i32
    %384 = vector.broadcast %c16_i32_168 : i32 to vector<16x512xi32>
    %385 = arith.shrsi %369, %384 : vector<16x512xi32>
    %c15_i32_169 = arith.constant 15 : i32
    %386 = vector.broadcast %c15_i32_169 : i32 to vector<16x512xi32>
    %387 = arith.andi %385, %386 : vector<16x512xi32>
    %c20_i32_170 = arith.constant 20 : i32
    %388 = vector.broadcast %c20_i32_170 : i32 to vector<16x512xi32>
    %389 = arith.shrsi %369, %388 : vector<16x512xi32>
    %c15_i32_171 = arith.constant 15 : i32
    %390 = vector.broadcast %c15_i32_171 : i32 to vector<16x512xi32>
    %391 = arith.andi %389, %390 : vector<16x512xi32>
    %c24_i32_172 = arith.constant 24 : i32
    %392 = vector.broadcast %c24_i32_172 : i32 to vector<16x512xi32>
    %393 = arith.shrsi %369, %392 : vector<16x512xi32>
    %c15_i32_173 = arith.constant 15 : i32
    %394 = vector.broadcast %c15_i32_173 : i32 to vector<16x512xi32>
    %395 = arith.andi %393, %394 : vector<16x512xi32>
    %c28_i32_174 = arith.constant 28 : i32
    %396 = vector.broadcast %c28_i32_174 : i32 to vector<16x512xi32>
    %397 = arith.shrsi %369, %396 : vector<16x512xi32>
    %c15_i32_175 = arith.constant 15 : i32
    %398 = vector.broadcast %c15_i32_175 : i32 to vector<16x512xi32>
    %399 = arith.andi %397, %398 : vector<16x512xi32>
    %400 = tpu.concatenate %371, %375, %379, %383, %387, %391, %395, %399 in 0 : vector<16x512xi32>, vector<16x512xi32>, vector<16x512xi32>, vector<16x512xi32>, vector<16x512xi32>, vector<16x512xi32>, vector<16x512xi32>, vector<16x512xi32> -> vector<128x512xi32>
    %401 = arith.sitofp %400 : vector<128x512xi32> to vector<128x512xf32>
    %402 = arith.truncf %401 : vector<128x512xf32> to vector<128x512xbf16>
    %c0_176 = arith.constant 0 : index
    %c896 = arith.constant 896 : index
    %403 = vector.load %arg3[%c0_176, %c896] : memref<16x1024xbf16, #tpu.memory_space<vmem>>, vector<16x128xbf16>
    %cst_177 = arith.constant dense<0.000000e+00> : vector<16x512xf32>
    %404 = tpu.matmul %403, %402, %cst_177 {dimension_numbers = #tpu.dot_dimension_numbers<[1], [0], [0], [1], [0, 0, 1, 1], [], []>} : vector<16x128xbf16>, vector<128x512xbf16>, vector<16x512xf32> -> vector<16x512xf32>
    %405 = arith.extf %403 : vector<16x128xbf16> to vector<16x128xf32>
    %cst_178 = arith.constant dense<0.000000e+00> : vector<16xf32>
    %406 = vector.multi_reduction <add>, %405, %cst_178 [1] : vector<16x128xf32> to vector<16xf32>
    %407 = vector.shape_cast %406 : vector<16xf32> to vector<16x1xf32>
    %408 = vector.extract_strided_slice %3 {offsets = [0, 7, 0], sizes = [1, 1, 512], strides = [1, 1, 1]} : vector<1x8x512xf32> to vector<1x1x512xf32>
    %409 = vector.shape_cast %408 : vector<1x1x512xf32> to vector<1x512xf32>
    %410 = vector.extract_strided_slice %4 {offsets = [0, 7, 0], sizes = [1, 1, 512], strides = [1, 1, 1]} : vector<1x8x512xf32> to vector<1x1x512xf32>
    %411 = vector.shape_cast %410 : vector<1x1x512xf32> to vector<1x512xf32>
    %c0_179 = arith.constant 0 : index
    %c0_180 = arith.constant 0 : index
    %412 = vector.load %arg9[%c0_179, %c0_180] : memref<16x512xf32, #tpu.memory_space<vmem>>, vector<16x512xf32>
    %413 = vector.broadcast %409 : vector<1x512xf32> to vector<16x512xf32>
    %414 = arith.mulf %413, %404 : vector<16x512xf32>
    %415 = vector.broadcast %411 : vector<1x512xf32> to vector<16x512xf32>
    %416 = vector.broadcast %407 : vector<16x1xf32> to vector<16x512xf32>
    %417 = arith.mulf %415, %416 : vector<16x512xf32>
    %418 = arith.subf %414, %417 : vector<16x512xf32>
    %419 = arith.addf %412, %418 : vector<16x512xf32>
    %c0_181 = arith.constant 0 : index
    %c0_182 = arith.constant 0 : index
    %420 = vector.load %arg9[%c0_181, %c0_182] : memref<16x512xf32, #tpu.memory_space<vmem>>, vector<16x512xf32>
    tpu.vector_store %arg9[%c0_181, %c0_182], %419 {strides = array<i32>} : memref<16x512xf32, #tpu.memory_space<vmem>>, vector<16x512xf32>,
    %c1_i32 = arith.constant 1 : i32
    %421 = arith.cmpi eq, %arg2, %c1_i32 : i32
    %422 = arith.extui %421 : i1 to i32
    %c0_i32_183 = arith.constant 0 : i32
    %423 = arith.cmpi ne, %422, %c0_i32_183 : i32
    scf.if %423 {
      %c0_184 = arith.constant 0 : index
      %c0_185 = arith.constant 0 : index
      %424 = vector.load %arg9[%c0_184, %c0_185] : memref<16x512xf32, #tpu.memory_space<vmem>>, vector<16x512xf32>
      %c0_186 = arith.constant 0 : index
      %c0_187 = arith.constant 0 : index
      %425 = vector.load %arg7[%c0_186, %c0_187] : memref<1x512xf32, #tpu.memory_space<vmem>>, vector<1x512xf32>
      %426 = vector.broadcast %425 : vector<1x512xf32> to vector<16x512xf32>
      %427 = arith.addf %424, %426 : vector<16x512xf32>
      %c0_188 = arith.constant 0 : index
      %c0_189 = arith.constant 0 : index
      %428 = vector.load %arg8[%c0_188, %c0_189] : memref<16x512xf32, #tpu.memory_space<vmem>>, vector<16x512xf32>
      tpu.vector_store %arg8[%c0_188, %c0_189], %427 {strides = array<i32>} : memref<16x512xf32, #tpu.memory_space<vmem>>, vector<16x512xf32>,
    } else {
    }
    return
  }
  func.func @transform_0(%arg0: i32, %arg1: i32, %arg2: i32) -> (i32, i32) {
    %c0_i32 = arith.constant 0 : i32
    return %arg0, %arg2 : i32, i32
  }
  func.func @transform_1(%arg0: i32, %arg1: i32, %arg2: i32) -> (i32, i32) {
    %c0_i32 = arith.constant 0 : i32
    return %arg2, %arg1 : i32, i32
  }
  func.func @transform_2(%arg0: i32, %arg1: i32, %arg2: i32) -> (i32, i32, i32) {
    %c0_i32 = arith.constant 0 : i32
    %c0_i32_0 = arith.constant 0 : i32
    return %arg2, %c0_i32, %arg1 : i32, i32, i32
  }
  func.func @transform_3(%arg0: i32, %arg1: i32, %arg2: i32) -> (i32, i32, i32) {
    %c0_i32 = arith.constant 0 : i32
    %c0_i32_0 = arith.constant 0 : i32
    return %arg2, %c0_i32, %arg1 : i32, i32, i32
  }
  func.func @transform_4(%arg0: i32, %arg1: i32, %arg2: i32) -> (i32, i32) {
    %c0_i32 = arith.constant 0 : i32
    %c0_i32_0 = arith.constant 0 : i32
    return %c0_i32, %arg1 : i32, i32
  }
  func.func @transform_5(%arg0: i32, %arg1: i32, %arg2: i32) -> (i32, i32) {
    %c0_i32 = arith.constant 0 : i32
    return %arg0, %arg1 : i32, i32
  }
}

</mosaic_0001>

<llo_original>
// kernel: _int4_forward.1
$region0: #{_int4_forward.1}
  #allocation0 [shape = 'u32[]', space=smem, size = 0x4, offset = 0x4, fixed_abs, tag = 'smem constant byte address 0x4 - core index']
  #allocation1 [shape = 'u32[144,128]{1,0:T(1,128)}', space=vmem, size = 0x12000, scoped, tag = 'internal scratch']
  #allocation2 [shape = 'f32[16,512]{1,0:T(8,128)}', space=vmem, size = 0x8000, scoped, tag = 'scratch operand']
  %s0 = inlined_call_operand.vmem [shape: bf16[16,2048], index: 0, kind: input, shape index: {}]
  %s1 = inlined_call_operand.hbm [shape: s32[256,1024], index: 1, kind: input, shape index: {}]
  %s2 = inlined_call_operand.vmem [shape: f32[2,8,1024], index: 2, kind: input, shape index: {}]
  %s3 = inlined_call_operand.vmem [shape: f32[2,8,1024], index: 3, kind: input, shape index: {}]
  %s4 = inlined_call_operand.vmem [shape: f32[1,1024], index: 4, kind: input, shape index: {}]
  %s5 = inlined_call_operand.hbm [shape: f32[16,1024], index: 5, kind: output, shape index: {}]
  %s6 = sld [smem:[#allocation0]]
  $region88: #{_int4_forward.1} parent=0
    _
  %s8 = ssub.s32 1, %s6
  %s9 = scalar_select 0, %s8, %s6
  $region1: #{_int4_forward.1} parent=0
    #allocation3 [shape = 'u8[65536]{0}', space=vmem, size = 0x10000, scoped, tag = 'input window, operand 0']
    #allocation4 [shape = 'u8[524288]{0}', space=vmem, size = 0x80000, scoped, tag = 'input window, operand 1']
    #allocation5 [shape = 's32[2]{0}', space=sflag, size = 0x8, scoped, tag = 'scoped memory for _int4_forward.1']
    #allocation6 [shape = 's32[2]{0}', space=sflag, size = 0x8, scoped, tag = 'scoped memory for _int4_forward.1']
    #allocation7 [shape = 'u8[65536]{0}', space=vmem, size = 0x10000, scoped, tag = 'output window, operand 0']
    %10 = vsyncpa [#allocation5], 0
    %s11 = scalar_lea.sflag [#allocation5], 1
    %12 = vsyncpa %s11, 0
    %13 = vsyncpa [#allocation6], 0
    %s14 = scalar_lea.sflag [#allocation6], 1
    %15 = vsyncpa %s14, 0
    loop: start=0, step=1, limit=6
    $region2: #{_int4_forward.1} parent=1 // loop_pre_header
      _
    $region3: #{_int4_forward.1} parent=1 // loop_header
      %s17 = sphi 0, %s21
      %p18 = scmp.ge.s32.totalorder %s17, 6
      %s24 = sphi 0, %s43
      %s25 = sphi 0, %s39
      %s26 = sphi 0, %s35
      %s27 = sphi 0, %s24
      %s28 = sphi 0, %s25
      %s29 = sphi 0, %s26
      %s30 = sphi 0, %s27
      %s31 = sphi 0, %s28
      %s32 = sphi 0, %s29
      %s48 = sphi 0, %s50
      %s51 = sphi 0, %s48
      %s52 = sphi 0, %s51
      %s68 = sphi 0, %s52
      %s76 = sphi 0, %s78
      %s79 = sphi 0, %s76
      %s80 = sphi 0, %s79
      %s96 = sphi 0, %s80
      %s104 = sphi 0, %s106
      %s107 = sphi 0, %s104
      %s108 = sphi 0, %s107
      %s124 = sphi 0, %s108
      %s132 = sphi 0, %s134
      %s135 = sphi 0, %s132
      %s136 = sphi 0, %s135
      %s152 = sphi 0, %s136
      %s158 = sphi 0, %s160
      %s161 = sphi 0, %s158
      %s162 = sphi 0, %s161
      %s178 = sphi 0, %s162
      %s186 = sphi 0, %s188
      %s189 = sphi 0, %s186
      %s190 = sphi 0, %s189
      %s206 = sphi 0, %s190
    $region4: #{_int4_forward.1} parent=1 // loop_header_branch
      %20 = sbr.rel (%p18) target = $region8
    $region5: #{_int4_forward.1} parent=1 // loop_body
      %s22 = ssub.s32 %s17, 1
      %s23 = ssub.s32 %s17, 2
      %s33 = sadd.s32 1, %s26
      %p34 = scmp.ge.s32.totalorder %s33, 2
      %s35 = scalar_select %p34, 0, %s33
      %s36 = sadd.s32 1, %s25
      %s37 = scalar_select %p34, %s36, %s25
      %p38 = scmp.ge.s32.totalorder %s37, 2
      %s39 = scalar_select %p38, 0, %s37
      %s40 = sadd.s32 1, %s24
      %s41 = scalar_select %p38, %s40, %s24
      %p42 = scmp.ge.s32.totalorder %s41, 1
      %s43 = scalar_select %p42, 0, %s41
      %s44 = ssub.s32 %s24, %s43
      %s45 = ssub.s32 %s26, %s35
      %s46 = sor.u32 %s44, %s45
      %p47 = scmp.eq.s32.totalorder %s46, 0
      %s49 = sadd.s32 %s48, 1
      %s50 = scalar_select %p47, %s48, %s49
      %p53 = pneg %p47
      %p54 = scmp.eq.s32.totalorder %s17, 3
      %p55 = por %p53, %p54
      %p56 = scmp.ne.s32.totalorder %s48, %s51
      %p57 = scmp.eq.s32.totalorder %s17, 0
      %p58 = por %p56, %p57
      %p59 = scmp.ne.s32.totalorder %s48, %s51
      %p60 = scmp.eq.s32.totalorder %s22, 3
      %p61 = por %p59, %p60
      %p62 = scmp.ne.s32.totalorder %s51, %s52
      %p63 = scmp.eq.s32.totalorder %s22, 0
      %p64 = por %p62, %p63
      %p65 = scmp.ne.s32.totalorder %s51, %s52
      %p66 = scmp.eq.s32.totalorder %s23, 3
      %p67 = por %p65, %p66
      %p69 = scmp.ne.s32.totalorder %s52, %s68
      %p70 = scmp.eq.s32.totalorder %s23, 0
      %p71 = por %p69, %p70
      %s72 = ssub.s32 %s26, %s35
      %s73 = ssub.s32 %s25, %s39
      %s74 = sor.u32 %s72, %s73
      %p75 = scmp.eq.s32.totalorder %s74, 0
      %s77 = sadd.s32 %s76, 1
      %s78 = scalar_select %p75, %s76, %s77
      %p81 = pneg %p75
      %p82 = scmp.eq.s32.totalorder %s17, 3
      %p83 = por %p81, %p82
      %p84 = scmp.ne.s32.totalorder %s76, %s79
      %p85 = scmp.eq.s32.totalorder %s17, 0
      %p86 = por %p84, %p85
      %p87 = scmp.ne.s32.totalorder %s76, %s79
      %p88 = scmp.eq.s32.totalorder %s22, 3
      %p89 = por %p87, %p88
      %p90 = scmp.ne.s32.totalorder %s79, %s80
      %p91 = scmp.eq.s32.totalorder %s22, 0
      %p92 = por %p90, %p91
      %p93 = scmp.ne.s32.totalorder %s79, %s80
      %p94 = scmp.eq.s32.totalorder %s23, 3
      %p95 = por %p93, %p94
      %p97 = scmp.ne.s32.totalorder %s80, %s96
      %p98 = scmp.eq.s32.totalorder %s23, 0
      %p99 = por %p97, %p98
      %s100 = ssub.s32 %s26, %s35
      %s101 = ssub.s32 %s25, %s39
      %s102 = sor.u32 %s100, %s101
      %p103 = scmp.eq.s32.totalorder %s102, 0
      %s105 = sadd.s32 %s104, 1
      %s106 = scalar_select %p103, %s104, %s105
      %p109 = pneg %p103
      %p110 = scmp.eq.s32.totalorder %s17, 3
      %p111 = por %p109, %p110
      %p112 = scmp.ne.s32.totalorder %s104, %s107
      %p113 = scmp.eq.s32.totalorder %s17, 0
      %p114 = por %p112, %p113
      %p115 = scmp.ne.s32.totalorder %s104, %s107
      %p116 = scmp.eq.s32.totalorder %s22, 3
      %p117 = por %p115, %p116
      %p118 = scmp.ne.s32.totalorder %s107, %s108
      %p119 = scmp.eq.s32.totalorder %s22, 0
      %p120 = por %p118, %p119
      %p121 = scmp.ne.s32.totalorder %s107, %s108
      %p122 = scmp.eq.s32.totalorder %s23, 3
      %p123 = por %p121, %p122
      %p125 = scmp.ne.s32.totalorder %s108, %s124
      %p126 = scmp.eq.s32.totalorder %s23, 0
      %p127 = por %p125, %p126
      %s128 = ssub.s32 %s26, %s35
      %s129 = ssub.s32 %s25, %s39
      %s130 = sor.u32 %s128, %s129
      %p131 = scmp.eq.s32.totalorder %s130, 0
      %s133 = sadd.s32 %s132, 1
      %s134 = scalar_select %p131, %s132, %s133
      %p137 = pneg %p131
      %p138 = scmp.eq.s32.totalorder %s17, 3
      %p139 = por %p137, %p138
      %p140 = scmp.ne.s32.totalorder %s132, %s135
      %p141 = scmp.eq.s32.totalorder %s17, 0
      %p142 = por %p140, %p141
      %p143 = scmp.ne.s32.totalorder %s132, %s135
      %p144 = scmp.eq.s32.totalorder %s22, 3
      %p145 = por %p143, %p144
      %p146 = scmp.ne.s32.totalorder %s135, %s136
      %p147 = scmp.eq.s32.totalorder %s22, 0
      %p148 = por %p146, %p147
      %p149 = scmp.ne.s32.totalorder %s135, %s136
      %p150 = scmp.eq.s32.totalorder %s23, 3
      %p151 = por %p149, %p150
      %p153 = scmp.ne.s32.totalorder %s136, %s152
      %p154 = scmp.eq.s32.totalorder %s23, 0
      %p155 = por %p153, %p154
      %s156 = ssub.s32 %s25, %s39
      %p157 = scmp.eq.s32.totalorder %s156, 0
      %s159 = sadd.s32 %s158, 1
      %s160 = scalar_select %p157, %s158, %s159
      %p163 = pneg %p157
      %p164 = scmp.eq.s32.totalorder %s17, 3
      %p165 = por %p163, %p164
      %p166 = scmp.ne.s32.totalorder %s158, %s161
      %p167 = scmp.eq.s32.totalorder %s17, 0
      %p168 = por %p166, %p167
      %p169 = scmp.ne.s32.totalorder %s158, %s161
      %p170 = scmp.eq.s32.totalorder %s22, 3
      %p171 = por %p169, %p170
      %p172 = scmp.ne.s32.totalorder %s161, %s162
      %p173 = scmp.eq.s32.totalorder %s22, 0
      %p174 = por %p172, %p173
      %p175 = scmp.ne.s32.totalorder %s161, %s162
      %p176 = scmp.eq.s32.totalorder %s23, 3
      %p177 = por %p175, %p176
      %p179 = scmp.ne.s32.totalorder %s162, %s178
      %p180 = scmp.eq.s32.totalorder %s23, 0
      %p181 = por %p179, %p180
      %s182 = ssub.s32 %s24, %s43
      %s183 = ssub.s32 %s25, %s39
      %s184 = sor.u32 %s182, %s183
      %p185 = scmp.eq.s32.totalorder %s184, 0
      %s187 = sadd.s32 %s186, 1
      %s188 = scalar_select %p185, %s186, %s187
      %p191 = pneg %p185
      %p192 = scmp.eq.s32.totalorder %s17, 3
      %p193 = por %p191, %p192
      %p194 = scmp.ne.s32.totalorder %s186, %s189
      %p195 = scmp.eq.s32.totalorder %s17, 0
      %p196 = por %p194, %p195
      %p197 = scmp.ne.s32.totalorder %s186, %s189
      %p198 = scmp.eq.s32.totalorder %s22, 3
      %p199 = por %p197, %p198
      %p200 = scmp.ne.s32.totalorder %s189, %s190
      %p201 = scmp.eq.s32.totalorder %s22, 0
      %p202 = por %p200, %p201
      %p203 = scmp.ne.s32.totalorder %s189, %s190
      %p204 = scmp.eq.s32.totalorder %s23, 3
      %p205 = por %p203, %p204
      %p207 = scmp.ne.s32.totalorder %s190, %s206
      %p208 = scmp.eq.s32.totalorder %s23, 0
      %p209 = por %p207, %p208
      %p210 = scmp.le.s32.totalorder 1, %s17
      %p211 = scmp.lt.s32.totalorder %s17, 5
      %p212 = pnand %p210, %p211
      %p213 = pneg %p212
      // Predicated region
      $region9: #{_int4_forward.1} parent=5 // pred_check
        _
      $region10: #{_int4_forward.1} parent=5 // pred_check_branch
        %215 = sbr.rel (%p212) target = $region12
      $region11: #{_int4_forward.1} parent=5 // pred_region
        %s216 = ssub.s32 %s17, 1
      $region12: #{_int4_forward.1} parent=5 // pred_fallthru
        _
      %p217 = scmp.lt.s32.totalorder %s17, 4
      // Predicated region
      $region13: #{_int4_forward.1} parent=5 // pred_check
        %p218 = pneg %p217
      $region14: #{_int4_forward.1} parent=5 // pred_check_branch
        %220 = sbr.rel (%p218) target = $region16
      $region15: #{_int4_forward.1} parent=5 // pred_region
        // Predicated region
        $region17: #{_int4_forward.1} parent=15 // pred_check
          %p221 = pneg %p58
        $region18: #{_int4_forward.1} parent=15 // pred_check_branch
          %223 = sbr.rel (%p221) target = $region20
        $region19: #{_int4_forward.1} parent=15 // pred_region
          %s224 = sand.u32 %s48, 1
          %s225 = sand.u32 %s48, 1
          %s226 = smul.addr %s225, 64
          %s227 = scalar_lea.vmem [#allocation3], %s226
          %s228 = smul.u32 2, %s24
          %s229 = smul.u32 8, %s26
          %s230 = smul.addr %s228, 16
          %s231 = sadd.s32 %s229, %s230
          %s232 = smul.addr %s231, 4
          %s233 = scalar_lea.vmem %s0, %s232
          // Predicated region
          $region21: #{_int4_forward.1} parent=19 // pred_check
            _
          $region22: #{_int4_forward.1} parent=19 // pred_check_branch
            %235 = sbr.rel (0) target = $region24
          $region23: #{_int4_forward.1} parent=19 // pred_region
            // Predicated region
            $region25: #{_int4_forward.1} parent=23 // pred_check
              _
            $region26: #{_int4_forward.1} parent=23 // pred_check_branch
              %237 = sbr.rel (0) target = $region28
            $region27: #{_int4_forward.1} parent=23 // pred_region
              loop: start=0, step=1, limit=1
              $region29: #{_int4_forward.1} parent=27 // loop_pre_header
                _
              $region30: #{_int4_forward.1} parent=27 // loop_header
                %s239 = sphi 0, %s243
                %p240 = scmp.ge.s32.totalorder %s239, 1
                %s244 = sphi %s233, %s233
                %s245 = sphi %s227, %s227
              $region31: #{_int4_forward.1} parent=27 // loop_header_branch
                %242 = sbr.rel (%p240) target = $region35
              $region32: #{_int4_forward.1} parent=27 // loop_body
                %v246 = vld [vmem:[%s244] sm:$0xff]
                %247 = vst [vmem:[%s245] sm:$0xff] %v246
                %v248 = vld [vmem:[%s244 + $0x8] sm:$0xff]
                %249 = vst [vmem:[%s245 + $0x8] sm:$0xff] %v248
                %v250 = vld [vmem:[%s244 + $0x10] sm:$0xff]
                %251 = vst [vmem:[%s245 + $0x10] sm:$0xff] %v250
                %v252 = vld [vmem:[%s244 + $0x18] sm:$0xff]
                %253 = vst [vmem:[%s245 + $0x18] sm:$0xff] %v252
                %v254 = vld [vmem:[%s244 + $0x40] sm:$0xff]
                %255 = vst [vmem:[%s245 + $0x20] sm:$0xff] %v254
                %v256 = vld [vmem:[%s244 + $0x48] sm:$0xff]
                %257 = vst [vmem:[%s245 + $0x28] sm:$0xff] %v256
                %v258 = vld [vmem:[%s244 + $0x50] sm:$0xff]
                %259 = vst [vmem:[%s245 + $0x30] sm:$0xff] %v258
                %v260 = vld [vmem:[%s244 + $0x58] sm:$0xff]
                %261 = vst [vmem:[%s245 + $0x38] sm:$0xff] %v260
              $region33: #{_int4_forward.1} parent=27 // loop_footer
                %s243 = sadd.s32 1, %s239
              $region34: #{_int4_forward.1} parent=27 // loop_footer_branch
                %238 = sbr.rel target = $region30
              $region35: #{_int4_forward.1} parent=27 // loop_exit
                _
            $region28: #{_int4_forward.1} parent=23 // pred_fallthru
              _
            // Predicated region
            $region36: #{_int4_forward.1} parent=23 // pred_check
              _
            $region37: #{_int4_forward.1} parent=23 // pred_check_branch
              %263 = sbr.rel target = $region39
            $region38: #{_int4_forward.1} parent=23 // pred_region
              _
            $region39: #{_int4_forward.1} parent=23 // pred_fallthru
              _
          $region24: #{_int4_forward.1} parent=19 // pred_fallthru
            _
          %264 = vnop
        $region20: #{_int4_forward.1} parent=15 // pred_fallthru
          _
        // Predicated region
        $region40: #{_int4_forward.1} parent=15 // pred_check
          %p265 = pneg %p86
        $region41: #{_int4_forward.1} parent=15 // pred_check_branch
          %267 = sbr.rel (%p265) target = $region43
        $region42: #{_int4_forward.1} parent=15 // pred_region
          %s268 = sand.u32 %s76, 1
          %s269 = scalar_lea.sflag [#allocation5], %s268
          %s270 = sand.u32 %s76, 1
          %s271 = smul.addr %s270, 512
          %s272 = scalar_lea.vmem [#allocation4], %s271
          %s273 = smul.u32 16, %s26
          %s274 = smul.u32 4, %s25
          %s276 = ssub.s32 8192, 8192
          %277 = vsyncadd %s269, %s276
          %s278 = smul.addr %s273, 8
          %s279 = sadd.s32 %s274, %s278
          %s280 = smul.addr %s279, 128
          %s281 = scalar_lea.hbm %s1, %s280
          %s282 = sshll.u32 %s272, 4
          %s283 = int_to_ptr.vmem [resolvable:$true] %s282
          %288 = dma.hbm_to_vmem [thread:$0]  %s281, 8192, %s283, %s269, 1024, 512, 32
        $region43: #{_int4_forward.1} parent=15 // pred_fallthru
          _
        // Predicated region
        $region44: #{_int4_forward.1} parent=15 // pred_check
          %p289 = pneg %p114
        $region45: #{_int4_forward.1} parent=15 // pred_check_branch
          %291 = sbr.rel (%p289) target = $region47
        $region46: #{_int4_forward.1} parent=15 // pred_region
          %s292 = smul.u32 4, %s25
          %p293 = scmp.lt.s32.totalorder %s26, 1
          %s294 = scalar_select %p293, %s26, 1
          %p295 = scmp.lt.s32.totalorder %s292, 7
          %s296 = scalar_select %p295, %s292, 7
          %s297 = smul.addr %s294, 8
          %s298 = sadd.s32 %s296, %s297
          %s299 = smul.addr %s298, 8
          %s300 = scalar_lea.vmem %s2, %s299
          %s301 = smul.u32 4, %s25
        $region47: #{_int4_forward.1} parent=15 // pred_fallthru
          _
        // Predicated region
        $region48: #{_int4_forward.1} parent=15 // pred_check
          %p302 = pneg %p142
        $region49: #{_int4_forward.1} parent=15 // pred_check_branch
          %304 = sbr.rel (%p302) target = $region51
        $region50: #{_int4_forward.1} parent=15 // pred_region
          %s305 = smul.u32 4, %s25
          %p306 = scmp.lt.s32.totalorder %s26, 1
          %s307 = scalar_select %p306, %s26, 1
          %p308 = scmp.lt.s32.totalorder %s305, 7
          %s309 = scalar_select %p308, %s305, 7
          %s310 = smul.addr %s307, 8
          %s311 = sadd.s32 %s309, %s310
          %s312 = smul.addr %s311, 8
          %s313 = scalar_lea.vmem %s3, %s312
          %s314 = smul.u32 4, %s25
        $region51: #{_int4_forward.1} parent=15 // pred_fallthru
          _
        // Predicated region
        $region52: #{_int4_forward.1} parent=15 // pred_check
          %p315 = pneg %p168
        $region53: #{_int4_forward.1} parent=15 // pred_check_branch
          %317 = sbr.rel (%p315) target = $region55
        $region54: #{_int4_forward.1} parent=15 // pred_region
          %s318 = smul.u32 4, %s25
          %p319 = scmp.lt.s32.totalorder %s318, 7
          %s320 = scalar_select %p319, %s318, 7
          %s321 = scalar_lea.vmem %s4, %s320
          %s322 = smul.u32 4, %s25
        $region55: #{_int4_forward.1} parent=15 // pred_fallthru
          _
      $region16: #{_int4_forward.1} parent=5 // pred_fallthru
        _
      %p323 = scmp.le.s32.totalorder 1, %s17
      %p324 = scmp.lt.s32.totalorder %s17, 5
      %p325 = pnand %p323, %p324
      %p326 = pneg %p325
      // Predicated region
      $region56: #{_int4_forward.1} parent=5 // pred_check
        _
      $region57: #{_int4_forward.1} parent=5 // pred_check_branch
        %328 = sbr.rel (%p325) target = $region59
      $region58: #{_int4_forward.1} parent=5 // pred_region
        %s329 = ssub.s32 %s17, 1
        %s330 = sand.u32 %s51, 1
        %s331 = sand.u32 %s51, 1
        %s332 = smul.addr %s331, 64
        %s333 = scalar_lea.vmem [#allocation3], %s332
        // Predicated region
        $region60: #{_int4_forward.1} parent=58 // pred_check
          %p334 = pneg %p64
        $region61: #{_int4_forward.1} parent=58 // pred_check_branch
          %336 = sbr.rel (%p334) target = $region63
        $region62: #{_int4_forward.1} parent=58 // pred_region
          _
        $region63: #{_int4_forward.1} parent=58 // pred_fallthru
          _
        %s337 = sand.u32 %s79, 1
        %s338 = scalar_lea.sflag [#allocation5], %s337
        %s339 = sand.u32 %s79, 1
        %s340 = smul.addr %s339, 512
        %s341 = scalar_lea.vmem [#allocation4], %s340
        // Predicated region
        $region64: #{_int4_forward.1} parent=58 // pred_check
          %p342 = pneg %p92
        $region65: #{_int4_forward.1} parent=58 // pred_check_branch
          %344 = sbr.rel (%p342) target = $region67
        $region66: #{_int4_forward.1} parent=58 // pred_region
          %345 = dma.done %s338, 8192
        $region67: #{_int4_forward.1} parent=58 // pred_fallthru
          _
        %s346 = sand.u32 %s51, 1
        %s347 = sand.u32 %s51, 1
        %s348 = smul.addr %s347, 64
        %s349 = scalar_lea.vmem [#allocation3], %s348
        %p350 = pneg %p64
        %p351 = pneg %p61
        %s352 = sand.u32 %s79, 1
        %s353 = scalar_lea.sflag [#allocation5], %s352
        %s354 = sand.u32 %s79, 1
        %s355 = smul.addr %s354, 512
        %s356 = scalar_lea.vmem [#allocation4], %s355
        %p357 = pneg %p92
        %p358 = pneg %p89
        %s359 = smul.u32 4, %s28
        %p360 = scmp.lt.s32.totalorder %s29, 1
        %s361 = scalar_select %p360, %s29, 1
        %p362 = scmp.lt.s32.totalorder %s359, 7
        %s363 = scalar_select %p362, %s359, 7
        %s364 = smul.addr %s361, 8
        %s365 = sadd.s32 %s363, %s364
        %s366 = smul.addr %s365, 8
        %s367 = scalar_lea.vmem %s2, %s366
        %p368 = pneg %p120
        %p369 = pneg %p117
        %s370 = smul.u32 4, %s28
        %p371 = scmp.lt.s32.totalorder %s29, 1
        %s372 = scalar_select %p371, %s29, 1
        %p373 = scmp.lt.s32.totalorder %s370, 7
        %s374 = scalar_select %p373, %s370, 7
        %s375 = smul.addr %s372, 8
        %s376 = sadd.s32 %s374, %s375
        %s377 = smul.addr %s376, 8
        %s378 = scalar_lea.vmem %s3, %s377
        %p379 = pneg %p148
        %p380 = pneg %p145
        %s381 = smul.u32 4, %s28
        %p382 = scmp.lt.s32.totalorder %s381, 7
        %s383 = scalar_select %p382, %s381, 7
        %s384 = scalar_lea.vmem %s4, %s383
        %p385 = pneg %p174
        %p386 = pneg %p171
        %p387 = pneg %p202
        %p388 = pneg %p199
        %s389 = sand.u32 %s189, 1
        %s390 = scalar_lea.sflag [#allocation6], %s389
        %s391 = sand.u32 %s189, 1
        %s392 = smul.addr %s391, 64
        %s393 = scalar_lea.vmem [#allocation7], %s392
        %s394 = smul.u32 2, %s27
        %s395 = smul.u32 8, %s29
        %s396 = smul.u32 16, %s29
        %s397 = smul.u32 4, %s28
        %s398 = smul.u32 4, %s28
        %p399 = scmp.lt.s32.totalorder %s29, 1
        %s400 = scalar_select %p399, %s29, 1
        %p401 = scmp.lt.s32.totalorder %s398, 7
        %s402 = scalar_select %p401, %s398, 7
        %s403 = smul.addr %s400, 8
        %s404 = sadd.s32 %s402, %s403
        %s405 = smul.addr %s404, 8
        %s406 = scalar_lea.vmem %s2, %s405
        %s407 = smul.u32 4, %s28
        %s408 = smul.u32 4, %s28
        %p409 = scmp.lt.s32.totalorder %s29, 1
        %s410 = scalar_select %p409, %s29, 1
        %p411 = scmp.lt.s32.totalorder %s408, 7
        %s412 = scalar_select %p411, %s408, 7
        %s413 = smul.addr %s410, 8
        %s414 = sadd.s32 %s412, %s413
        %s415 = smul.addr %s414, 8
        %s416 = scalar_lea.vmem %s3, %s415
        %s417 = smul.u32 4, %s28
        %s418 = smul.u32 4, %s28
        %p419 = scmp.lt.s32.totalorder %s418, 7
        %s420 = scalar_select %p419, %s418, 7
        %s421 = scalar_lea.vmem %s4, %s420
        %s422 = smul.u32 4, %s28
        %s423 = smul.u32 2, %s27
        %s424 = smul.u32 4, %s28
        %p426 = scmp.eq.s32.totalorder %s29, 0
        // Predicated region
        $region68: #{_int4_forward.1} parent=58 // pred_check
          %p427 = pneg %p426
        $region69: #{_int4_forward.1} parent=58 // pred_check_branch
          %429 = sbr.rel (%p427) target = $region71
        $region70: #{_int4_forward.1} parent=58 // pred_region
          %430 = vst [vmem:[#allocation2] sm:$0xff] 0.0
          %431 = vst [vmem:[#allocation2 + $0x8] sm:$0xff] 0.0
          %432 = vst [vmem:[#allocation2 + $0x10] sm:$0xff] 0.0
          %433 = vst [vmem:[#allocation2 + $0x18] sm:$0xff] 0.0
          %434 = vst [vmem:[#allocation2 + $0x20] sm:$0xff] 0.0
          %435 = vst [vmem:[#allocation2 + $0x28] sm:$0xff] 0.0
          %436 = vst [vmem:[#allocation2 + $0x30] sm:$0xff] 0.0
          %437 = vst [vmem:[#allocation2 + $0x38] sm:$0xff] 0.0
        $region71: #{_int4_forward.1} parent=58 // pred_fallthru
          _
        %v438 = vld [vmem:[%s406] sm:$0xff]
        %v439 = vld [vmem:[%s406 + $0x8] sm:$0xff]
        %v440 = vld [vmem:[%s406 + $0x10] sm:$0xff]
        %v441 = vld [vmem:[%s406 + $0x18] sm:$0xff]
        %v442 = vld [vmem:[%s416] sm:$0xff]
        %v443 = vld [vmem:[%s416 + $0x8] sm:$0xff]
        %v444 = vld [vmem:[%s416 + $0x10] sm:$0xff]
        %v445 = vld [vmem:[%s416 + $0x18] sm:$0xff]
        %v446 = vld [vmem:[%s341] sm:$0xff]
        %v447 = vld [vmem:[%s341 + $0x8] sm:$0xff]
        %v448 = vld [vmem:[%s341 + $0x10] sm:$0xff]
        %v449 = vld [vmem:[%s341 + $0x18] sm:$0xff]
        %v450 = vld [vmem:[%s341 + $0x20] sm:$0xff]
        %v451 = vld [vmem:[%s341 + $0x28] sm:$0xff]
        %v452 = vld [vmem:[%s341 + $0x30] sm:$0xff]
        %v453 = vld [vmem:[%s341 + $0x38] sm:$0xff]
        %v454 = vand.u32 %v446, 15
        %v455 = vand.u32 %v447, 15
        %v456 = vand.u32 %v448, 15
        %v457 = vand.u32 %v449, 15
        %v458 = vand.u32 %v450, 15
        %v459 = vand.u32 %v451, 15
        %v460 = vand.u32 %v452, 15
        %v461 = vand.u32 %v453, 15
        %v462 = vshra.s32 %v446, 4
        %v463 = vshra.s32 %v447, 4
        %v464 = vshra.s32 %v448, 4
        %v465 = vshra.s32 %v449, 4
        %v466 = vshra.s32 %v450, 4
        %v467 = vshra.s32 %v451, 4
        %v468 = vshra.s32 %v452, 4
        %v469 = vshra.s32 %v453, 4
        %v470 = vand.u32 %v462, 15
        %v471 = vand.u32 %v463, 15
        %v472 = vand.u32 %v464, 15
        %v473 = vand.u32 %v465, 15
        %v474 = vand.u32 %v466, 15
        %v475 = vand.u32 %v467, 15
        %v476 = vand.u32 %v468, 15
        %v477 = vand.u32 %v469, 15
        %v478 = vshra.s32 %v446, 8
        %v479 = vshra.s32 %v447, 8
        %v480 = vshra.s32 %v448, 8
        %v481 = vshra.s32 %v449, 8
        %v482 = vshra.s32 %v450, 8
        %v483 = vshra.s32 %v451, 8
        %v484 = vshra.s32 %v452, 8
        %v485 = vshra.s32 %v453, 8
        %v486 = vand.u32 %v478, 15
        %v487 = vand.u32 %v479, 15
        %v488 = vand.u32 %v480, 15
        %v489 = vand.u32 %v481, 15
        %v490 = vand.u32 %v482, 15
        %v491 = vand.u32 %v483, 15
        %v492 = vand.u32 %v484, 15
        %v493 = vand.u32 %v485, 15
        %v494 = vshra.s32 %v446, 12
        %v495 = vshra.s32 %v447, 12
        %v496 = vshra.s32 %v448, 12
        %v497 = vshra.s32 %v449, 12
        %v498 = vshra.s32 %v450, 12
        %v499 = vshra.s32 %v451, 12
        %v500 = vshra.s32 %v452, 12
        %v501 = vshra.s32 %v453, 12
        %v502 = vand.u32 %v494, 15
        %v503 = vand.u32 %v495, 15
        %v504 = vand.u32 %v496, 15
        %v505 = vand.u32 %v497, 15
        %v506 = vand.u32 %v498, 15
        %v507 = vand.u32 %v499, 15
        %v508 = vand.u32 %v500, 15
        %v509 = vand.u32 %v501, 15
        %v510 = vshra.s32 %v446, 16
        %v511 = vshra.s32 %v447, 16
        %v512 = vshra.s32 %v448, 16
        %v513 = vshra.s32 %v449, 16
        %v514 = vshra.s32 %v450, 16
        %v515 = vshra.s32 %v451, 16
        %v516 = vshra.s32 %v452, 16
        %v517 = vshra.s32 %v453, 16
        %v518 = vand.u32 %v510, 15
        %v519 = vand.u32 %v511, 15
        %v520 = vand.u32 %v512, 15
        %v521 = vand.u32 %v513, 15
        %v522 = vand.u32 %v514, 15
        %v523 = vand.u32 %v515, 15
        %v524 = vand.u32 %v516, 15
        %v525 = vand.u32 %v517, 15
        %v526 = vshra.s32 %v446, 20
        %v527 = vshra.s32 %v447, 20
        %v528 = vshra.s32 %v448, 20
        %v529 = vshra.s32 %v449, 20
        %v530 = vshra.s32 %v450, 20
        %v531 = vshra.s32 %v451, 20
        %v532 = vshra.s32 %v452, 20
        %v533 = vshra.s32 %v453, 20
        %v534 = vand.u32 %v526, 15
        %v535 = vand.u32 %v527, 15
        %v536 = vand.u32 %v528, 15
        %v537 = vand.u32 %v529, 15
        %v538 = vand.u32 %v530, 15
        %v539 = vand.u32 %v531, 15
        %v540 = vand.u32 %v532, 15
        %v541 = vand.u32 %v533, 15
        %v542 = vshra.s32 %v446, 24
        %v543 = vshra.s32 %v447, 24
        %v544 = vshra.s32 %v448, 24
        %v545 = vshra.s32 %v449, 24
        %v546 = vshra.s32 %v450, 24
        %v547 = vshra.s32 %v451, 24
        %v548 = vshra.s32 %v452, 24
        %v549 = vshra.s32 %v453, 24
        %v550 = vand.u32 %v542, 15
        %v551 = vand.u32 %v543, 15
        %v552 = vand.u32 %v544, 15
        %v553 = vand.u32 %v545, 15
        %v554 = vand.u32 %v546, 15
        %v555 = vand.u32 %v547, 15
        %v556 = vand.u32 %v548, 15
        %v557 = vand.u32 %v549, 15
        %v558 = vshra.s32 %v446, 28
        %v559 = vshra.s32 %v447, 28
        %v560 = vshra.s32 %v448, 28
        %v561 = vshra.s32 %v449, 28
        %v562 = vshra.s32 %v450, 28
        %v563 = vshra.s32 %v451, 28
        %v564 = vshra.s32 %v452, 28
        %v565 = vshra.s32 %v453, 28
        %v566 = vand.u32 %v558, 15
        %v567 = vand.u32 %v559, 15
        %v568 = vand.u32 %v560, 15
        %v569 = vand.u32 %v561, 15
        %v570 = vand.u32 %v562, 15
        %v571 = vand.u32 %v563, 15
        %v572 = vand.u32 %v564, 15
        %v573 = vand.u32 %v565, 15
        %v574 = vcvt.s32.f32 %v454
        %v575 = vcvt.s32.f32 %v455
        %v576 = vcvt.s32.f32 %v456
        %v577 = vcvt.s32.f32 %v457
        %v578 = vcvt.s32.f32 %v458
        %v579 = vcvt.s32.f32 %v459
        %v580 = vcvt.s32.f32 %v460
        %v581 = vcvt.s32.f32 %v461
        %v582 = vcvt.s32.f32 %v470
        %v583 = vcvt.s32.f32 %v471
        %v584 = vcvt.s32.f32 %v472
        %v585 = vcvt.s32.f32 %v473
        %v586 = vcvt.s32.f32 %v474
        %v587 = vcvt.s32.f32 %v475
        %v588 = vcvt.s32.f32 %v476
        %v589 = vcvt.s32.f32 %v477
        %v590 = vcvt.s32.f32 %v486
        %v591 = vcvt.s32.f32 %v487
        %v592 = vcvt.s32.f32 %v488
        %v593 = vcvt.s32.f32 %v489
        %v594 = vcvt.s32.f32 %v490
        %v595 = vcvt.s32.f32 %v491
        %v596 = vcvt.s32.f32 %v492
        %v597 = vcvt.s32.f32 %v493
        %v598 = vcvt.s32.f32 %v502
        %v599 = vcvt.s32.f32 %v503
        %v600 = vcvt.s32.f32 %v504
        %v601 = vcvt.s32.f32 %v505
        %v602 = vcvt.s32.f32 %v506
        %v603 = vcvt.s32.f32 %v507
        %v604 = vcvt.s32.f32 %v508
        %v605 = vcvt.s32.f32 %v509
        %v606 = vcvt.s32.f32 %v518
        %v607 = vcvt.s32.f32 %v519
        %v608 = vcvt.s32.f32 %v520
        %v609 = vcvt.s32.f32 %v521
        %v610 = vcvt.s32.f32 %v522
        %v611 = vcvt.s32.f32 %v523
        %v612 = vcvt.s32.f32 %v524
        %v613 = vcvt.s32.f32 %v525
        %v614 = vcvt.s32.f32 %v534
        %v615 = vcvt.s32.f32 %v535
        %v616 = vcvt.s32.f32 %v536
        %v617 = vcvt.s32.f32 %v537
        %v618 = vcvt.s32.f32 %v538
        %v619 = vcvt.s32.f32 %v539
        %v620 = vcvt.s32.f32 %v540
        %v621 = vcvt.s32.f32 %v541
        %v622 = vcvt.s32.f32 %v550
        %v623 = vcvt.s32.f32 %v551
        %v624 = vcvt.s32.f32 %v552
        %v625 = vcvt.s32.f32 %v553
        %v626 = vcvt.s32.f32 %v554
        %v627 = vcvt.s32.f32 %v555
        %v628 = vcvt.s32.f32 %v556
        %v629 = vcvt.s32.f32 %v557
        %v630 = vcvt.s32.f32 %v566
        %v631 = vcvt.s32.f32 %v567
        %v632 = vcvt.s32.f32 %v568
        %v633 = vcvt.s32.f32 %v569
        %v634 = vcvt.s32.f32 %v570
        %v635 = vcvt.s32.f32 %v571
        %v636 = vcvt.s32.f32 %v572
        %v637 = vcvt.s32.f32 %v573
        %v638 = vpack.c.bf16 %v578, %v574
        %v639 = vpack.c.bf16 %v579, %v575
        %v640 = vpack.c.bf16 %v580, %v576
        %v641 = vpack.c.bf16 %v581, %v577
        %v642 = vpack.c.bf16 %v586, %v582
        %v643 = vpack.c.bf16 %v587, %v583
        %v644 = vpack.c.bf16 %v588, %v584
        %v645 = vpack.c.bf16 %v589, %v585
        %v646 = vpack.c.bf16 %v594, %v590
        %v647 = vpack.c.bf16 %v595, %v591
        %v648 = vpack.c.bf16 %v596, %v592
        %v649 = vpack.c.bf16 %v597, %v593
        %v650 = vpack.c.bf16 %v602, %v598
        %v651 = vpack.c.bf16 %v603, %v599
        %v652 = vpack.c.bf16 %v604, %v600
        %v653 = vpack.c.bf16 %v605, %v601
        %v654 = vpack.c.bf16 %v610, %v606
        %v655 = vpack.c.bf16 %v611, %v607
        %v656 = vpack.c.bf16 %v612, %v608
        %v657 = vpack.c.bf16 %v613, %v609
        %v658 = vpack.c.bf16 %v618, %v614
        %v659 = vpack.c.bf16 %v619, %v615
        %v660 = vpack.c.bf16 %v620, %v616
        %v661 = vpack.c.bf16 %v621, %v617
        %v662 = vpack.c.bf16 %v626, %v622
        %v663 = vpack.c.bf16 %v627, %v623
        %v664 = vpack.c.bf16 %v628, %v624
        %v665 = vpack.c.bf16 %v629, %v625
        %v666 = vpack.c.bf16 %v634, %v630
        %v667 = vpack.c.bf16 %v635, %v631
        %v668 = vpack.c.bf16 %v636, %v632
        %v669 = vpack.c.bf16 %v637, %v633
        %v670 = vld [vmem:[%s333] sm:$0xf]
        %v671 = vld [vmem:[%s333 + $0x20] sm:$0xf]
        %v674 = vunpack.c.l.b16 %v670
        %v675 = vunpack.c.l.b16 %v671
        %v676 = vpack.c.b16 %v675, %v674
        %678 = vmatprep.subr.bf16.mxu0 %v639
        %679 = vmatpush1.bf16.msra.mxu0 %v638
        %680 = vmatprep.subr.bf16.mxu0 %v643
        %681 = vmatpush1.bf16.msra.mxu0 %v642
        %682 = vmatprep.subr.bf16.mxu0 %v647
        %683 = vmatpush1.bf16.msra.mxu0 %v646
        %684 = vmatprep.subr.bf16.mxu0 %v651
        %685 = vmatpush1.bf16.msra.mxu0 %v650
        %686 = vmatprep.subr.bf16.mxu0 %v655
        %687 = vmatpush1.bf16.msra.mxu0 %v654
        %688 = vmatprep.subr.bf16.mxu0 %v659
        %689 = vmatpush1.bf16.msra.mxu0 %v658
        %690 = vmatprep.subr.bf16.mxu0 %v663
        %691 = vmatpush1.bf16.msra.mxu0 %v662
        %692 = vmatprep.subr.bf16.mxu0 %v667
        %693 = vmatpush1.bf16.msra.mxu0 %v666
        %694 = vmatprep.subr.bf16.mxu0 0
        %695 = vmatpush1.bf16.msra.mxu0 0
        %696 = vmatprep.subr.bf16.mxu0 0
        %697 = vmatpush1.bf16.msra.mxu0 0
        %698 = vmatprep.subr.bf16.mxu0 0
        %699 = vmatpush1.bf16.msra.mxu0 0
        %700 = vmatprep.subr.bf16.mxu0 0
        %701 = vmatpush1.bf16.msra.mxu0 0
        %702 = vmatprep.subr.bf16.mxu0 0
        %703 = vmatpush1.bf16.msra.mxu0 0
        %704 = vmatprep.subr.bf16.mxu0 0
        %705 = vmatpush1.bf16.msra.mxu0 0
        %706 = vmatprep.subr.bf16.mxu0 0
        %707 = vmatpush1.bf16.msra.mxu0 0
        %708 = vmatprep.subr.bf16.mxu0 0
        %709 = vmatpush1.bf16.msra.mxu0 0
        %710 = vmatprep.mubr.bf16.mxu0 0
        %711 = vmatmul.mubr.bf16.gmra.mrb[0].mxu0 %v676
        %v712 = vpop.f32.mrb[0].mxu0
        %v713 = vadd.f32 0.0, %v712
        %v714 = vpop.f32.mrb[0].mxu0
        %v715 = vadd.f32 0.0, %v714
        %v716 = vpop.f32.mrb[0].mxu0
        %v717 = vadd.f32 0.0, %v716
        %v718 = vpop.f32.mrb[0].mxu0
        %v719 = vadd.f32 0.0, %v718
        %720 = vdwg.mxu0
        %721 = vmatprep.subr.bf16.mxu0 %v641
        %722 = vmatpush1.bf16.msra.mxu0 %v640
        %723 = vmatprep.subr.bf16.mxu0 %v645
        %724 = vmatpush1.bf16.msra.mxu0 %v644
        %725 = vmatprep.subr.bf16.mxu0 %v649
        %726 = vmatpush1.bf16.msra.mxu0 %v648
        %727 = vmatprep.subr.bf16.mxu0 %v653
        %728 = vmatpush1.bf16.msra.mxu0 %v652
        %729 = vmatprep.subr.bf16.mxu0 %v657
        %730 = vmatpush1.bf16.msra.mxu0 %v656
        %731 = vmatprep.subr.bf16.mxu0 %v661
        %732 = vmatpush1.bf16.msra.mxu0 %v660
        %733 = vmatprep.subr.bf16.mxu0 %v665
        %734 = vmatpush1.bf16.msra.mxu0 %v664
        %735 = vmatprep.subr.bf16.mxu0 %v669
        %736 = vmatpush1.bf16.msra.mxu0 %v668
        %737 = vmatprep.subr.bf16.mxu0 0
        %738 = vmatpush1.bf16.msra.mxu0 0
        %739 = vmatprep.subr.bf16.mxu0 0
        %740 = vmatpush1.bf16.msra.mxu0 0
        %741 = vmatprep.subr.bf16.mxu0 0
        %742 = vmatpush1.bf16.msra.mxu0 0
        %743 = vmatprep.subr.bf16.mxu0 0
        %744 = vmatpush1.bf16.msra.mxu0 0
        %745 = vmatprep.subr.bf16.mxu0 0
        %746 = vmatpush1.bf16.msra.mxu0 0
        %747 = vmatprep.subr.bf16.mxu0 0
        %748 = vmatpush1.bf16.msra.mxu0 0
        %749 = vmatprep.subr.bf16.mxu0 0
        %750 = vmatpush1.bf16.msra.mxu0 0
        %751 = vmatprep.subr.bf16.mxu0 0
        %752 = vmatpush1.bf16.msra.mxu0 0
        %753 = vmatprep.mubr.bf16.mxu0 0
        %754 = vmatmul.mubr.bf16.gmra.mrb[0].mxu0 %v676
        %v755 = vpop.f32.mrb[0].mxu0
        %v756 = vadd.f32 0.0, %v755
        %v757 = vpop.f32.mrb[0].mxu0
        %v758 = vadd.f32 0.0, %v757
        %v759 = vpop.f32.mrb[0].mxu0
        %v760 = vadd.f32 0.0, %v759
        %v761 = vpop.f32.mrb[0].mxu0
        %v762 = vadd.f32 0.0, %v761
        %763 = vdwg.mxu0
        %v764 = vunpack.c.l.bf16 %v670
        %v765 = vunpack.c.l.bf16 %v671
        %766 = vadd.xlane.f32.xlu0 %v764
        %v767 = vpop.xlane.xlu0 %766
        %768 = vadd.xlane.f32.xlu0 %v765
        %v769 = vpop.xlane.xlu0 %768
        %v770 = vld [vmem:[#allocation2] sm:$0xff]
        %v771 = vld [vmem:[#allocation2 + $0x8] sm:$0xff]
        %v772 = vld [vmem:[#allocation2 + $0x10] sm:$0xff]
        %v773 = vld [vmem:[#allocation2 + $0x18] sm:$0xff]
        %v774 = vld [vmem:[#allocation2 + $0x20] sm:$0xff]
        %v775 = vld [vmem:[#allocation2 + $0x28] sm:$0xff]
        %v776 = vld [vmem:[#allocation2 + $0x30] sm:$0xff]
        %v777 = vld [vmem:[#allocation2 + $0x38] sm:$0xff]
        %v778 = vlaneseq
        %v779 = vshrl.u32 %v778, 7
        %v780 = vsub.s32 0, %v779
        %v781 = vrot.slane %v438, %v780
        %v782 = vlaneseq
        %v783 = vshrl.u32 %v782, 7
        %v784 = vsub.s32 0, %v783
        %v785 = vrot.slane %v439, %v784
        %v786 = vlaneseq
        %v787 = vshrl.u32 %v786, 7
        %v788 = vsub.s32 0, %v787
        %v789 = vrot.slane %v440, %v788
        %v790 = vlaneseq
        %v791 = vshrl.u32 %v790, 7
        %v792 = vsub.s32 0, %v791
        %v793 = vrot.slane %v441, %v792
        %v794 = vmul.f32 %v781, %v713
        %v795 = vmul.f32 %v785, %v715
        %v796 = vmul.f32 %v789, %v756
        %v797 = vmul.f32 %v793, %v758
        %v798 = vmul.f32 %v781, %v717
        %v799 = vmul.f32 %v785, %v719
        %v800 = vmul.f32 %v789, %v760
        %v801 = vmul.f32 %v793, %v762
        %v802 = vlaneseq
        %v803 = vshrl.u32 %v802, 7
        %v804 = vsub.s32 0, %v803
        %v805 = vrot.slane %v442, %v804
        %v806 = vlaneseq
        %v807 = vshrl.u32 %v806, 7
        %v808 = vsub.s32 0, %v807
        %v809 = vrot.slane %v443, %v808
        %v810 = vlaneseq
        %v811 = vshrl.u32 %v810, 7
        %v812 = vsub.s32 0, %v811
        %v813 = vrot.slane %v444, %v812
        %v814 = vlaneseq
        %v815 = vshrl.u32 %v814, 7
        %v816 = vsub.s32 0, %v815
        %v817 = vrot.slane %v445, %v816
        %v818 = vmul.f32 %v805, %v767
        %v819 = vmul.f32 %v809, %v767
        %v820 = vmul.f32 %v813, %v767
        %v821 = vmul.f32 %v817, %v767
        %v822 = vmul.f32 %v805, %v769
        %v823 = vmul.f32 %v809, %v769
        %v824 = vmul.f32 %v813, %v769
        %v825 = vmul.f32 %v817, %v769
        %v826 = vsub.f32 %v794, %v818
        %v827 = vsub.f32 %v795, %v819
        %v828 = vsub.f32 %v796, %v820
        %v829 = vsub.f32 %v797, %v821
        %v830 = vsub.f32 %v798, %v822
        %v831 = vsub.f32 %v799, %v823
        %v832 = vsub.f32 %v800, %v824
        %v833 = vsub.f32 %v801, %v825
        %v834 = vadd.f32 %v770, %v826
        %v835 = vadd.f32 %v771, %v827
        %v836 = vadd.f32 %v772, %v828
        %v837 = vadd.f32 %v773, %v829
        %v838 = vadd.f32 %v774, %v830
        %v839 = vadd.f32 %v775, %v831
        %v840 = vadd.f32 %v776, %v832
        %v841 = vadd.f32 %v777, %v833
        %842 = vst [vmem:[#allocation2] sm:$0xff] %v834
        %843 = vst [vmem:[#allocation2 + $0x8] sm:$0xff] %v835
        %844 = vst [vmem:[#allocation2 + $0x10] sm:$0xff] %v836
        %845 = vst [vmem:[#allocation2 + $0x18] sm:$0xff] %v837
        %846 = vst [vmem:[#allocation2 + $0x20] sm:$0xff] %v838
        %847 = vst [vmem:[#allocation2 + $0x28] sm:$0xff] %v839
        %848 = vst [vmem:[#allocation2 + $0x30] sm:$0xff] %v840
        %849 = vst [vmem:[#allocation2 + $0x38] sm:$0xff] %v841
        %v850 = vld [vmem:[%s341 + $0x40] sm:$0xff]
        %v851 = vld [vmem:[%s341 + $0x48] sm:$0xff]
        %v852 = vld [vmem:[%s341 + $0x50] sm:$0xff]
        %v853 = vld [vmem:[%s341 + $0x58] sm:$0xff]
        %v854 = vld [vmem:[%s341 + $0x60] sm:$0xff]
        %v855 = vld [vmem:[%s341 + $0x68] sm:$0xff]
        %v856 = vld [vmem:[%s341 + $0x70] sm:$0xff]
        %v857 = vld [vmem:[%s341 + $0x78] sm:$0xff]
        %v858 = vand.u32 %v850, 15
        %v859 = vand.u32 %v851, 15
        %v860 = vand.u32 %v852, 15
        %v861 = vand.u32 %v853, 15
        %v862 = vand.u32 %v854, 15
        %v863 = vand.u32 %v855, 15
        %v864 = vand.u32 %v856, 15
        %v865 = vand.u32 %v857, 15
        %v866 = vshra.s32 %v850, 4
        %v867 = vshra.s32 %v851, 4
        %v868 = vshra.s32 %v852, 4
        %v869 = vshra.s32 %v853, 4
        %v870 = vshra.s32 %v854, 4
        %v871 = vshra.s32 %v855, 4
        %v872 = vshra.s32 %v856, 4
        %v873 = vshra.s32 %v857, 4
        %v874 = vand.u32 %v866, 15
        %v875 = vand.u32 %v867, 15
        %v876 = vand.u32 %v868, 15
        %v877 = vand.u32 %v869, 15
        %v878 = vand.u32 %v870, 15
        %v879 = vand.u32 %v871, 15
        %v880 = vand.u32 %v872, 15
        %v881 = vand.u32 %v873, 15
        %v882 = vshra.s32 %v850, 8
        %v883 = vshra.s32 %v851, 8
        %v884 = vshra.s32 %v852, 8
        %v885 = vshra.s32 %v853, 8
        %v886 = vshra.s32 %v854, 8
        %v887 = vshra.s32 %v855, 8
        %v888 = vshra.s32 %v856, 8
        %v889 = vshra.s32 %v857, 8
        %v890 = vand.u32 %v882, 15
        %v891 = vand.u32 %v883, 15
        %v892 = vand.u32 %v884, 15
        %v893 = vand.u32 %v885, 15
        %v894 = vand.u32 %v886, 15
        %v895 = vand.u32 %v887, 15
        %v896 = vand.u32 %v888, 15
        %v897 = vand.u32 %v889, 15
        %v898 = vshra.s32 %v850, 12
        %v899 = vshra.s32 %v851, 12
        %v900 = vshra.s32 %v852, 12
        %v901 = vshra.s32 %v853, 12
        %v902 = vshra.s32 %v854, 12
        %v903 = vshra.s32 %v855, 12
        %v904 = vshra.s32 %v856, 12
        %v905 = vshra.s32 %v857, 12
        %v906 = vand.u32 %v898, 15
        %v907 = vand.u32 %v899, 15
        %v908 = vand.u32 %v900, 15
        %v909 = vand.u32 %v901, 15
        %v910 = vand.u32 %v902, 15
        %v911 = vand.u32 %v903, 15
        %v912 = vand.u32 %v904, 15
        %v913 = vand.u32 %v905, 15
        %v914 = vshra.s32 %v850, 16
        %v915 = vshra.s32 %v851, 16
        %v916 = vshra.s32 %v852, 16
        %v917 = vshra.s32 %v853, 16
        %v918 = vshra.s32 %v854, 16
        %v919 = vshra.s32 %v855, 16
        %v920 = vshra.s32 %v856, 16
        %v921 = vshra.s32 %v857, 16
        %v922 = vand.u32 %v914, 15
        %v923 = vand.u32 %v915, 15
        %v924 = vand.u32 %v916, 15
        %v925 = vand.u32 %v917, 15
        %v926 = vand.u32 %v918, 15
        %v927 = vand.u32 %v919, 15
        %v928 = vand.u32 %v920, 15
        %v929 = vand.u32 %v921, 15
        %v930 = vshra.s32 %v850, 20
        %v931 = vshra.s32 %v851, 20
        %v932 = vshra.s32 %v852, 20
        %v933 = vshra.s32 %v853, 20
        %v934 = vshra.s32 %v854, 20
        %v935 = vshra.s32 %v855, 20
        %v936 = vshra.s32 %v856, 20
        %v937 = vshra.s32 %v857, 20
        %v938 = vand.u32 %v930, 15
        %v939 = vand.u32 %v931, 15
        %v940 = vand.u32 %v932, 15
        %v941 = vand.u32 %v933, 15
        %v942 = vand.u32 %v934, 15
        %v943 = vand.u32 %v935, 15
        %v944 = vand.u32 %v936, 15
        %v945 = vand.u32 %v937, 15
        %v946 = vshra.s32 %v850, 24
        %v947 = vshra.s32 %v851, 24
        %v948 = vshra.s32 %v852, 24
        %v949 = vshra.s32 %v853, 24
        %v950 = vshra.s32 %v854, 24
        %v951 = vshra.s32 %v855, 24
        %v952 = vshra.s32 %v856, 24
        %v953 = vshra.s32 %v857, 24
        %v954 = vand.u32 %v946, 15
        %v955 = vand.u32 %v947, 15
        %v956 = vand.u32 %v948, 15
        %v957 = vand.u32 %v949, 15
        %v958 = vand.u32 %v950, 15
        %v959 = vand.u32 %v951, 15
        %v960 = vand.u32 %v952, 15
        %v961 = vand.u32 %v953, 15
        %v962 = vshra.s32 %v850, 28
        %v963 = vshra.s32 %v851, 28
        %v964 = vshra.s32 %v852, 28
        %v965 = vshra.s32 %v853, 28
        %v966 = vshra.s32 %v854, 28
        %v967 = vshra.s32 %v855, 28
        %v968 = vshra.s32 %v856, 28
        %v969 = vshra.s32 %v857, 28
        %v970 = vand.u32 %v962, 15
        %v971 = vand.u32 %v963, 15
        %v972 = vand.u32 %v964, 15
        %v973 = vand.u32 %v965, 15
        %v974 = vand.u32 %v966, 15
        %v975 = vand.u32 %v967, 15
        %v976 = vand.u32 %v968, 15
        %v977 = vand.u32 %v969, 15
        %v978 = vcvt.s32.f32 %v858
        %v979 = vcvt.s32.f32 %v859
        %v980 = vcvt.s32.f32 %v860
        %v981 = vcvt.s32.f32 %v861
        %v982 = vcvt.s32.f32 %v862
        %v983 = vcvt.s32.f32 %v863
        %v984 = vcvt.s32.f32 %v864
        %v985 = vcvt.s32.f32 %v865
        %v986 = vcvt.s32.f32 %v874
        %v987 = vcvt.s32.f32 %v875
        %v988 = vcvt.s32.f32 %v876
        %v989 = vcvt.s32.f32 %v877
        %v990 = vcvt.s32.f32 %v878
        %v991 = vcvt.s32.f32 %v879
        %v992 = vcvt.s32.f32 %v880
        %v993 = vcvt.s32.f32 %v881
        %v994 = vcvt.s32.f32 %v890
        %v995 = vcvt.s32.f32 %v891
        %v996 = vcvt.s32.f32 %v892
        %v997 = vcvt.s32.f32 %v893
        %v998 = vcvt.s32.f32 %v894
        %v999 = vcvt.s32.f32 %v895
        %v1000 = vcvt.s32.f32 %v896
        %v1001 = vcvt.s32.f32 %v897
        %v1002 = vcvt.s32.f32 %v906
        %v1003 = vcvt.s32.f32 %v907
        %v1004 = vcvt.s32.f32 %v908
        %v1005 = vcvt.s32.f32 %v909
        %v1006 = vcvt.s32.f32 %v910
        %v1007 = vcvt.s32.f32 %v911
        %v1008 = vcvt.s32.f32 %v912
        %v1009 = vcvt.s32.f32 %v913
        %v1010 = vcvt.s32.f32 %v922
        %v1011 = vcvt.s32.f32 %v923
        %v1012 = vcvt.s32.f32 %v924
        %v1013 = vcvt.s32.f32 %v925
        %v1014 = vcvt.s32.f32 %v926
        %v1015 = vcvt.s32.f32 %v927
        %v1016 = vcvt.s32.f32 %v928
        %v1017 = vcvt.s32.f32 %v929
        %v1018 = vcvt.s32.f32 %v938
        %v1019 = vcvt.s32.f32 %v939
        %v1020 = vcvt.s32.f32 %v940
        %v1021 = vcvt.s32.f32 %v941
        %v1022 = vcvt.s32.f32 %v942
        %v1023 = vcvt.s32.f32 %v943
        %v1024 = vcvt.s32.f32 %v944
        %v1025 = vcvt.s32.f32 %v945
        %v1026 = vcvt.s32.f32 %v954
        %v1027 = vcvt.s32.f32 %v955
        %v1028 = vcvt.s32.f32 %v956
        %v1029 = vcvt.s32.f32 %v957
        %v1030 = vcvt.s32.f32 %v958
        %v1031 = vcvt.s32.f32 %v959
        %v1032 = vcvt.s32.f32 %v960
        %v1033 = vcvt.s32.f32 %v961
        %v1034 = vcvt.s32.f32 %v970
        %v1035 = vcvt.s32.f32 %v971
        %v1036 = vcvt.s32.f32 %v972
        %v1037 = vcvt.s32.f32 %v973
        %v1038 = vcvt.s32.f32 %v974
        %v1039 = vcvt.s32.f32 %v975
        %v1040 = vcvt.s32.f32 %v976
        %v1041 = vcvt.s32.f32 %v977
        %v1042 = vpack.c.bf16 %v982, %v978
        %v1043 = vpack.c.bf16 %v983, %v979
        %v1044 = vpack.c.bf16 %v984, %v980
        %v1045 = vpack.c.bf16 %v985, %v981
        %v1046 = vpack.c.bf16 %v990, %v986
        %v1047 = vpack.c.bf16 %v991, %v987
        %v1048 = vpack.c.bf16 %v992, %v988
        %v1049 = vpack.c.bf16 %v993, %v989
        %v1050 = vpack.c.bf16 %v998, %v994
        %v1051 = vpack.c.bf16 %v999, %v995
        %v1052 = vpack.c.bf16 %v1000, %v996
        %v1053 = vpack.c.bf16 %v1001, %v997
        %v1054 = vpack.c.bf16 %v1006, %v1002
        %v1055 = vpack.c.bf16 %v1007, %v1003
        %v1056 = vpack.c.bf16 %v1008, %v1004
        %v1057 = vpack.c.bf16 %v1009, %v1005
        %v1058 = vpack.c.bf16 %v1014, %v1010
        %v1059 = vpack.c.bf16 %v1015, %v1011
        %v1060 = vpack.c.bf16 %v1016, %v1012
        %v1061 = vpack.c.bf16 %v1017, %v1013
        %v1062 = vpack.c.bf16 %v1022, %v1018
        %v1063 = vpack.c.bf16 %v1023, %v1019
        %v1064 = vpack.c.bf16 %v1024, %v1020
        %v1065 = vpack.c.bf16 %v1025, %v1021
        %v1066 = vpack.c.bf16 %v1030, %v1026
        %v1067 = vpack.c.bf16 %v1031, %v1027
        %v1068 = vpack.c.bf16 %v1032, %v1028
        %v1069 = vpack.c.bf16 %v1033, %v1029
        %v1070 = vpack.c.bf16 %v1038, %v1034
        %v1071 = vpack.c.bf16 %v1039, %v1035
        %v1072 = vpack.c.bf16 %v1040, %v1036
        %v1073 = vpack.c.bf16 %v1041, %v1037
        %v1074 = vld [vmem:[%s333 + $0x4] sm:$0xf]
        %v1075 = vld [vmem:[%s333 + $0x24] sm:$0xf]
        %v1078 = vunpack.c.l.b16 %v1074
        %v1079 = vunpack.c.l.b16 %v1075
        %v1080 = vpack.c.b16 %v1079, %v1078
        %1082 = vmatprep.subr.bf16.mxu0 %v1043
        %1083 = vmatpush1.bf16.msra.mxu0 %v1042
        %1084 = vmatprep.subr.bf16.mxu0 %v1047
        %1085 = vmatpush1.bf16.msra.mxu0 %v1046
        %1086 = vmatprep.subr.bf16.mxu0 %v1051
        %1087 = vmatpush1.bf16.msra.mxu0 %v1050
        %1088 = vmatprep.subr.bf16.mxu0 %v1055
        %1089 = vmatpush1.bf16.msra.mxu0 %v1054
        %1090 = vmatprep.subr.bf16.mxu0 %v1059
        %1091 = vmatpush1.bf16.msra.mxu0 %v1058
        %1092 = vmatprep.subr.bf16.mxu0 %v1063
        %1093 = vmatpush1.bf16.msra.mxu0 %v1062
        %1094 = vmatprep.subr.bf16.mxu0 %v1067
        %1095 = vmatpush1.bf16.msra.mxu0 %v1066
        %1096 = vmatprep.subr.bf16.mxu0 %v1071
        %1097 = vmatpush1.bf16.msra.mxu0 %v1070
        %1098 = vmatprep.subr.bf16.mxu0 0
        %1099 = vmatpush1.bf16.msra.mxu0 0
        %1100 = vmatprep.subr.bf16.mxu0 0
        %1101 = vmatpush1.bf16.msra.mxu0 0
        %1102 = vmatprep.subr.bf16.mxu0 0
        %1103 = vmatpush1.bf16.msra.mxu0 0
        %1104 = vmatprep.subr.bf16.mxu0 0
        %1105 = vmatpush1.bf16.msra.mxu0 0
        %1106 = vmatprep.subr.bf16.mxu0 0
        %1107 = vmatpush1.bf16.msra.mxu0 0
        %1108 = vmatprep.subr.bf16.mxu0 0
        %1109 = vmatpush1.bf16.msra.mxu0 0
        %1110 = vmatprep.subr.bf16.mxu0 0
        %1111 = vmatpush1.bf16.msra.mxu0 0
        %1112 = vmatprep.subr.bf16.mxu0 0
        %1113 = vmatpush1.bf16.msra.mxu0 0
        %1114 = vmatprep.mubr.bf16.mxu0 0
        %1115 = vmatmul.mubr.bf16.gmra.mrb[0].mxu0 %v1080
        %v1116 = vpop.f32.mrb[0].mxu0
        %v1117 = vadd.f32 0.0, %v1116
        %v1118 = vpop.f32.mrb[0].mxu0
        %v1119 = vadd.f32 0.0, %v1118
        %v1120 = vpop.f32.mrb[0].mxu0
        %v1121 = vadd.f32 0.0, %v1120
        %v1122 = vpop.f32.mrb[0].mxu0
        %v1123 = vadd.f32 0.0, %v1122
        %1124 = vdwg.mxu0
        %1125 = vmatprep.subr.bf16.mxu0 %v1045
        %1126 = vmatpush1.bf16.msra.mxu0 %v1044
        %1127 = vmatprep.subr.bf16.mxu0 %v1049
        %1128 = vmatpush1.bf16.msra.mxu0 %v1048
        %1129 = vmatprep.subr.bf16.mxu0 %v1053
        %1130 = vmatpush1.bf16.msra.mxu0 %v1052
        %1131 = vmatprep.subr.bf16.mxu0 %v1057
        %1132 = vmatpush1.bf16.msra.mxu0 %v1056
        %1133 = vmatprep.subr.bf16.mxu0 %v1061
        %1134 = vmatpush1.bf16.msra.mxu0 %v1060
        %1135 = vmatprep.subr.bf16.mxu0 %v1065
        %1136 = vmatpush1.bf16.msra.mxu0 %v1064
        %1137 = vmatprep.subr.bf16.mxu0 %v1069
        %1138 = vmatpush1.bf16.msra.mxu0 %v1068
        %1139 = vmatprep.subr.bf16.mxu0 %v1073
        %1140 = vmatpush1.bf16.msra.mxu0 %v1072
        %1141 = vmatprep.subr.bf16.mxu0 0
        %1142 = vmatpush1.bf16.msra.mxu0 0
        %1143 = vmatprep.subr.bf16.mxu0 0
        %1144 = vmatpush1.bf16.msra.mxu0 0
        %1145 = vmatprep.subr.bf16.mxu0 0
        %1146 = vmatpush1.bf16.msra.mxu0 0
        %1147 = vmatprep.subr.bf16.mxu0 0
        %1148 = vmatpush1.bf16.msra.mxu0 0
        %1149 = vmatprep.subr.bf16.mxu0 0
        %1150 = vmatpush1.bf16.msra.mxu0 0
        %1151 = vmatprep.subr.bf16.mxu0 0
        %1152 = vmatpush1.bf16.msra.mxu0 0
        %1153 = vmatprep.subr.bf16.mxu0 0
        %1154 = vmatpush1.bf16.msra.mxu0 0
        %1155 = vmatprep.subr.bf16.mxu0 0
        %1156 = vmatpush1.bf16.msra.mxu0 0
        %1157 = vmatprep.mubr.bf16.mxu0 0
        %1158 = vmatmul.mubr.bf16.gmra.mrb[0].mxu0 %v1080
        %v1159 = vpop.f32.mrb[0].mxu0
        %v1160 = vadd.f32 0.0, %v1159
        %v1161 = vpop.f32.mrb[0].mxu0
        %v1162 = vadd.f32 0.0, %v1161
        %v1163 = vpop.f32.mrb[0].mxu0
        %v1164 = vadd.f32 0.0, %v1163
        %v1165 = vpop.f32.mrb[0].mxu0
        %v1166 = vadd.f32 0.0, %v1165
        %1167 = vdwg.mxu0
        %v1168 = vunpack.c.l.bf16 %v1074
        %v1169 = vunpack.c.l.bf16 %v1075
        %1170 = vadd.xlane.f32.xlu0 %v1168
        %v1171 = vpop.xlane.xlu0 %1170
        %1172 = vadd.xlane.f32.xlu0 %v1169
        %v1173 = vpop.xlane.xlu0 %1172
        %v1174 = vld [vmem:[#allocation2] sm:$0xff]
        %v1175 = vld [vmem:[#allocation2 + $0x8] sm:$0xff]
        %v1176 = vld [vmem:[#allocation2 + $0x10] sm:$0xff]
        %v1177 = vld [vmem:[#allocation2 + $0x18] sm:$0xff]
        %v1178 = vld [vmem:[#allocation2 + $0x20] sm:$0xff]
        %v1179 = vld [vmem:[#allocation2 + $0x28] sm:$0xff]
        %v1180 = vld [vmem:[#allocation2 + $0x30] sm:$0xff]
        %v1181 = vld [vmem:[#allocation2 + $0x38] sm:$0xff]
        %v1182 = vlaneseq
        %v1183 = vshrl.u32 %v1182, 7
        %v1184 = vsub.s32 1, %v1183
        %v1185 = vrot.slane %v438, %v1184
        %v1186 = vlaneseq
        %v1187 = vshrl.u32 %v1186, 7
        %v1188 = vsub.s32 1, %v1187
        %v1189 = vrot.slane %v439, %v1188
        %v1190 = vlaneseq
        %v1191 = vshrl.u32 %v1190, 7
        %v1192 = vsub.s32 1, %v1191
        %v1193 = vrot.slane %v440, %v1192
        %v1194 = vlaneseq
        %v1195 = vshrl.u32 %v1194, 7
        %v1196 = vsub.s32 1, %v1195
        %v1197 = vrot.slane %v441, %v1196
        %v1198 = vmul.f32 %v1185, %v1117
        %v1199 = vmul.f32 %v1189, %v1119
        %v1200 = vmul.f32 %v1193, %v1160
        %v1201 = vmul.f32 %v1197, %v1162
        %v1202 = vmul.f32 %v1185, %v1121
        %v1203 = vmul.f32 %v1189, %v1123
        %v1204 = vmul.f32 %v1193, %v1164
        %v1205 = vmul.f32 %v1197, %v1166
        %v1206 = vlaneseq
        %v1207 = vshrl.u32 %v1206, 7
        %v1208 = vsub.s32 1, %v1207
        %v1209 = vrot.slane %v442, %v1208
        %v1210 = vlaneseq
        %v1211 = vshrl.u32 %v1210, 7
        %v1212 = vsub.s32 1, %v1211
        %v1213 = vrot.slane %v443, %v1212
        %v1214 = vlaneseq
        %v1215 = vshrl.u32 %v1214, 7
        %v1216 = vsub.s32 1, %v1215
        %v1217 = vrot.slane %v444, %v1216
        %v1218 = vlaneseq
        %v1219 = vshrl.u32 %v1218, 7
        %v1220 = vsub.s32 1, %v1219
        %v1221 = vrot.slane %v445, %v1220
        %v1222 = vmul.f32 %v1209, %v1171
        %v1223 = vmul.f32 %v1213, %v1171
        %v1224 = vmul.f32 %v1217, %v1171
        %v1225 = vmul.f32 %v1221, %v1171
        %v1226 = vmul.f32 %v1209, %v1173
        %v1227 = vmul.f32 %v1213, %v1173
        %v1228 = vmul.f32 %v1217, %v1173
        %v1229 = vmul.f32 %v1221, %v1173
        %v1230 = vsub.f32 %v1198, %v1222
        %v1231 = vsub.f32 %v1199, %v1223
        %v1232 = vsub.f32 %v1200, %v1224
        %v1233 = vsub.f32 %v1201, %v1225
        %v1234 = vsub.f32 %v1202, %v1226
        %v1235 = vsub.f32 %v1203, %v1227
        %v1236 = vsub.f32 %v1204, %v1228
        %v1237 = vsub.f32 %v1205, %v1229
        %v1238 = vadd.f32 %v1174, %v1230
        %v1239 = vadd.f32 %v1175, %v1231
        %v1240 = vadd.f32 %v1176, %v1232
        %v1241 = vadd.f32 %v1177, %v1233
        %v1242 = vadd.f32 %v1178, %v1234
        %v1243 = vadd.f32 %v1179, %v1235
        %v1244 = vadd.f32 %v1180, %v1236
        %v1245 = vadd.f32 %v1181, %v1237
        %1246 = vst [vmem:[#allocation2] sm:$0xff] %v1238
        %1247 = vst [vmem:[#allocation2 + $0x8] sm:$0xff] %v1239
        %1248 = vst [vmem:[#allocation2 + $0x10] sm:$0xff] %v1240
        %1249 = vst [vmem:[#allocation2 + $0x18] sm:$0xff] %v1241
        %1250 = vst [vmem:[#allocation2 + $0x20] sm:$0xff] %v1242
        %1251 = vst [vmem:[#allocation2 + $0x28] sm:$0xff] %v1243
        %1252 = vst [vmem:[#allocation2 + $0x30] sm:$0xff] %v1244
        %1253 = vst [vmem:[#allocation2 + $0x38] sm:$0xff] %v1245
        %v1254 = vld [vmem:[%s341 + $0x80] sm:$0xff]
        %v1255 = vld [vmem:[%s341 + $0x88] sm:$0xff]
        %v1256 = vld [vmem:[%s341 + $0x90] sm:$0xff]
        %v1257 = vld [vmem:[%s341 + $0x98] sm:$0xff]
        %v1258 = vld [vmem:[%s341 + $0xa0] sm:$0xff]
        %v1259 = vld [vmem:[%s341 + $0xa8] sm:$0xff]
        %v1260 = vld [vmem:[%s341 + $0xb0] sm:$0xff]
        %v1261 = vld [vmem:[%s341 + $0xb8] sm:$0xff]
        %v1262 = vand.u32 %v1254, 15
        %v1263 = vand.u32 %v1255, 15
        %v1264 = vand.u32 %v1256, 15
        %v1265 = vand.u32 %v1257, 15
        %v1266 = vand.u32 %v1258, 15
        %v1267 = vand.u32 %v1259, 15
        %v1268 = vand.u32 %v1260, 15
        %v1269 = vand.u32 %v1261, 15
        %v1270 = vshra.s32 %v1254, 4
        %v1271 = vshra.s32 %v1255, 4
        %v1272 = vshra.s32 %v1256, 4
        %v1273 = vshra.s32 %v1257, 4
        %v1274 = vshra.s32 %v1258, 4
        %v1275 = vshra.s32 %v1259, 4
        %v1276 = vshra.s32 %v1260, 4
        %v1277 = vshra.s32 %v1261, 4
        %v1278 = vand.u32 %v1270, 15
        %v1279 = vand.u32 %v1271, 15
        %v1280 = vand.u32 %v1272, 15
        %v1281 = vand.u32 %v1273, 15
        %v1282 = vand.u32 %v1274, 15
        %v1283 = vand.u32 %v1275, 15
        %v1284 = vand.u32 %v1276, 15
        %v1285 = vand.u32 %v1277, 15
        %v1286 = vshra.s32 %v1254, 8
        %v1287 = vshra.s32 %v1255, 8
        %v1288 = vshra.s32 %v1256, 8
        %v1289 = vshra.s32 %v1257, 8
        %v1290 = vshra.s32 %v1258, 8
        %v1291 = vshra.s32 %v1259, 8
        %v1292 = vshra.s32 %v1260, 8
        %v1293 = vshra.s32 %v1261, 8
        %v1294 = vand.u32 %v1286, 15
        %v1295 = vand.u32 %v1287, 15
        %v1296 = vand.u32 %v1288, 15
        %v1297 = vand.u32 %v1289, 15
        %v1298 = vand.u32 %v1290, 15
        %v1299 = vand.u32 %v1291, 15
        %v1300 = vand.u32 %v1292, 15
        %v1301 = vand.u32 %v1293, 15
        %v1302 = vshra.s32 %v1254, 12
        %v1303 = vshra.s32 %v1255, 12
        %v1304 = vshra.s32 %v1256, 12
        %v1305 = vshra.s32 %v1257, 12
        %v1306 = vshra.s32 %v1258, 12
        %v1307 = vshra.s32 %v1259, 12
        %v1308 = vshra.s32 %v1260, 12
        %v1309 = vshra.s32 %v1261, 12
        %v1310 = vand.u32 %v1302, 15
        %v1311 = vand.u32 %v1303, 15
        %v1312 = vand.u32 %v1304, 15
        %v1313 = vand.u32 %v1305, 15
        %v1314 = vand.u32 %v1306, 15
        %v1315 = vand.u32 %v1307, 15
        %v1316 = vand.u32 %v1308, 15
        %v1317 = vand.u32 %v1309, 15
        %v1318 = vshra.s32 %v1254, 16
        %v1319 = vshra.s32 %v1255, 16
        %v1320 = vshra.s32 %v1256, 16
        %v1321 = vshra.s32 %v1257, 16
        %v1322 = vshra.s32 %v1258, 16
        %v1323 = vshra.s32 %v1259, 16
        %v1324 = vshra.s32 %v1260, 16
        %v1325 = vshra.s32 %v1261, 16
        %v1326 = vand.u32 %v1318, 15
        %v1327 = vand.u32 %v1319, 15
        %v1328 = vand.u32 %v1320, 15
        %v1329 = vand.u32 %v1321, 15
        %v1330 = vand.u32 %v1322, 15
        %v1331 = vand.u32 %v1323, 15
        %v1332 = vand.u32 %v1324, 15
        %v1333 = vand.u32 %v1325, 15
        %v1334 = vshra.s32 %v1254, 20
        %v1335 = vshra.s32 %v1255, 20
        %v1336 = vshra.s32 %v1256, 20
        %v1337 = vshra.s32 %v1257, 20
        %v1338 = vshra.s32 %v1258, 20
        %v1339 = vshra.s32 %v1259, 20
        %v1340 = vshra.s32 %v1260, 20
        %v1341 = vshra.s32 %v1261, 20
        %v1342 = vand.u32 %v1334, 15
        %v1343 = vand.u32 %v1335, 15
        %v1344 = vand.u32 %v1336, 15
        %v1345 = vand.u32 %v1337, 15
        %v1346 = vand.u32 %v1338, 15
        %v1347 = vand.u32 %v1339, 15
        %v1348 = vand.u32 %v1340, 15
        %v1349 = vand.u32 %v1341, 15
        %v1350 = vshra.s32 %v1254, 24
        %v1351 = vshra.s32 %v1255, 24
        %v1352 = vshra.s32 %v1256, 24
        %v1353 = vshra.s32 %v1257, 24
        %v1354 = vshra.s32 %v1258, 24
        %v1355 = vshra.s32 %v1259, 24
        %v1356 = vshra.s32 %v1260, 24
        %v1357 = vshra.s32 %v1261, 24
        %v1358 = vand.u32 %v1350, 15
        %v1359 = vand.u32 %v1351, 15
        %v1360 = vand.u32 %v1352, 15
        %v1361 = vand.u32 %v1353, 15
        %v1362 = vand.u32 %v1354, 15
        %v1363 = vand.u32 %v1355, 15
        %v1364 = vand.u32 %v1356, 15
        %v1365 = vand.u32 %v1357, 15
        %v1366 = vshra.s32 %v1254, 28
        %v1367 = vshra.s32 %v1255, 28
        %v1368 = vshra.s32 %v1256, 28
        %v1369 = vshra.s32 %v1257, 28
        %v1370 = vshra.s32 %v1258, 28
        %v1371 = vshra.s32 %v1259, 28
        %v1372 = vshra.s32 %v1260, 28
        %v1373 = vshra.s32 %v1261, 28
        %v1374 = vand.u32 %v1366, 15
        %v1375 = vand.u32 %v1367, 15
        %v1376 = vand.u32 %v1368, 15
        %v1377 = vand.u32 %v1369, 15
        %v1378 = vand.u32 %v1370, 15
        %v1379 = vand.u32 %v1371, 15
        %v1380 = vand.u32 %v1372, 15
        %v1381 = vand.u32 %v1373, 15
        %v1382 = vcvt.s32.f32 %v1262
        %v1383 = vcvt.s32.f32 %v1263
        %v1384 = vcvt.s32.f32 %v1264
        %v1385 = vcvt.s32.f32 %v1265
        %v1386 = vcvt.s32.f32 %v1266
        %v1387 = vcvt.s32.f32 %v1267
        %v1388 = vcvt.s32.f32 %v1268
        %v1389 = vcvt.s32.f32 %v1269
        %v1390 = vcvt.s32.f32 %v1278
        %v1391 = vcvt.s32.f32 %v1279
        %v1392 = vcvt.s32.f32 %v1280
        %v1393 = vcvt.s32.f32 %v1281
        %v1394 = vcvt.s32.f32 %v1282
        %v1395 = vcvt.s32.f32 %v1283
        %v1396 = vcvt.s32.f32 %v1284
        %v1397 = vcvt.s32.f32 %v1285
        %v1398 = vcvt.s32.f32 %v1294
        %v1399 = vcvt.s32.f32 %v1295
        %v1400 = vcvt.s32.f32 %v1296
        %v1401 = vcvt.s32.f32 %v1297
        %v1402 = vcvt.s32.f32 %v1298
        %v1403 = vcvt.s32.f32 %v1299
        %v1404 = vcvt.s32.f32 %v1300
        %v1405 = vcvt.s32.f32 %v1301
        %v1406 = vcvt.s32.f32 %v1310
        %v1407 = vcvt.s32.f32 %v1311
        %v1408 = vcvt.s32.f32 %v1312
        %v1409 = vcvt.s32.f32 %v1313
        %v1410 = vcvt.s32.f32 %v1314
        %v1411 = vcvt.s32.f32 %v1315
        %v1412 = vcvt.s32.f32 %v1316
        %v1413 = vcvt.s32.f32 %v1317
        %v1414 = vcvt.s32.f32 %v1326
        %v1415 = vcvt.s32.f32 %v1327
        %v1416 = vcvt.s32.f32 %v1328
        %v1417 = vcvt.s32.f32 %v1329
        %v1418 = vcvt.s32.f32 %v1330
        %v1419 = vcvt.s32.f32 %v1331
        %v1420 = vcvt.s32.f32 %v1332
        %v1421 = vcvt.s32.f32 %v1333
        %v1422 = vcvt.s32.f32 %v1342
        %v1423 = vcvt.s32.f32 %v1343
        %v1424 = vcvt.s32.f32 %v1344
        %v1425 = vcvt.s32.f32 %v1345
        %v1426 = vcvt.s32.f32 %v1346
        %v1427 = vcvt.s32.f32 %v1347
        %v1428 = vcvt.s32.f32 %v1348
        %v1429 = vcvt.s32.f32 %v1349
        %v1430 = vcvt.s32.f32 %v1358
        %v1431 = vcvt.s32.f32 %v1359
        %v1432 = vcvt.s32.f32 %v1360
        %v1433 = vcvt.s32.f32 %v1361
        %v1434 = vcvt.s32.f32 %v1362
        %v1435 = vcvt.s32.f32 %v1363
        %v1436 = vcvt.s32.f32 %v1364
        %v1437 = vcvt.s32.f32 %v1365
        %v1438 = vcvt.s32.f32 %v1374
        %v1439 = vcvt.s32.f32 %v1375
        %v1440 = vcvt.s32.f32 %v1376
        %v1441 = vcvt.s32.f32 %v1377
        %v1442 = vcvt.s32.f32 %v1378
        %v1443 = vcvt.s32.f32 %v1379
        %v1444 = vcvt.s32.f32 %v1380
        %v1445 = vcvt.s32.f32 %v1381
        %v1446 = vpack.c.bf16 %v1386, %v1382
        %v1447 = vpack.c.bf16 %v1387, %v1383
        %v1448 = vpack.c.bf16 %v1388, %v1384
        %v1449 = vpack.c.bf16 %v1389, %v1385
        %v1450 = vpack.c.bf16 %v1394, %v1390
        %v1451 = vpack.c.bf16 %v1395, %v1391
        %v1452 = vpack.c.bf16 %v1396, %v1392
        %v1453 = vpack.c.bf16 %v1397, %v1393
        %v1454 = vpack.c.bf16 %v1402, %v1398
        %v1455 = vpack.c.bf16 %v1403, %v1399
        %v1456 = vpack.c.bf16 %v1404, %v1400
        %v1457 = vpack.c.bf16 %v1405, %v1401
        %v1458 = vpack.c.bf16 %v1410, %v1406
        %v1459 = vpack.c.bf16 %v1411, %v1407
        %v1460 = vpack.c.bf16 %v1412, %v1408
        %v1461 = vpack.c.bf16 %v1413, %v1409
        %v1462 = vpack.c.bf16 %v1418, %v1414
        %v1463 = vpack.c.bf16 %v1419, %v1415
        %v1464 = vpack.c.bf16 %v1420, %v1416
        %v1465 = vpack.c.bf16 %v1421, %v1417
        %v1466 = vpack.c.bf16 %v1426, %v1422
        %v1467 = vpack.c.bf16 %v1427, %v1423
        %v1468 = vpack.c.bf16 %v1428, %v1424
        %v1469 = vpack.c.bf16 %v1429, %v1425
        %v1470 = vpack.c.bf16 %v1434, %v1430
        %v1471 = vpack.c.bf16 %v1435, %v1431
        %v1472 = vpack.c.bf16 %v1436, %v1432
        %v1473 = vpack.c.bf16 %v1437, %v1433
        %v1474 = vpack.c.bf16 %v1442, %v1438
        %v1475 = vpack.c.bf16 %v1443, %v1439
        %v1476 = vpack.c.bf16 %v1444, %v1440
        %v1477 = vpack.c.bf16 %v1445, %v1441
        %v1478 = vld [vmem:[%s333 + $0x8] sm:$0xf]
        %v1479 = vld [vmem:[%s333 + $0x28] sm:$0xf]
        %v1482 = vunpack.c.l.b16 %v1478
        %v1483 = vunpack.c.l.b16 %v1479
        %v1484 = vpack.c.b16 %v1483, %v1482
        %1486 = vmatprep.subr.bf16.mxu0 %v1447
        %1487 = vmatpush1.bf16.msra.mxu0 %v1446
        %1488 = vmatprep.subr.bf16.mxu0 %v1451
        %1489 = vmatpush1.bf16.msra.mxu0 %v1450
        %1490 = vmatprep.subr.bf16.mxu0 %v1455
        %1491 = vmatpush1.bf16.msra.mxu0 %v1454
        %1492 = vmatprep.subr.bf16.mxu0 %v1459
        %1493 = vmatpush1.bf16.msra.mxu0 %v1458
        %1494 = vmatprep.subr.bf16.mxu0 %v1463
        %1495 = vmatpush1.bf16.msra.mxu0 %v1462
        %1496 = vmatprep.subr.bf16.mxu0 %v1467
        %1497 = vmatpush1.bf16.msra.mxu0 %v1466
        %1498 = vmatprep.subr.bf16.mxu0 %v1471
        %1499 = vmatpush1.bf16.msra.mxu0 %v1470
        %1500 = vmatprep.subr.bf16.mxu0 %v1475
        %1501 = vmatpush1.bf16.msra.mxu0 %v1474
        %1502 = vmatprep.subr.bf16.mxu0 0
        %1503 = vmatpush1.bf16.msra.mxu0 0
        %1504 = vmatprep.subr.bf16.mxu0 0
        %1505 = vmatpush1.bf16.msra.mxu0 0
        %1506 = vmatprep.subr.bf16.mxu0 0
        %1507 = vmatpush1.bf16.msra.mxu0 0
        %1508 = vmatprep.subr.bf16.mxu0 0
        %1509 = vmatpush1.bf16.msra.mxu0 0
        %1510 = vmatprep.subr.bf16.mxu0 0
        %1511 = vmatpush1.bf16.msra.mxu0 0
        %1512 = vmatprep.subr.bf16.mxu0 0
        %1513 = vmatpush1.bf16.msra.mxu0 0
        %1514 = vmatprep.subr.bf16.mxu0 0
        %1515 = vmatpush1.bf16.msra.mxu0 0
        %1516 = vmatprep.subr.bf16.mxu0 0
        %1517 = vmatpush1.bf16.msra.mxu0 0
        %1518 = vmatprep.mubr.bf16.mxu0 0
        %1519 = vmatmul.mubr.bf16.gmra.mrb[0].mxu0 %v1484
        %v1520 = vpop.f32.mrb[0].mxu0
        %v1521 = vadd.f32 0.0, %v1520
        %v1522 = vpop.f32.mrb[0].mxu0
        %v1523 = vadd.f32 0.0, %v1522
        %v1524 = vpop.f32.mrb[0].mxu0
        %v1525 = vadd.f32 0.0, %v1524
        %v1526 = vpop.f32.mrb[0].mxu0
        %v1527 = vadd.f32 0.0, %v1526
        %1528 = vdwg.mxu0
        %1529 = vmatprep.subr.bf16.mxu0 %v1449
        %1530 = vmatpush1.bf16.msra.mxu0 %v1448
        %1531 = vmatprep.subr.bf16.mxu0 %v1453
        %1532 = vmatpush1.bf16.msra.mxu0 %v1452
        %1533 = vmatprep.subr.bf16.mxu0 %v1457
        %1534 = vmatpush1.bf16.msra.mxu0 %v1456
        %1535 = vmatprep.subr.bf16.mxu0 %v1461
        %1536 = vmatpush1.bf16.msra.mxu0 %v1460
        %1537 = vmatprep.subr.bf16.mxu0 %v1465
        %1538 = vmatpush1.bf16.msra.mxu0 %v1464
        %1539 = vmatprep.subr.bf16.mxu0 %v1469
        %1540 = vmatpush1.bf16.msra.mxu0 %v1468
        %1541 = vmatprep.subr.bf16.mxu0 %v1473
        %1542 = vmatpush1.bf16.msra.mxu0 %v1472
        %1543 = vmatprep.subr.bf16.mxu0 %v1477
        %1544 = vmatpush1.bf16.msra.mxu0 %v1476
        %1545 = vmatprep.subr.bf16.mxu0 0
        %1546 = vmatpush1.bf16.msra.mxu0 0
        %1547 = vmatprep.subr.bf16.mxu0 0
        %1548 = vmatpush1.bf16.msra.mxu0 0
        %1549 = vmatprep.subr.bf16.mxu0 0
        %1550 = vmatpush1.bf16.msra.mxu0 0
        %1551 = vmatprep.subr.bf16.mxu0 0
        %1552 = vmatpush1.bf16.msra.mxu0 0
        %1553 = vmatprep.subr.bf16.mxu0 0
        %1554 = vmatpush1.bf16.msra.mxu0 0
        %1555 = vmatprep.subr.bf16.mxu0 0
        %1556 = vmatpush1.bf16.msra.mxu0 0
        %1557 = vmatprep.subr.bf16.mxu0 0
        %1558 = vmatpush1.bf16.msra.mxu0 0
        %1559 = vmatprep.subr.bf16.mxu0 0
        %1560 = vmatpush1.bf16.msra.mxu0 0
        %1561 = vmatprep.mubr.bf16.mxu0 0
        %1562 = vmatmul.mubr.bf16.gmra.mrb[0].mxu0 %v1484
        %v1563 = vpop.f32.mrb[0].mxu0
        %v1564 = vadd.f32 0.0, %v1563
        %v1565 = vpop.f32.mrb[0].mxu0
        %v1566 = vadd.f32 0.0, %v1565
        %v1567 = vpop.f32.mrb[0].mxu0
        %v1568 = vadd.f32 0.0, %v1567
        %v1569 = vpop.f32.mrb[0].mxu0
        %v1570 = vadd.f32 0.0, %v1569
        %1571 = vdwg.mxu0
        %v1572 = vunpack.c.l.bf16 %v1478
        %v1573 = vunpack.c.l.bf16 %v1479
        %1574 = vadd.xlane.f32.xlu0 %v1572
        %v1575 = vpop.xlane.xlu0 %1574
        %1576 = vadd.xlane.f32.xlu0 %v1573
        %v1577 = vpop.xlane.xlu0 %1576
        %v1578 = vld [vmem:[#allocation2] sm:$0xff]
        %v1579 = vld [vmem:[#allocation2 + $0x8] sm:$0xff]
        %v1580 = vld [vmem:[#allocation2 + $0x10] sm:$0xff]
        %v1581 = vld [vmem:[#allocation2 + $0x18] sm:$0xff]
        %v1582 = vld [vmem:[#allocation2 + $0x20] sm:$0xff]
        %v1583 = vld [vmem:[#allocation2 + $0x28] sm:$0xff]
        %v1584 = vld [vmem:[#allocation2 + $0x30] sm:$0xff]
        %v1585 = vld [vmem:[#allocation2 + $0x38] sm:$0xff]
        %v1586 = vlaneseq
        %v1587 = vshrl.u32 %v1586, 7
        %v1588 = vsub.s32 2, %v1587
        %v1589 = vrot.slane %v438, %v1588
        %v1590 = vlaneseq
        %v1591 = vshrl.u32 %v1590, 7
        %v1592 = vsub.s32 2, %v1591
        %v1593 = vrot.slane %v439, %v1592
        %v1594 = vlaneseq
        %v1595 = vshrl.u32 %v1594, 7
        %v1596 = vsub.s32 2, %v1595
        %v1597 = vrot.slane %v440, %v1596
        %v1598 = vlaneseq
        %v1599 = vshrl.u32 %v1598, 7
        %v1600 = vsub.s32 2, %v1599
        %v1601 = vrot.slane %v441, %v1600
        %v1602 = vmul.f32 %v1589, %v1521
        %v1603 = vmul.f32 %v1593, %v1523
        %v1604 = vmul.f32 %v1597, %v1564
        %v1605 = vmul.f32 %v1601, %v1566
        %v1606 = vmul.f32 %v1589, %v1525
        %v1607 = vmul.f32 %v1593, %v1527
        %v1608 = vmul.f32 %v1597, %v1568
        %v1609 = vmul.f32 %v1601, %v1570
        %v1610 = vlaneseq
        %v1611 = vshrl.u32 %v1610, 7
        %v1612 = vsub.s32 2, %v1611
        %v1613 = vrot.slane %v442, %v1612
        %v1614 = vlaneseq
        %v1615 = vshrl.u32 %v1614, 7
        %v1616 = vsub.s32 2, %v1615
        %v1617 = vrot.slane %v443, %v1616
        %v1618 = vlaneseq
        %v1619 = vshrl.u32 %v1618, 7
        %v1620 = vsub.s32 2, %v1619
        %v1621 = vrot.slane %v444, %v1620
        %v1622 = vlaneseq
        %v1623 = vshrl.u32 %v1622, 7
        %v1624 = vsub.s32 2, %v1623
        %v1625 = vrot.slane %v445, %v1624
        %v1626 = vmul.f32 %v1613, %v1575
        %v1627 = vmul.f32 %v1617, %v1575
        %v1628 = vmul.f32 %v1621, %v1575
        %v1629 = vmul.f32 %v1625, %v1575
        %v1630 = vmul.f32 %v1613, %v1577
        %v1631 = vmul.f32 %v1617, %v1577
        %v1632 = vmul.f32 %v1621, %v1577
        %v1633 = vmul.f32 %v1625, %v1577
        %v1634 = vsub.f32 %v1602, %v1626
        %v1635 = vsub.f32 %v1603, %v1627
        %v1636 = vsub.f32 %v1604, %v1628
        %v1637 = vsub.f32 %v1605, %v1629
        %v1638 = vsub.f32 %v1606, %v1630
        %v1639 = vsub.f32 %v1607, %v1631
        %v1640 = vsub.f32 %v1608, %v1632
        %v1641 = vsub.f32 %v1609, %v1633
        %v1642 = vadd.f32 %v1578, %v1634
        %v1643 = vadd.f32 %v1579, %v1635
        %v1644 = vadd.f32 %v1580, %v1636
        %v1645 = vadd.f32 %v1581, %v1637
        %v1646 = vadd.f32 %v1582, %v1638
        %v1647 = vadd.f32 %v1583, %v1639
        %v1648 = vadd.f32 %v1584, %v1640
        %v1649 = vadd.f32 %v1585, %v1641
        %1650 = vst [vmem:[#allocation2] sm:$0xff] %v1642
        %1651 = vst [vmem:[#allocation2 + $0x8] sm:$0xff] %v1643
        %1652 = vst [vmem:[#allocation2 + $0x10] sm:$0xff] %v1644
        %1653 = vst [vmem:[#allocation2 + $0x18] sm:$0xff] %v1645
        %1654 = vst [vmem:[#allocation2 + $0x20] sm:$0xff] %v1646
        %1655 = vst [vmem:[#allocation2 + $0x28] sm:$0xff] %v1647
        %1656 = vst [vmem:[#allocation2 + $0x30] sm:$0xff] %v1648
        %1657 = vst [vmem:[#allocation2 + $0x38] sm:$0xff] %v1649
        %v1658 = vld [vmem:[%s341 + $0xc0] sm:$0xff]
        %v1659 = vld [vmem:[%s341 + $0xc8] sm:$0xff]
        %v1660 = vld [vmem:[%s341 + $0xd0] sm:$0xff]
        %v1661 = vld [vmem:[%s341 + $0xd8] sm:$0xff]
        %v1662 = vld [vmem:[%s341 + $0xe0] sm:$0xff]
        %v1663 = vld [vmem:[%s341 + $0xe8] sm:$0xff]
        %v1664 = vld [vmem:[%s341 + $0xf0] sm:$0xff]
        %v1665 = vld [vmem:[%s341 + $0xf8] sm:$0xff]
        %v1666 = vand.u32 %v1658, 15
        %v1667 = vand.u32 %v1659, 15
        %v1668 = vand.u32 %v1660, 15
        %v1669 = vand.u32 %v1661, 15
        %v1670 = vand.u32 %v1662, 15
        %v1671 = vand.u32 %v1663, 15
        %v1672 = vand.u32 %v1664, 15
        %v1673 = vand.u32 %v1665, 15
        %v1674 = vshra.s32 %v1658, 4
        %v1675 = vshra.s32 %v1659, 4
        %v1676 = vshra.s32 %v1660, 4
        %v1677 = vshra.s32 %v1661, 4
        %v1678 = vshra.s32 %v1662, 4
        %v1679 = vshra.s32 %v1663, 4
        %v1680 = vshra.s32 %v1664, 4
        %v1681 = vshra.s32 %v1665, 4
        %v1682 = vand.u32 %v1674, 15
        %v1683 = vand.u32 %v1675, 15
        %v1684 = vand.u32 %v1676, 15
        %v1685 = vand.u32 %v1677, 15
        %v1686 = vand.u32 %v1678, 15
        %v1687 = vand.u32 %v1679, 15
        %v1688 = vand.u32 %v1680, 15
        %v1689 = vand.u32 %v1681, 15
        %v1690 = vshra.s32 %v1658, 8
        %v1691 = vshra.s32 %v1659, 8
        %v1692 = vshra.s32 %v1660, 8
        %v1693 = vshra.s32 %v1661, 8
        %v1694 = vshra.s32 %v1662, 8
        %v1695 = vshra.s32 %v1663, 8
        %v1696 = vshra.s32 %v1664, 8
        %v1697 = vshra.s32 %v1665, 8
        %v1698 = vand.u32 %v1690, 15
        %v1699 = vand.u32 %v1691, 15
        %v1700 = vand.u32 %v1692, 15
        %v1701 = vand.u32 %v1693, 15
        %v1702 = vand.u32 %v1694, 15
        %v1703 = vand.u32 %v1695, 15
        %v1704 = vand.u32 %v1696, 15
        %v1705 = vand.u32 %v1697, 15
        %v1706 = vshra.s32 %v1658, 12
        %v1707 = vshra.s32 %v1659, 12
        %v1708 = vshra.s32 %v1660, 12
        %v1709 = vshra.s32 %v1661, 12
        %v1710 = vshra.s32 %v1662, 12
        %v1711 = vshra.s32 %v1663, 12
        %v1712 = vshra.s32 %v1664, 12
        %v1713 = vshra.s32 %v1665, 12
        %v1714 = vand.u32 %v1706, 15
        %v1715 = vand.u32 %v1707, 15
        %v1716 = vand.u32 %v1708, 15
        %v1717 = vand.u32 %v1709, 15
        %v1718 = vand.u32 %v1710, 15
        %v1719 = vand.u32 %v1711, 15
        %v1720 = vand.u32 %v1712, 15
        %v1721 = vand.u32 %v1713, 15
        %v1722 = vshra.s32 %v1658, 16
        %v1723 = vshra.s32 %v1659, 16
        %v1724 = vshra.s32 %v1660, 16
        %v1725 = vshra.s32 %v1661, 16
        %v1726 = vshra.s32 %v1662, 16
        %v1727 = vshra.s32 %v1663, 16
        %v1728 = vshra.s32 %v1664, 16
        %v1729 = vshra.s32 %v1665, 16
        %v1730 = vand.u32 %v1722, 15
        %v1731 = vand.u32 %v1723, 15
        %v1732 = vand.u32 %v1724, 15
        %v1733 = vand.u32 %v1725, 15
        %v1734 = vand.u32 %v1726, 15
        %v1735 = vand.u32 %v1727, 15
        %v1736 = vand.u32 %v1728, 15
        %v1737 = vand.u32 %v1729, 15
        %v1738 = vshra.s32 %v1658, 20
        %v1739 = vshra.s32 %v1659, 20
        %v1740 = vshra.s32 %v1660, 20
        %v1741 = vshra.s32 %v1661, 20
        %v1742 = vshra.s32 %v1662, 20
        %v1743 = vshra.s32 %v1663, 20
        %v1744 = vshra.s32 %v1664, 20
        %v1745 = vshra.s32 %v1665, 20
        %v1746 = vand.u32 %v1738, 15
        %v1747 = vand.u32 %v1739, 15
        %v1748 = vand.u32 %v1740, 15
        %v1749 = vand.u32 %v1741, 15
        %v1750 = vand.u32 %v1742, 15
        %v1751 = vand.u32 %v1743, 15
        %v1752 = vand.u32 %v1744, 15
        %v1753 = vand.u32 %v1745, 15
        %v1754 = vshra.s32 %v1658, 24
        %v1755 = vshra.s32 %v1659, 24
        %v1756 = vshra.s32 %v1660, 24
        %v1757 = vshra.s32 %v1661, 24
        %v1758 = vshra.s32 %v1662, 24
        %v1759 = vshra.s32 %v1663, 24
        %v1760 = vshra.s32 %v1664, 24
        %v1761 = vshra.s32 %v1665, 24
        %v1762 = vand.u32 %v1754, 15
        %v1763 = vand.u32 %v1755, 15
        %v1764 = vand.u32 %v1756, 15
        %v1765 = vand.u32 %v1757, 15
        %v1766 = vand.u32 %v1758, 15
        %v1767 = vand.u32 %v1759, 15
        %v1768 = vand.u32 %v1760, 15
        %v1769 = vand.u32 %v1761, 15
        %v1770 = vshra.s32 %v1658, 28
        %v1771 = vshra.s32 %v1659, 28
        %v1772 = vshra.s32 %v1660, 28
        %v1773 = vshra.s32 %v1661, 28
        %v1774 = vshra.s32 %v1662, 28
        %v1775 = vshra.s32 %v1663, 28
        %v1776 = vshra.s32 %v1664, 28
        %v1777 = vshra.s32 %v1665, 28
        %v1778 = vand.u32 %v1770, 15
        %v1779 = vand.u32 %v1771, 15
        %v1780 = vand.u32 %v1772, 15
        %v1781 = vand.u32 %v1773, 15
        %v1782 = vand.u32 %v1774, 15
        %v1783 = vand.u32 %v1775, 15
        %v1784 = vand.u32 %v1776, 15
        %v1785 = vand.u32 %v1777, 15
        %v1786 = vcvt.s32.f32 %v1666
        %v1787 = vcvt.s32.f32 %v1667
        %v1788 = vcvt.s32.f32 %v1668
        %v1789 = vcvt.s32.f32 %v1669
        %v1790 = vcvt.s32.f32 %v1670
        %v1791 = vcvt.s32.f32 %v1671
        %v1792 = vcvt.s32.f32 %v1672
        %v1793 = vcvt.s32.f32 %v1673
        %v1794 = vcvt.s32.f32 %v1682
        %v1795 = vcvt.s32.f32 %v1683
        %v1796 = vcvt.s32.f32 %v1684
        %v1797 = vcvt.s32.f32 %v1685
        %v1798 = vcvt.s32.f32 %v1686
        %v1799 = vcvt.s32.f32 %v1687
        %v1800 = vcvt.s32.f32 %v1688
        %v1801 = vcvt.s32.f32 %v1689
        %v1802 = vcvt.s32.f32 %v1698
        %v1803 = vcvt.s32.f32 %v1699
        %v1804 = vcvt.s32.f32 %v1700
        %v1805 = vcvt.s32.f32 %v1701
        %v1806 = vcvt.s32.f32 %v1702
        %v1807 = vcvt.s32.f32 %v1703
        %v1808 = vcvt.s32.f32 %v1704
        %v1809 = vcvt.s32.f32 %v1705
        %v1810 = vcvt.s32.f32 %v1714
        %v1811 = vcvt.s32.f32 %v1715
        %v1812 = vcvt.s32.f32 %v1716
        %v1813 = vcvt.s32.f32 %v1717
        %v1814 = vcvt.s32.f32 %v1718
        %v1815 = vcvt.s32.f32 %v1719
        %v1816 = vcvt.s32.f32 %v1720
        %v1817 = vcvt.s32.f32 %v1721
        %v1818 = vcvt.s32.f32 %v1730
        %v1819 = vcvt.s32.f32 %v1731
        %v1820 = vcvt.s32.f32 %v1732
        %v1821 = vcvt.s32.f32 %v1733
        %v1822 = vcvt.s32.f32 %v1734
        %v1823 = vcvt.s32.f32 %v1735
        %v1824 = vcvt.s32.f32 %v1736
        %v1825 = vcvt.s32.f32 %v1737
        %v1826 = vcvt.s32.f32 %v1746
        %v1827 = vcvt.s32.f32 %v1747
        %v1828 = vcvt.s32.f32 %v1748
        %v1829 = vcvt.s32.f32 %v1749
        %v1830 = vcvt.s32.f32 %v1750
        %v1831 = vcvt.s32.f32 %v1751
        %v1832 = vcvt.s32.f32 %v1752
        %v1833 = vcvt.s32.f32 %v1753
        %v1834 = vcvt.s32.f32 %v1762
        %v1835 = vcvt.s32.f32 %v1763
        %v1836 = vcvt.s32.f32 %v1764
        %v1837 = vcvt.s32.f32 %v1765
        %v1838 = vcvt.s32.f32 %v1766
        %v1839 = vcvt.s32.f32 %v1767
        %v1840 = vcvt.s32.f32 %v1768
        %v1841 = vcvt.s32.f32 %v1769
        %v1842 = vcvt.s32.f32 %v1778
        %v1843 = vcvt.s32.f32 %v1779
        %v1844 = vcvt.s32.f32 %v1780
        %v1845 = vcvt.s32.f32 %v1781
        %v1846 = vcvt.s32.f32 %v1782
        %v1847 = vcvt.s32.f32 %v1783
        %v1848 = vcvt.s32.f32 %v1784
        %v1849 = vcvt.s32.f32 %v1785
        %v1850 = vpack.c.bf16 %v1790, %v1786
        %v1851 = vpack.c.bf16 %v1791, %v1787
        %v1852 = vpack.c.bf16 %v1792, %v1788
        %v1853 = vpack.c.bf16 %v1793, %v1789
        %v1854 = vpack.c.bf16 %v1798, %v1794
        %v1855 = vpack.c.bf16 %v1799, %v1795
        %v1856 = vpack.c.bf16 %v1800, %v1796
        %v1857 = vpack.c.bf16 %v1801, %v1797
        %v1858 = vpack.c.bf16 %v1806, %v1802
        %v1859 = vpack.c.bf16 %v1807, %v1803
        %v1860 = vpack.c.bf16 %v1808, %v1804
        %v1861 = vpack.c.bf16 %v1809, %v1805
        %v1862 = vpack.c.bf16 %v1814, %v1810
        %v1863 = vpack.c.bf16 %v1815, %v1811
        %v1864 = vpack.c.bf16 %v1816, %v1812
        %v1865 = vpack.c.bf16 %v1817, %v1813
        %v1866 = vpack.c.bf16 %v1822, %v1818
        %v1867 = vpack.c.bf16 %v1823, %v1819
        %v1868 = vpack.c.bf16 %v1824, %v1820
        %v1869 = vpack.c.bf16 %v1825, %v1821
        %v1870 = vpack.c.bf16 %v1830, %v1826
        %v1871 = vpack.c.bf16 %v1831, %v1827
        %v1872 = vpack.c.bf16 %v1832, %v1828
        %v1873 = vpack.c.bf16 %v1833, %v1829
        %v1874 = vpack.c.bf16 %v1838, %v1834
        %v1875 = vpack.c.bf16 %v1839, %v1835
        %v1876 = vpack.c.bf16 %v1840, %v1836
        %v1877 = vpack.c.bf16 %v1841, %v1837
        %v1878 = vpack.c.bf16 %v1846, %v1842
        %v1879 = vpack.c.bf16 %v1847, %v1843
        %v1880 = vpack.c.bf16 %v1848, %v1844
        %v1881 = vpack.c.bf16 %v1849, %v1845
        %v1882 = vld [vmem:[%s333 + $0xc] sm:$0xf]
        %v1883 = vld [vmem:[%s333 + $0x2c] sm:$0xf]
        %v1886 = vunpack.c.l.b16 %v1882
        %v1887 = vunpack.c.l.b16 %v1883
        %v1888 = vpack.c.b16 %v1887, %v1886
        %1890 = vmatprep.subr.bf16.mxu0 %v1851
        %1891 = vmatpush1.bf16.msra.mxu0 %v1850
        %1892 = vmatprep.subr.bf16.mxu0 %v1855
        %1893 = vmatpush1.bf16.msra.mxu0 %v1854
        %1894 = vmatprep.subr.bf16.mxu0 %v1859
        %1895 = vmatpush1.bf16.msra.mxu0 %v1858
        %1896 = vmatprep.subr.bf16.mxu0 %v1863
        %1897 = vmatpush1.bf16.msra.mxu0 %v1862
        %1898 = vmatprep.subr.bf16.mxu0 %v1867
        %1899 = vmatpush1.bf16.msra.mxu0 %v1866
        %1900 = vmatprep.subr.bf16.mxu0 %v1871
        %1901 = vmatpush1.bf16.msra.mxu0 %v1870
        %1902 = vmatprep.subr.bf16.mxu0 %v1875
        %1903 = vmatpush1.bf16.msra.mxu0 %v1874
        %1904 = vmatprep.subr.bf16.mxu0 %v1879
        %1905 = vmatpush1.bf16.msra.mxu0 %v1878
        %1906 = vmatprep.subr.bf16.mxu0 0
        %1907 = vmatpush1.bf16.msra.mxu0 0
        %1908 = vmatprep.subr.bf16.mxu0 0
        %1909 = vmatpush1.bf16.msra.mxu0 0
        %1910 = vmatprep.subr.bf16.mxu0 0
        %1911 = vmatpush1.bf16.msra.mxu0 0
        %1912 = vmatprep.subr.bf16.mxu0 0
        %1913 = vmatpush1.bf16.msra.mxu0 0
        %1914 = vmatprep.subr.bf16.mxu0 0
        %1915 = vmatpush1.bf16.msra.mxu0 0
        %1916 = vmatprep.subr.bf16.mxu0 0
        %1917 = vmatpush1.bf16.msra.mxu0 0
        %1918 = vmatprep.subr.bf16.mxu0 0
        %1919 = vmatpush1.bf16.msra.mxu0 0
        %1920 = vmatprep.subr.bf16.mxu0 0
        %1921 = vmatpush1.bf16.msra.mxu0 0
        %1922 = vmatprep.mubr.bf16.mxu0 0
        %1923 = vmatmul.mubr.bf16.gmra.mrb[0].mxu0 %v1888
        %v1924 = vpop.f32.mrb[0].mxu0
        %v1925 = vadd.f32 0.0, %v1924
        %v1926 = vpop.f32.mrb[0].mxu0
        %v1927 = vadd.f32 0.0, %v1926
        %v1928 = vpop.f32.mrb[0].mxu0
        %v1929 = vadd.f32 0.0, %v1928
        %v1930 = vpop.f32.mrb[0].mxu0
        %v1931 = vadd.f32 0.0, %v1930
        %1932 = vdwg.mxu0
        %1933 = vmatprep.subr.bf16.mxu0 %v1853
        %1934 = vmatpush1.bf16.msra.mxu0 %v1852
        %1935 = vmatprep.subr.bf16.mxu0 %v1857
        %1936 = vmatpush1.bf16.msra.mxu0 %v1856
        %1937 = vmatprep.subr.bf16.mxu0 %v1861
        %1938 = vmatpush1.bf16.msra.mxu0 %v1860
        %1939 = vmatprep.subr.bf16.mxu0 %v1865
        %1940 = vmatpush1.bf16.msra.mxu0 %v1864
        %1941 = vmatprep.subr.bf16.mxu0 %v1869
        %1942 = vmatpush1.bf16.msra.mxu0 %v1868
        %1943 = vmatprep.subr.bf16.mxu0 %v1873
        %1944 = vmatpush1.bf16.msra.mxu0 %v1872
        %1945 = vmatprep.subr.bf16.mxu0 %v1877
        %1946 = vmatpush1.bf16.msra.mxu0 %v1876
        %1947 = vmatprep.subr.bf16.mxu0 %v1881
        %1948 = vmatpush1.bf16.msra.mxu0 %v1880
        %1949 = vmatprep.subr.bf16.mxu0 0
        %1950 = vmatpush1.bf16.msra.mxu0 0
        %1951 = vmatprep.subr.bf16.mxu0 0
        %1952 = vmatpush1.bf16.msra.mxu0 0
        %1953 = vmatprep.subr.bf16.mxu0 0
        %1954 = vmatpush1.bf16.msra.mxu0 0
        %1955 = vmatprep.subr.bf16.mxu0 0
        %1956 = vmatpush1.bf16.msra.mxu0 0
        %1957 = vmatprep.subr.bf16.mxu0 0
        %1958 = vmatpush1.bf16.msra.mxu0 0
        %1959 = vmatprep.subr.bf16.mxu0 0
        %1960 = vmatpush1.bf16.msra.mxu0 0
        %1961 = vmatprep.subr.bf16.mxu0 0
        %1962 = vmatpush1.bf16.msra.mxu0 0
        %1963 = vmatprep.subr.bf16.mxu0 0
        %1964 = vmatpush1.bf16.msra.mxu0 0
        %1965 = vmatprep.mubr.bf16.mxu0 0
        %1966 = vmatmul.mubr.bf16.gmra.mrb[0].mxu0 %v1888
        %v1967 = vpop.f32.mrb[0].mxu0
        %v1968 = vadd.f32 0.0, %v1967
        %v1969 = vpop.f32.mrb[0].mxu0
        %v1970 = vadd.f32 0.0, %v1969
        %v1971 = vpop.f32.mrb[0].mxu0
        %v1972 = vadd.f32 0.0, %v1971
        %v1973 = vpop.f32.mrb[0].mxu0
        %v1974 = vadd.f32 0.0, %v1973
        %1975 = vdwg.mxu0
        %v1976 = vunpack.c.l.bf16 %v1882
        %v1977 = vunpack.c.l.bf16 %v1883
        %1978 = vadd.xlane.f32.xlu0 %v1976
        %v1979 = vpop.xlane.xlu0 %1978
        %1980 = vadd.xlane.f32.xlu0 %v1977
        %v1981 = vpop.xlane.xlu0 %1980
        %v1982 = vld [vmem:[#allocation2] sm:$0xff]
        %v1983 = vld [vmem:[#allocation2 + $0x8] sm:$0xff]
        %v1984 = vld [vmem:[#allocation2 + $0x10] sm:$0xff]
        %v1985 = vld [vmem:[#allocation2 + $0x18] sm:$0xff]
        %v1986 = vld [vmem:[#allocation2 + $0x20] sm:$0xff]
        %v1987 = vld [vmem:[#allocation2 + $0x28] sm:$0xff]
        %v1988 = vld [vmem:[#allocation2 + $0x30] sm:$0xff]
        %v1989 = vld [vmem:[#allocation2 + $0x38] sm:$0xff]
        %v1990 = vlaneseq
        %v1991 = vshrl.u32 %v1990, 7
        %v1992 = vsub.s32 3, %v1991
        %v1993 = vrot.slane %v438, %v1992
        %v1994 = vlaneseq
        %v1995 = vshrl.u32 %v1994, 7
        %v1996 = vsub.s32 3, %v1995
        %v1997 = vrot.slane %v439, %v1996
        %v1998 = vlaneseq
        %v1999 = vshrl.u32 %v1998, 7
        %v2000 = vsub.s32 3, %v1999
        %v2001 = vrot.slane %v440, %v2000
        %v2002 = vlaneseq
        %v2003 = vshrl.u32 %v2002, 7
        %v2004 = vsub.s32 3, %v2003
        %v2005 = vrot.slane %v441, %v2004
        %v2006 = vmul.f32 %v1993, %v1925
        %v2007 = vmul.f32 %v1997, %v1927
        %v2008 = vmul.f32 %v2001, %v1968
        %v2009 = vmul.f32 %v2005, %v1970
        %v2010 = vmul.f32 %v1993, %v1929
        %v2011 = vmul.f32 %v1997, %v1931
        %v2012 = vmul.f32 %v2001, %v1972
        %v2013 = vmul.f32 %v2005, %v1974
        %v2014 = vlaneseq
        %v2015 = vshrl.u32 %v2014, 7
        %v2016 = vsub.s32 3, %v2015
        %v2017 = vrot.slane %v442, %v2016
        %v2018 = vlaneseq
        %v2019 = vshrl.u32 %v2018, 7
        %v2020 = vsub.s32 3, %v2019
        %v2021 = vrot.slane %v443, %v2020
        %v2022 = vlaneseq
        %v2023 = vshrl.u32 %v2022, 7
        %v2024 = vsub.s32 3, %v2023
        %v2025 = vrot.slane %v444, %v2024
        %v2026 = vlaneseq
        %v2027 = vshrl.u32 %v2026, 7
        %v2028 = vsub.s32 3, %v2027
        %v2029 = vrot.slane %v445, %v2028
        %v2030 = vmul.f32 %v2017, %v1979
        %v2031 = vmul.f32 %v2021, %v1979
        %v2032 = vmul.f32 %v2025, %v1979
        %v2033 = vmul.f32 %v2029, %v1979
        %v2034 = vmul.f32 %v2017, %v1981
        %v2035 = vmul.f32 %v2021, %v1981
        %v2036 = vmul.f32 %v2025, %v1981
        %v2037 = vmul.f32 %v2029, %v1981
        %v2038 = vsub.f32 %v2006, %v2030
        %v2039 = vsub.f32 %v2007, %v2031
        %v2040 = vsub.f32 %v2008, %v2032
        %v2041 = vsub.f32 %v2009, %v2033
        %v2042 = vsub.f32 %v2010, %v2034
        %v2043 = vsub.f32 %v2011, %v2035
        %v2044 = vsub.f32 %v2012, %v2036
        %v2045 = vsub.f32 %v2013, %v2037
        %v2046 = vadd.f32 %v1982, %v2038
        %v2047 = vadd.f32 %v1983, %v2039
        %v2048 = vadd.f32 %v1984, %v2040
        %v2049 = vadd.f32 %v1985, %v2041
        %v2050 = vadd.f32 %v1986, %v2042
        %v2051 = vadd.f32 %v1987, %v2043
        %v2052 = vadd.f32 %v1988, %v2044
        %v2053 = vadd.f32 %v1989, %v2045
        %2054 = vst [vmem:[#allocation2] sm:$0xff] %v2046
        %2055 = vst [vmem:[#allocation2 + $0x8] sm:$0xff] %v2047
        %2056 = vst [vmem:[#allocation2 + $0x10] sm:$0xff] %v2048
        %2057 = vst [vmem:[#allocation2 + $0x18] sm:$0xff] %v2049
        %2058 = vst [vmem:[#allocation2 + $0x20] sm:$0xff] %v2050
        %2059 = vst [vmem:[#allocation2 + $0x28] sm:$0xff] %v2051
        %2060 = vst [vmem:[#allocation2 + $0x30] sm:$0xff] %v2052
        %2061 = vst [vmem:[#allocation2 + $0x38] sm:$0xff] %v2053
        %v2062 = vld [vmem:[%s341 + $0x100] sm:$0xff]
        %v2063 = vld [vmem:[%s341 + $0x108] sm:$0xff]
        %v2064 = vld [vmem:[%s341 + $0x110] sm:$0xff]
        %v2065 = vld [vmem:[%s341 + $0x118] sm:$0xff]
        %v2066 = vld [vmem:[%s341 + $0x120] sm:$0xff]
        %v2067 = vld [vmem:[%s341 + $0x128] sm:$0xff]
        %v2068 = vld [vmem:[%s341 + $0x130] sm:$0xff]
        %v2069 = vld [vmem:[%s341 + $0x138] sm:$0xff]
        %v2070 = vand.u32 %v2062, 15
        %v2071 = vand.u32 %v2063, 15
        %v2072 = vand.u32 %v2064, 15
        %v2073 = vand.u32 %v2065, 15
        %v2074 = vand.u32 %v2066, 15
        %v2075 = vand.u32 %v2067, 15
        %v2076 = vand.u32 %v2068, 15
        %v2077 = vand.u32 %v2069, 15
        %v2078 = vshra.s32 %v2062, 4
        %v2079 = vshra.s32 %v2063, 4
        %v2080 = vshra.s32 %v2064, 4
        %v2081 = vshra.s32 %v2065, 4
        %v2082 = vshra.s32 %v2066, 4
        %v2083 = vshra.s32 %v2067, 4
        %v2084 = vshra.s32 %v2068, 4
        %v2085 = vshra.s32 %v2069, 4
        %v2086 = vand.u32 %v2078, 15
        %v2087 = vand.u32 %v2079, 15
        %v2088 = vand.u32 %v2080, 15
        %v2089 = vand.u32 %v2081, 15
        %v2090 = vand.u32 %v2082, 15
        %v2091 = vand.u32 %v2083, 15
        %v2092 = vand.u32 %v2084, 15
        %v2093 = vand.u32 %v2085, 15
        %v2094 = vshra.s32 %v2062, 8
        %v2095 = vshra.s32 %v2063, 8
        %v2096 = vshra.s32 %v2064, 8
        %v2097 = vshra.s32 %v2065, 8
        %v2098 = vshra.s32 %v2066, 8
        %v2099 = vshra.s32 %v2067, 8
        %v2100 = vshra.s32 %v2068, 8
        %v2101 = vshra.s32 %v2069, 8
        %v2102 = vand.u32 %v2094, 15
        %v2103 = vand.u32 %v2095, 15
        %v2104 = vand.u32 %v2096, 15
        %v2105 = vand.u32 %v2097, 15
        %v2106 = vand.u32 %v2098, 15
        %v2107 = vand.u32 %v2099, 15
        %v2108 = vand.u32 %v2100, 15
        %v2109 = vand.u32 %v2101, 15
        %v2110 = vshra.s32 %v2062, 12
        %v2111 = vshra.s32 %v2063, 12
        %v2112 = vshra.s32 %v2064, 12
        %v2113 = vshra.s32 %v2065, 12
        %v2114 = vshra.s32 %v2066, 12
        %v2115 = vshra.s32 %v2067, 12
        %v2116 = vshra.s32 %v2068, 12
        %v2117 = vshra.s32 %v2069, 12
        %v2118 = vand.u32 %v2110, 15
        %v2119 = vand.u32 %v2111, 15
        %v2120 = vand.u32 %v2112, 15
        %v2121 = vand.u32 %v2113, 15
        %v2122 = vand.u32 %v2114, 15
        %v2123 = vand.u32 %v2115, 15
        %v2124 = vand.u32 %v2116, 15
        %v2125 = vand.u32 %v2117, 15
        %v2126 = vshra.s32 %v2062, 16
        %v2127 = vshra.s32 %v2063, 16
        %v2128 = vshra.s32 %v2064, 16
        %v2129 = vshra.s32 %v2065, 16
        %v2130 = vshra.s32 %v2066, 16
        %v2131 = vshra.s32 %v2067, 16
        %v2132 = vshra.s32 %v2068, 16
        %v2133 = vshra.s32 %v2069, 16
        %v2134 = vand.u32 %v2126, 15
        %v2135 = vand.u32 %v2127, 15
        %v2136 = vand.u32 %v2128, 15
        %v2137 = vand.u32 %v2129, 15
        %v2138 = vand.u32 %v2130, 15
        %v2139 = vand.u32 %v2131, 15
        %v2140 = vand.u32 %v2132, 15
        %v2141 = vand.u32 %v2133, 15
        %v2142 = vshra.s32 %v2062, 20
        %v2143 = vshra.s32 %v2063, 20
        %v2144 = vshra.s32 %v2064, 20
        %v2145 = vshra.s32 %v2065, 20
        %v2146 = vshra.s32 %v2066, 20
        %v2147 = vshra.s32 %v2067, 20
        %v2148 = vshra.s32 %v2068, 20
        %v2149 = vshra.s32 %v2069, 20
        %v2150 = vand.u32 %v2142, 15
        %v2151 = vand.u32 %v2143, 15
        %v2152 = vand.u32 %v2144, 15
        %v2153 = vand.u32 %v2145, 15
        %v2154 = vand.u32 %v2146, 15
        %v2155 = vand.u32 %v2147, 15
        %v2156 = vand.u32 %v2148, 15
        %v2157 = vand.u32 %v2149, 15
        %v2158 = vshra.s32 %v2062, 24
        %v2159 = vshra.s32 %v2063, 24
        %v2160 = vshra.s32 %v2064, 24
        %v2161 = vshra.s32 %v2065, 24
        %v2162 = vshra.s32 %v2066, 24
        %v2163 = vshra.s32 %v2067, 24
        %v2164 = vshra.s32 %v2068, 24
        %v2165 = vshra.s32 %v2069, 24
        %v2166 = vand.u32 %v2158, 15
        %v2167 = vand.u32 %v2159, 15
        %v2168 = vand.u32 %v2160, 15
        %v2169 = vand.u32 %v2161, 15
        %v2170 = vand.u32 %v2162, 15
        %v2171 = vand.u32 %v2163, 15
        %v2172 = vand.u32 %v2164, 15
        %v2173 = vand.u32 %v2165, 15
        %v2174 = vshra.s32 %v2062, 28
        %v2175 = vshra.s32 %v2063, 28
        %v2176 = vshra.s32 %v2064, 28
        %v2177 = vshra.s32 %v2065, 28
        %v2178 = vshra.s32 %v2066, 28
        %v2179 = vshra.s32 %v2067, 28
        %v2180 = vshra.s32 %v2068, 28
        %v2181 = vshra.s32 %v2069, 28
        %v2182 = vand.u32 %v2174, 15
        %v2183 = vand.u32 %v2175, 15
        %v2184 = vand.u32 %v2176, 15
        %v2185 = vand.u32 %v2177, 15
        %v2186 = vand.u32 %v2178, 15
        %v2187 = vand.u32 %v2179, 15
        %v2188 = vand.u32 %v2180, 15
        %v2189 = vand.u32 %v2181, 15
        %v2190 = vcvt.s32.f32 %v2070
        %v2191 = vcvt.s32.f32 %v2071
        %v2192 = vcvt.s32.f32 %v2072
        %v2193 = vcvt.s32.f32 %v2073
        %v2194 = vcvt.s32.f32 %v2074
        %v2195 = vcvt.s32.f32 %v2075
        %v2196 = vcvt.s32.f32 %v2076
        %v2197 = vcvt.s32.f32 %v2077
        %v2198 = vcvt.s32.f32 %v2086
        %v2199 = vcvt.s32.f32 %v2087
        %v2200 = vcvt.s32.f32 %v2088
        %v2201 = vcvt.s32.f32 %v2089
        %v2202 = vcvt.s32.f32 %v2090
        %v2203 = vcvt.s32.f32 %v2091
        %v2204 = vcvt.s32.f32 %v2092
        %v2205 = vcvt.s32.f32 %v2093
        %v2206 = vcvt.s32.f32 %v2102
        %v2207 = vcvt.s32.f32 %v2103
        %v2208 = vcvt.s32.f32 %v2104
        %v2209 = vcvt.s32.f32 %v2105
        %v2210 = vcvt.s32.f32 %v2106
        %v2211 = vcvt.s32.f32 %v2107
        %v2212 = vcvt.s32.f32 %v2108
        %v2213 = vcvt.s32.f32 %v2109
        %v2214 = vcvt.s32.f32 %v2118
        %v2215 = vcvt.s32.f32 %v2119
        %v2216 = vcvt.s32.f32 %v2120
        %v2217 = vcvt.s32.f32 %v2121
        %v2218 = vcvt.s32.f32 %v2122
        %v2219 = vcvt.s32.f32 %v2123
        %v2220 = vcvt.s32.f32 %v2124
        %v2221 = vcvt.s32.f32 %v2125
        %v2222 = vcvt.s32.f32 %v2134
        %v2223 = vcvt.s32.f32 %v2135
        %v2224 = vcvt.s32.f32 %v2136
        %v2225 = vcvt.s32.f32 %v2137
        %v2226 = vcvt.s32.f32 %v2138
        %v2227 = vcvt.s32.f32 %v2139
        %v2228 = vcvt.s32.f32 %v2140
        %v2229 = vcvt.s32.f32 %v2141
        %v2230 = vcvt.s32.f32 %v2150
        %v2231 = vcvt.s32.f32 %v2151
        %v2232 = vcvt.s32.f32 %v2152
        %v2233 = vcvt.s32.f32 %v2153
        %v2234 = vcvt.s32.f32 %v2154
        %v2235 = vcvt.s32.f32 %v2155
        %v2236 = vcvt.s32.f32 %v2156
        %v2237 = vcvt.s32.f32 %v2157
        %v2238 = vcvt.s32.f32 %v2166
        %v2239 = vcvt.s32.f32 %v2167
        %v2240 = vcvt.s32.f32 %v2168
        %v2241 = vcvt.s32.f32 %v2169
        %v2242 = vcvt.s32.f32 %v2170
        %v2243 = vcvt.s32.f32 %v2171
        %v2244 = vcvt.s32.f32 %v2172
        %v2245 = vcvt.s32.f32 %v2173
        %v2246 = vcvt.s32.f32 %v2182
        %v2247 = vcvt.s32.f32 %v2183
        %v2248 = vcvt.s32.f32 %v2184
        %v2249 = vcvt.s32.f32 %v2185
        %v2250 = vcvt.s32.f32 %v2186
        %v2251 = vcvt.s32.f32 %v2187
        %v2252 = vcvt.s32.f32 %v2188
        %v2253 = vcvt.s32.f32 %v2189
        %v2254 = vpack.c.bf16 %v2194, %v2190
        %v2255 = vpack.c.bf16 %v2195, %v2191
        %v2256 = vpack.c.bf16 %v2196, %v2192
        %v2257 = vpack.c.bf16 %v2197, %v2193
        %v2258 = vpack.c.bf16 %v2202, %v2198
        %v2259 = vpack.c.bf16 %v2203, %v2199
        %v2260 = vpack.c.bf16 %v2204, %v2200
        %v2261 = vpack.c.bf16 %v2205, %v2201
        %v2262 = vpack.c.bf16 %v2210, %v2206
        %v2263 = vpack.c.bf16 %v2211, %v2207
        %v2264 = vpack.c.bf16 %v2212, %v2208
        %v2265 = vpack.c.bf16 %v2213, %v2209
        %v2266 = vpack.c.bf16 %v2218, %v2214
        %v2267 = vpack.c.bf16 %v2219, %v2215
        %v2268 = vpack.c.bf16 %v2220, %v2216
        %v2269 = vpack.c.bf16 %v2221, %v2217
        %v2270 = vpack.c.bf16 %v2226, %v2222
        %v2271 = vpack.c.bf16 %v2227, %v2223
        %v2272 = vpack.c.bf16 %v2228, %v2224
        %v2273 = vpack.c.bf16 %v2229, %v2225
        %v2274 = vpack.c.bf16 %v2234, %v2230
        %v2275 = vpack.c.bf16 %v2235, %v2231
        %v2276 = vpack.c.bf16 %v2236, %v2232
        %v2277 = vpack.c.bf16 %v2237, %v2233
        %v2278 = vpack.c.bf16 %v2242, %v2238
        %v2279 = vpack.c.bf16 %v2243, %v2239
        %v2280 = vpack.c.bf16 %v2244, %v2240
        %v2281 = vpack.c.bf16 %v2245, %v2241
        %v2282 = vpack.c.bf16 %v2250, %v2246
        %v2283 = vpack.c.bf16 %v2251, %v2247
        %v2284 = vpack.c.bf16 %v2252, %v2248
        %v2285 = vpack.c.bf16 %v2253, %v2249
        %v2286 = vld [vmem:[%s333 + $0x10] sm:$0xf]
        %v2287 = vld [vmem:[%s333 + $0x30] sm:$0xf]
        %v2290 = vunpack.c.l.b16 %v2286
        %v2291 = vunpack.c.l.b16 %v2287
        %v2292 = vpack.c.b16 %v2291, %v2290
        %2294 = vmatprep.subr.bf16.mxu0 %v2255
        %2295 = vmatpush1.bf16.msra.mxu0 %v2254
        %2296 = vmatprep.subr.bf16.mxu0 %v2259
        %2297 = vmatpush1.bf16.msra.mxu0 %v2258
        %2298 = vmatprep.subr.bf16.mxu0 %v2263
        %2299 = vmatpush1.bf16.msra.mxu0 %v2262
        %2300 = vmatprep.subr.bf16.mxu0 %v2267
        %2301 = vmatpush1.bf16.msra.mxu0 %v2266
        %2302 = vmatprep.subr.bf16.mxu0 %v2271
        %2303 = vmatpush1.bf16.msra.mxu0 %v2270
        %2304 = vmatprep.subr.bf16.mxu0 %v2275
        %2305 = vmatpush1.bf16.msra.mxu0 %v2274
        %2306 = vmatprep.subr.bf16.mxu0 %v2279
        %2307 = vmatpush1.bf16.msra.mxu0 %v2278
        %2308 = vmatprep.subr.bf16.mxu0 %v2283
        %2309 = vmatpush1.bf16.msra.mxu0 %v2282
        %2310 = vmatprep.subr.bf16.mxu0 0
        %2311 = vmatpush1.bf16.msra.mxu0 0
        %2312 = vmatprep.subr.bf16.mxu0 0
        %2313 = vmatpush1.bf16.msra.mxu0 0
        %2314 = vmatprep.subr.bf16.mxu0 0
        %2315 = vmatpush1.bf16.msra.mxu0 0
        %2316 = vmatprep.subr.bf16.mxu0 0
        %2317 = vmatpush1.bf16.msra.mxu0 0
        %2318 = vmatprep.subr.bf16.mxu0 0
        %2319 = vmatpush1.bf16.msra.mxu0 0
        %2320 = vmatprep.subr.bf16.mxu0 0
        %2321 = vmatpush1.bf16.msra.mxu0 0
        %2322 = vmatprep.subr.bf16.mxu0 0
        %2323 = vmatpush1.bf16.msra.mxu0 0
        %2324 = vmatprep.subr.bf16.mxu0 0
        %2325 = vmatpush1.bf16.msra.mxu0 0
        %2326 = vmatprep.mubr.bf16.mxu0 0
        %2327 = vmatmul.mubr.bf16.gmra.mrb[0].mxu0 %v2292
        %v2328 = vpop.f32.mrb[0].mxu0
        %v2329 = vadd.f32 0.0, %v2328
        %v2330 = vpop.f32.mrb[0].mxu0
        %v2331 = vadd.f32 0.0, %v2330
        %v2332 = vpop.f32.mrb[0].mxu0
        %v2333 = vadd.f32 0.0, %v2332
        %v2334 = vpop.f32.mrb[0].mxu0
        %v2335 = vadd.f32 0.0, %v2334
        %2336 = vdwg.mxu0
        %2337 = vmatprep.subr.bf16.mxu0 %v2257
        %2338 = vmatpush1.bf16.msra.mxu0 %v2256
        %2339 = vmatprep.subr.bf16.mxu0 %v2261
        %2340 = vmatpush1.bf16.msra.mxu0 %v2260
        %2341 = vmatprep.subr.bf16.mxu0 %v2265
        %2342 = vmatpush1.bf16.msra.mxu0 %v2264
        %2343 = vmatprep.subr.bf16.mxu0 %v2269
        %2344 = vmatpush1.bf16.msra.mxu0 %v2268
        %2345 = vmatprep.subr.bf16.mxu0 %v2273
        %2346 = vmatpush1.bf16.msra.mxu0 %v2272
        %2347 = vmatprep.subr.bf16.mxu0 %v2277
        %2348 = vmatpush1.bf16.msra.mxu0 %v2276
        %2349 = vmatprep.subr.bf16.mxu0 %v2281
        %2350 = vmatpush1.bf16.msra.mxu0 %v2280
        %2351 = vmatprep.subr.bf16.mxu0 %v2285
        %2352 = vmatpush1.bf16.msra.mxu0 %v2284
        %2353 = vmatprep.subr.bf16.mxu0 0
        %2354 = vmatpush1.bf16.msra.mxu0 0
        %2355 = vmatprep.subr.bf16.mxu0 0
        %2356 = vmatpush1.bf16.msra.mxu0 0
        %2357 = vmatprep.subr.bf16.mxu0 0
        %2358 = vmatpush1.bf16.msra.mxu0 0
        %2359 = vmatprep.subr.bf16.mxu0 0
        %2360 = vmatpush1.bf16.msra.mxu0 0
        %2361 = vmatprep.subr.bf16.mxu0 0
        %2362 = vmatpush1.bf16.msra.mxu0 0
        %2363 = vmatprep.subr.bf16.mxu0 0
        %2364 = vmatpush1.bf16.msra.mxu0 0
        %2365 = vmatprep.subr.bf16.mxu0 0
        %2366 = vmatpush1.bf16.msra.mxu0 0
        %2367 = vmatprep.subr.bf16.mxu0 0
        %2368 = vmatpush1.bf16.msra.mxu0 0
        %2369 = vmatprep.mubr.bf16.mxu0 0
        %2370 = vmatmul.mubr.bf16.gmra.mrb[0].mxu0 %v2292
        %v2371 = vpop.f32.mrb[0].mxu0
        %v2372 = vadd.f32 0.0, %v2371
        %v2373 = vpop.f32.mrb[0].mxu0
        %v2374 = vadd.f32 0.0, %v2373
        %v2375 = vpop.f32.mrb[0].mxu0
        %v2376 = vadd.f32 0.0, %v2375
        %v2377 = vpop.f32.mrb[0].mxu0
        %v2378 = vadd.f32 0.0, %v2377
        %2379 = vdwg.mxu0
        %v2380 = vunpack.c.l.bf16 %v2286
        %v2381 = vunpack.c.l.bf16 %v2287
        %2382 = vadd.xlane.f32.xlu0 %v2380
        %v2383 = vpop.xlane.xlu0 %2382
        %2384 = vadd.xlane.f32.xlu0 %v2381
        %v2385 = vpop.xlane.xlu0 %2384
        %v2386 = vld [vmem:[#allocation2] sm:$0xff]
        %v2387 = vld [vmem:[#allocation2 + $0x8] sm:$0xff]
        %v2388 = vld [vmem:[#allocation2 + $0x10] sm:$0xff]
        %v2389 = vld [vmem:[#allocation2 + $0x18] sm:$0xff]
        %v2390 = vld [vmem:[#allocation2 + $0x20] sm:$0xff]
        %v2391 = vld [vmem:[#allocation2 + $0x28] sm:$0xff]
        %v2392 = vld [vmem:[#allocation2 + $0x30] sm:$0xff]
        %v2393 = vld [vmem:[#allocation2 + $0x38] sm:$0xff]
        %v2394 = vlaneseq
        %v2395 = vshrl.u32 %v2394, 7
        %v2396 = vsub.s32 4, %v2395
        %v2397 = vrot.slane %v438, %v2396
        %v2398 = vlaneseq
        %v2399 = vshrl.u32 %v2398, 7
        %v2400 = vsub.s32 4, %v2399
        %v2401 = vrot.slane %v439, %v2400
        %v2402 = vlaneseq
        %v2403 = vshrl.u32 %v2402, 7
        %v2404 = vsub.s32 4, %v2403
        %v2405 = vrot.slane %v440, %v2404
        %v2406 = vlaneseq
        %v2407 = vshrl.u32 %v2406, 7
        %v2408 = vsub.s32 4, %v2407
        %v2409 = vrot.slane %v441, %v2408
        %v2410 = vmul.f32 %v2397, %v2329
        %v2411 = vmul.f32 %v2401, %v2331
        %v2412 = vmul.f32 %v2405, %v2372
        %v2413 = vmul.f32 %v2409, %v2374
        %v2414 = vmul.f32 %v2397, %v2333
        %v2415 = vmul.f32 %v2401, %v2335
        %v2416 = vmul.f32 %v2405, %v2376
        %v2417 = vmul.f32 %v2409, %v2378
        %v2418 = vlaneseq
        %v2419 = vshrl.u32 %v2418, 7
        %v2420 = vsub.s32 4, %v2419
        %v2421 = vrot.slane %v442, %v2420
        %v2422 = vlaneseq
        %v2423 = vshrl.u32 %v2422, 7
        %v2424 = vsub.s32 4, %v2423
        %v2425 = vrot.slane %v443, %v2424
        %v2426 = vlaneseq
        %v2427 = vshrl.u32 %v2426, 7
        %v2428 = vsub.s32 4, %v2427
        %v2429 = vrot.slane %v444, %v2428
        %v2430 = vlaneseq
        %v2431 = vshrl.u32 %v2430, 7
        %v2432 = vsub.s32 4, %v2431
        %v2433 = vrot.slane %v445, %v2432
        %v2434 = vmul.f32 %v2421, %v2383
        %v2435 = vmul.f32 %v2425, %v2383
        %v2436 = vmul.f32 %v2429, %v2383
        %v2437 = vmul.f32 %v2433, %v2383
        %v2438 = vmul.f32 %v2421, %v2385
        %v2439 = vmul.f32 %v2425, %v2385
        %v2440 = vmul.f32 %v2429, %v2385
        %v2441 = vmul.f32 %v2433, %v2385
        %v2442 = vsub.f32 %v2410, %v2434
        %v2443 = vsub.f32 %v2411, %v2435
        %v2444 = vsub.f32 %v2412, %v2436
        %v2445 = vsub.f32 %v2413, %v2437
        %v2446 = vsub.f32 %v2414, %v2438
        %v2447 = vsub.f32 %v2415, %v2439
        %v2448 = vsub.f32 %v2416, %v2440
        %v2449 = vsub.f32 %v2417, %v2441
        %v2450 = vadd.f32 %v2386, %v2442
        %v2451 = vadd.f32 %v2387, %v2443
        %v2452 = vadd.f32 %v2388, %v2444
        %v2453 = vadd.f32 %v2389, %v2445
        %v2454 = vadd.f32 %v2390, %v2446
        %v2455 = vadd.f32 %v2391, %v2447
        %v2456 = vadd.f32 %v2392, %v2448
        %v2457 = vadd.f32 %v2393, %v2449
        %2458 = vst [vmem:[#allocation2] sm:$0xff] %v2450
        %2459 = vst [vmem:[#allocation2 + $0x8] sm:$0xff] %v2451
        %2460 = vst [vmem:[#allocation2 + $0x10] sm:$0xff] %v2452
        %2461 = vst [vmem:[#allocation2 + $0x18] sm:$0xff] %v2453
        %2462 = vst [vmem:[#allocation2 + $0x20] sm:$0xff] %v2454
        %2463 = vst [vmem:[#allocation2 + $0x28] sm:$0xff] %v2455
        %2464 = vst [vmem:[#allocation2 + $0x30] sm:$0xff] %v2456
        %2465 = vst [vmem:[#allocation2 + $0x38] sm:$0xff] %v2457
        %v2466 = vld [vmem:[%s341 + $0x140] sm:$0xff]
        %v2467 = vld [vmem:[%s341 + $0x148] sm:$0xff]
        %v2468 = vld [vmem:[%s341 + $0x150] sm:$0xff]
        %v2469 = vld [vmem:[%s341 + $0x158] sm:$0xff]
        %v2470 = vld [vmem:[%s341 + $0x160] sm:$0xff]
        %v2471 = vld [vmem:[%s341 + $0x168] sm:$0xff]
        %v2472 = vld [vmem:[%s341 + $0x170] sm:$0xff]
        %v2473 = vld [vmem:[%s341 + $0x178] sm:$0xff]
        %v2474 = vand.u32 %v2466, 15
        %v2475 = vand.u32 %v2467, 15
        %v2476 = vand.u32 %v2468, 15
        %v2477 = vand.u32 %v2469, 15
        %v2478 = vand.u32 %v2470, 15
        %v2479 = vand.u32 %v2471, 15
        %v2480 = vand.u32 %v2472, 15
        %v2481 = vand.u32 %v2473, 15
        %v2482 = vshra.s32 %v2466, 4
        %v2483 = vshra.s32 %v2467, 4
        %v2484 = vshra.s32 %v2468, 4
        %v2485 = vshra.s32 %v2469, 4
        %v2486 = vshra.s32 %v2470, 4
        %v2487 = vshra.s32 %v2471, 4
        %v2488 = vshra.s32 %v2472, 4
        %v2489 = vshra.s32 %v2473, 4
        %v2490 = vand.u32 %v2482, 15
        %v2491 = vand.u32 %v2483, 15
        %v2492 = vand.u32 %v2484, 15
        %v2493 = vand.u32 %v2485, 15
        %v2494 = vand.u32 %v2486, 15
        %v2495 = vand.u32 %v2487, 15
        %v2496 = vand.u32 %v2488, 15
        %v2497 = vand.u32 %v2489, 15
        %v2498 = vshra.s32 %v2466, 8
        %v2499 = vshra.s32 %v2467, 8
        %v2500 = vshra.s32 %v2468, 8
        %v2501 = vshra.s32 %v2469, 8
        %v2502 = vshra.s32 %v2470, 8
        %v2503 = vshra.s32 %v2471, 8
        %v2504 = vshra.s32 %v2472, 8
        %v2505 = vshra.s32 %v2473, 8
        %v2506 = vand.u32 %v2498, 15
        %v2507 = vand.u32 %v2499, 15
        %v2508 = vand.u32 %v2500, 15
        %v2509 = vand.u32 %v2501, 15
        %v2510 = vand.u32 %v2502, 15
        %v2511 = vand.u32 %v2503, 15
        %v2512 = vand.u32 %v2504, 15
        %v2513 = vand.u32 %v2505, 15
        %v2514 = vshra.s32 %v2466, 12
        %v2515 = vshra.s32 %v2467, 12
        %v2516 = vshra.s32 %v2468, 12
        %v2517 = vshra.s32 %v2469, 12
        %v2518 = vshra.s32 %v2470, 12
        %v2519 = vshra.s32 %v2471, 12
        %v2520 = vshra.s32 %v2472, 12
        %v2521 = vshra.s32 %v2473, 12
        %v2522 = vand.u32 %v2514, 15
        %v2523 = vand.u32 %v2515, 15
        %v2524 = vand.u32 %v2516, 15
        %v2525 = vand.u32 %v2517, 15
        %v2526 = vand.u32 %v2518, 15
        %v2527 = vand.u32 %v2519, 15
        %v2528 = vand.u32 %v2520, 15
        %v2529 = vand.u32 %v2521, 15
        %v2530 = vshra.s32 %v2466, 16
        %v2531 = vshra.s32 %v2467, 16
        %v2532 = vshra.s32 %v2468, 16
        %v2533 = vshra.s32 %v2469, 16
        %v2534 = vshra.s32 %v2470, 16
        %v2535 = vshra.s32 %v2471, 16
        %v2536 = vshra.s32 %v2472, 16
        %v2537 = vshra.s32 %v2473, 16
        %v2538 = vand.u32 %v2530, 15
        %v2539 = vand.u32 %v2531, 15
        %v2540 = vand.u32 %v2532, 15
        %v2541 = vand.u32 %v2533, 15
        %v2542 = vand.u32 %v2534, 15
        %v2543 = vand.u32 %v2535, 15
        %v2544 = vand.u32 %v2536, 15
        %v2545 = vand.u32 %v2537, 15
        %v2546 = vshra.s32 %v2466, 20
        %v2547 = vshra.s32 %v2467, 20
        %v2548 = vshra.s32 %v2468, 20
        %v2549 = vshra.s32 %v2469, 20
        %v2550 = vshra.s32 %v2470, 20
        %v2551 = vshra.s32 %v2471, 20
        %v2552 = vshra.s32 %v2472, 20
        %v2553 = vshra.s32 %v2473, 20
        %v2554 = vand.u32 %v2546, 15
        %v2555 = vand.u32 %v2547, 15
        %v2556 = vand.u32 %v2548, 15
        %v2557 = vand.u32 %v2549, 15
        %v2558 = vand.u32 %v2550, 15
        %v2559 = vand.u32 %v2551, 15
        %v2560 = vand.u32 %v2552, 15
        %v2561 = vand.u32 %v2553, 15
        %v2562 = vshra.s32 %v2466, 24
        %v2563 = vshra.s32 %v2467, 24
        %v2564 = vshra.s32 %v2468, 24
        %v2565 = vshra.s32 %v2469, 24
        %v2566 = vshra.s32 %v2470, 24
        %v2567 = vshra.s32 %v2471, 24
        %v2568 = vshra.s32 %v2472, 24
        %v2569 = vshra.s32 %v2473, 24
        %v2570 = vand.u32 %v2562, 15
        %v2571 = vand.u32 %v2563, 15
        %v2572 = vand.u32 %v2564, 15
        %v2573 = vand.u32 %v2565, 15
        %v2574 = vand.u32 %v2566, 15
        %v2575 = vand.u32 %v2567, 15
        %v2576 = vand.u32 %v2568, 15
        %v2577 = vand.u32 %v2569, 15
        %v2578 = vshra.s32 %v2466, 28
        %v2579 = vshra.s32 %v2467, 28
        %v2580 = vshra.s32 %v2468, 28
        %v2581 = vshra.s32 %v2469, 28
        %v2582 = vshra.s32 %v2470, 28
        %v2583 = vshra.s32 %v2471, 28
        %v2584 = vshra.s32 %v2472, 28
        %v2585 = vshra.s32 %v2473, 28
        %v2586 = vand.u32 %v2578, 15
        %v2587 = vand.u32 %v2579, 15
        %v2588 = vand.u32 %v2580, 15
        %v2589 = vand.u32 %v2581, 15
        %v2590 = vand.u32 %v2582, 15
        %v2591 = vand.u32 %v2583, 15
        %v2592 = vand.u32 %v2584, 15
        %v2593 = vand.u32 %v2585, 15
        %v2594 = vcvt.s32.f32 %v2474
        %v2595 = vcvt.s32.f32 %v2475
        %v2596 = vcvt.s32.f32 %v2476
        %v2597 = vcvt.s32.f32 %v2477
        %v2598 = vcvt.s32.f32 %v2478
        %v2599 = vcvt.s32.f32 %v2479
        %v2600 = vcvt.s32.f32 %v2480
        %v2601 = vcvt.s32.f32 %v2481
        %v2602 = vcvt.s32.f32 %v2490
        %v2603 = vcvt.s32.f32 %v2491
        %v2604 = vcvt.s32.f32 %v2492
        %v2605 = vcvt.s32.f32 %v2493
        %v2606 = vcvt.s32.f32 %v2494
        %v2607 = vcvt.s32.f32 %v2495
        %v2608 = vcvt.s32.f32 %v2496
        %v2609 = vcvt.s32.f32 %v2497
        %v2610 = vcvt.s32.f32 %v2506
        %v2611 = vcvt.s32.f32 %v2507
        %v2612 = vcvt.s32.f32 %v2508
        %v2613 = vcvt.s32.f32 %v2509
        %v2614 = vcvt.s32.f32 %v2510
        %v2615 = vcvt.s32.f32 %v2511
        %v2616 = vcvt.s32.f32 %v2512
        %v2617 = vcvt.s32.f32 %v2513
        %v2618 = vcvt.s32.f32 %v2522
        %v2619 = vcvt.s32.f32 %v2523
        %v2620 = vcvt.s32.f32 %v2524
        %v2621 = vcvt.s32.f32 %v2525
        %v2622 = vcvt.s32.f32 %v2526
        %v2623 = vcvt.s32.f32 %v2527
        %v2624 = vcvt.s32.f32 %v2528
        %v2625 = vcvt.s32.f32 %v2529
        %v2626 = vcvt.s32.f32 %v2538
        %v2627 = vcvt.s32.f32 %v2539
        %v2628 = vcvt.s32.f32 %v2540
        %v2629 = vcvt.s32.f32 %v2541
        %v2630 = vcvt.s32.f32 %v2542
        %v2631 = vcvt.s32.f32 %v2543
        %v2632 = vcvt.s32.f32 %v2544
        %v2633 = vcvt.s32.f32 %v2545
        %v2634 = vcvt.s32.f32 %v2554
        %v2635 = vcvt.s32.f32 %v2555
        %v2636 = vcvt.s32.f32 %v2556
        %v2637 = vcvt.s32.f32 %v2557
        %v2638 = vcvt.s32.f32 %v2558
        %v2639 = vcvt.s32.f32 %v2559
        %v2640 = vcvt.s32.f32 %v2560
        %v2641 = vcvt.s32.f32 %v2561
        %v2642 = vcvt.s32.f32 %v2570
        %v2643 = vcvt.s32.f32 %v2571
        %v2644 = vcvt.s32.f32 %v2572
        %v2645 = vcvt.s32.f32 %v2573
        %v2646 = vcvt.s32.f32 %v2574
        %v2647 = vcvt.s32.f32 %v2575
        %v2648 = vcvt.s32.f32 %v2576
        %v2649 = vcvt.s32.f32 %v2577
        %v2650 = vcvt.s32.f32 %v2586
        %v2651 = vcvt.s32.f32 %v2587
        %v2652 = vcvt.s32.f32 %v2588
        %v2653 = vcvt.s32.f32 %v2589
        %v2654 = vcvt.s32.f32 %v2590
        %v2655 = vcvt.s32.f32 %v2591
        %v2656 = vcvt.s32.f32 %v2592
        %v2657 = vcvt.s32.f32 %v2593
        %v2658 = vpack.c.bf16 %v2598, %v2594
        %v2659 = vpack.c.bf16 %v2599, %v2595
        %v2660 = vpack.c.bf16 %v2600, %v2596
        %v2661 = vpack.c.bf16 %v2601, %v2597
        %v2662 = vpack.c.bf16 %v2606, %v2602
        %v2663 = vpack.c.bf16 %v2607, %v2603
        %v2664 = vpack.c.bf16 %v2608, %v2604
        %v2665 = vpack.c.bf16 %v2609, %v2605
        %v2666 = vpack.c.bf16 %v2614, %v2610
        %v2667 = vpack.c.bf16 %v2615, %v2611
        %v2668 = vpack.c.bf16 %v2616, %v2612
        %v2669 = vpack.c.bf16 %v2617, %v2613
        %v2670 = vpack.c.bf16 %v2622, %v2618
        %v2671 = vpack.c.bf16 %v2623, %v2619
        %v2672 = vpack.c.bf16 %v2624, %v2620
        %v2673 = vpack.c.bf16 %v2625, %v2621
        %v2674 = vpack.c.bf16 %v2630, %v2626
        %v2675 = vpack.c.bf16 %v2631, %v2627
        %v2676 = vpack.c.bf16 %v2632, %v2628
        %v2677 = vpack.c.bf16 %v2633, %v2629
        %v2678 = vpack.c.bf16 %v2638, %v2634
        %v2679 = vpack.c.bf16 %v2639, %v2635
        %v2680 = vpack.c.bf16 %v2640, %v2636
        %v2681 = vpack.c.bf16 %v2641, %v2637
        %v2682 = vpack.c.bf16 %v2646, %v2642
        %v2683 = vpack.c.bf16 %v2647, %v2643
        %v2684 = vpack.c.bf16 %v2648, %v2644
        %v2685 = vpack.c.bf16 %v2649, %v2645
        %v2686 = vpack.c.bf16 %v2654, %v2650
        %v2687 = vpack.c.bf16 %v2655, %v2651
        %v2688 = vpack.c.bf16 %v2656, %v2652
        %v2689 = vpack.c.bf16 %v2657, %v2653
        %v2690 = vld [vmem:[%s333 + $0x14] sm:$0xf]
        %v2691 = vld [vmem:[%s333 + $0x34] sm:$0xf]
        %v2694 = vunpack.c.l.b16 %v2690
        %v2695 = vunpack.c.l.b16 %v2691
        %v2696 = vpack.c.b16 %v2695, %v2694
        %2698 = vmatprep.subr.bf16.mxu0 %v2659
        %2699 = vmatpush1.bf16.msra.mxu0 %v2658
        %2700 = vmatprep.subr.bf16.mxu0 %v2663
        %2701 = vmatpush1.bf16.msra.mxu0 %v2662
        %2702 = vmatprep.subr.bf16.mxu0 %v2667
        %2703 = vmatpush1.bf16.msra.mxu0 %v2666
        %2704 = vmatprep.subr.bf16.mxu0 %v2671
        %2705 = vmatpush1.bf16.msra.mxu0 %v2670
        %2706 = vmatprep.subr.bf16.mxu0 %v2675
        %2707 = vmatpush1.bf16.msra.mxu0 %v2674
        %2708 = vmatprep.subr.bf16.mxu0 %v2679
        %2709 = vmatpush1.bf16.msra.mxu0 %v2678
        %2710 = vmatprep.subr.bf16.mxu0 %v2683
        %2711 = vmatpush1.bf16.msra.mxu0 %v2682
        %2712 = vmatprep.subr.bf16.mxu0 %v2687
        %2713 = vmatpush1.bf16.msra.mxu0 %v2686
        %2714 = vmatprep.subr.bf16.mxu0 0
        %2715 = vmatpush1.bf16.msra.mxu0 0
        %2716 = vmatprep.subr.bf16.mxu0 0
        %2717 = vmatpush1.bf16.msra.mxu0 0
        %2718 = vmatprep.subr.bf16.mxu0 0
        %2719 = vmatpush1.bf16.msra.mxu0 0
        %2720 = vmatprep.subr.bf16.mxu0 0
        %2721 = vmatpush1.bf16.msra.mxu0 0
        %2722 = vmatprep.subr.bf16.mxu0 0
        %2723 = vmatpush1.bf16.msra.mxu0 0
        %2724 = vmatprep.subr.bf16.mxu0 0
        %2725 = vmatpush1.bf16.msra.mxu0 0
        %2726 = vmatprep.subr.bf16.mxu0 0
        %2727 = vmatpush1.bf16.msra.mxu0 0
        %2728 = vmatprep.subr.bf16.mxu0 0
        %2729 = vmatpush1.bf16.msra.mxu0 0
        %2730 = vmatprep.mubr.bf16.mxu0 0
        %2731 = vmatmul.mubr.bf16.gmra.mrb[0].mxu0 %v2696
        %v2732 = vpop.f32.mrb[0].mxu0
        %v2733 = vadd.f32 0.0, %v2732
        %v2734 = vpop.f32.mrb[0].mxu0
        %v2735 = vadd.f32 0.0, %v2734
        %v2736 = vpop.f32.mrb[0].mxu0
        %v2737 = vadd.f32 0.0, %v2736
        %v2738 = vpop.f32.mrb[0].mxu0
        %v2739 = vadd.f32 0.0, %v2738
        %2740 = vdwg.mxu0
        %2741 = vmatprep.subr.bf16.mxu0 %v2661
        %2742 = vmatpush1.bf16.msra.mxu0 %v2660
        %2743 = vmatprep.subr.bf16.mxu0 %v2665
        %2744 = vmatpush1.bf16.msra.mxu0 %v2664
        %2745 = vmatprep.subr.bf16.mxu0 %v2669
        %2746 = vmatpush1.bf16.msra.mxu0 %v2668
        %2747 = vmatprep.subr.bf16.mxu0 %v2673
        %2748 = vmatpush1.bf16.msra.mxu0 %v2672
        %2749 = vmatprep.subr.bf16.mxu0 %v2677
        %2750 = vmatpush1.bf16.msra.mxu0 %v2676
        %2751 = vmatprep.subr.bf16.mxu0 %v2681
        %2752 = vmatpush1.bf16.msra.mxu0 %v2680
        %2753 = vmatprep.subr.bf16.mxu0 %v2685
        %2754 = vmatpush1.bf16.msra.mxu0 %v2684
        %2755 = vmatprep.subr.bf16.mxu0 %v2689
        %2756 = vmatpush1.bf16.msra.mxu0 %v2688
        %2757 = vmatprep.subr.bf16.mxu0 0
        %2758 = vmatpush1.bf16.msra.mxu0 0
        %2759 = vmatprep.subr.bf16.mxu0 0
        %2760 = vmatpush1.bf16.msra.mxu0 0
        %2761 = vmatprep.subr.bf16.mxu0 0
        %2762 = vmatpush1.bf16.msra.mxu0 0
        %2763 = vmatprep.subr.bf16.mxu0 0
        %2764 = vmatpush1.bf16.msra.mxu0 0
        %2765 = vmatprep.subr.bf16.mxu0 0
        %2766 = vmatpush1.bf16.msra.mxu0 0
        %2767 = vmatprep.subr.bf16.mxu0 0
        %2768 = vmatpush1.bf16.msra.mxu0 0
        %2769 = vmatprep.subr.bf16.mxu0 0
        %2770 = vmatpush1.bf16.msra.mxu0 0
        %2771 = vmatprep.subr.bf16.mxu0 0
        %2772 = vmatpush1.bf16.msra.mxu0 0
        %2773 = vmatprep.mubr.bf16.mxu0 0
        %2774 = vmatmul.mubr.bf16.gmra.mrb[0].mxu0 %v2696
        %v2775 = vpop.f32.mrb[0].mxu0
        %v2776 = vadd.f32 0.0, %v2775
        %v2777 = vpop.f32.mrb[0].mxu0
        %v2778 = vadd.f32 0.0, %v2777
        %v2779 = vpop.f32.mrb[0].mxu0
        %v2780 = vadd.f32 0.0, %v2779
        %v2781 = vpop.f32.mrb[0].mxu0
        %v2782 = vadd.f32 0.0, %v2781
        %2783 = vdwg.mxu0
        %v2784 = vunpack.c.l.bf16 %v2690
        %v2785 = vunpack.c.l.bf16 %v2691
        %2786 = vadd.xlane.f32.xlu0 %v2784
        %v2787 = vpop.xlane.xlu0 %2786
        %2788 = vadd.xlane.f32.xlu0 %v2785
        %v2789 = vpop.xlane.xlu0 %2788
        %v2790 = vld [vmem:[#allocation2] sm:$0xff]
        %v2791 = vld [vmem:[#allocation2 + $0x8] sm:$0xff]
        %v2792 = vld [vmem:[#allocation2 + $0x10] sm:$0xff]
        %v2793 = vld [vmem:[#allocation2 + $0x18] sm:$0xff]
        %v2794 = vld [vmem:[#allocation2 + $0x20] sm:$0xff]
        %v2795 = vld [vmem:[#allocation2 + $0x28] sm:$0xff]
        %v2796 = vld [vmem:[#allocation2 + $0x30] sm:$0xff]
        %v2797 = vld [vmem:[#allocation2 + $0x38] sm:$0xff]
        %v2798 = vlaneseq
        %v2799 = vshrl.u32 %v2798, 7
        %v2800 = vsub.s32 5, %v2799
        %v2801 = vrot.slane %v438, %v2800
        %v2802 = vlaneseq
        %v2803 = vshrl.u32 %v2802, 7
        %v2804 = vsub.s32 5, %v2803
        %v2805 = vrot.slane %v439, %v2804
        %v2806 = vlaneseq
        %v2807 = vshrl.u32 %v2806, 7
        %v2808 = vsub.s32 5, %v2807
        %v2809 = vrot.slane %v440, %v2808
        %v2810 = vlaneseq
        %v2811 = vshrl.u32 %v2810, 7
        %v2812 = vsub.s32 5, %v2811
        %v2813 = vrot.slane %v441, %v2812
        %v2814 = vmul.f32 %v2801, %v2733
        %v2815 = vmul.f32 %v2805, %v2735
        %v2816 = vmul.f32 %v2809, %v2776
        %v2817 = vmul.f32 %v2813, %v2778
        %v2818 = vmul.f32 %v2801, %v2737
        %v2819 = vmul.f32 %v2805, %v2739
        %v2820 = vmul.f32 %v2809, %v2780
        %v2821 = vmul.f32 %v2813, %v2782
        %v2822 = vlaneseq
        %v2823 = vshrl.u32 %v2822, 7
        %v2824 = vsub.s32 5, %v2823
        %v2825 = vrot.slane %v442, %v2824
        %v2826 = vlaneseq
        %v2827 = vshrl.u32 %v2826, 7
        %v2828 = vsub.s32 5, %v2827
        %v2829 = vrot.slane %v443, %v2828
        %v2830 = vlaneseq
        %v2831 = vshrl.u32 %v2830, 7
        %v2832 = vsub.s32 5, %v2831
        %v2833 = vrot.slane %v444, %v2832
        %v2834 = vlaneseq
        %v2835 = vshrl.u32 %v2834, 7
        %v2836 = vsub.s32 5, %v2835
        %v2837 = vrot.slane %v445, %v2836
        %v2838 = vmul.f32 %v2825, %v2787
        %v2839 = vmul.f32 %v2829, %v2787
        %v2840 = vmul.f32 %v2833, %v2787
        %v2841 = vmul.f32 %v2837, %v2787
        %v2842 = vmul.f32 %v2825, %v2789
        %v2843 = vmul.f32 %v2829, %v2789
        %v2844 = vmul.f32 %v2833, %v2789
        %v2845 = vmul.f32 %v2837, %v2789
        %v2846 = vsub.f32 %v2814, %v2838
        %v2847 = vsub.f32 %v2815, %v2839
        %v2848 = vsub.f32 %v2816, %v2840
        %v2849 = vsub.f32 %v2817, %v2841
        %v2850 = vsub.f32 %v2818, %v2842
        %v2851 = vsub.f32 %v2819, %v2843
        %v2852 = vsub.f32 %v2820, %v2844
        %v2853 = vsub.f32 %v2821, %v2845
        %v2854 = vadd.f32 %v2790, %v2846
        %v2855 = vadd.f32 %v2791, %v2847
        %v2856 = vadd.f32 %v2792, %v2848
        %v2857 = vadd.f32 %v2793, %v2849
        %v2858 = vadd.f32 %v2794, %v2850
        %v2859 = vadd.f32 %v2795, %v2851
        %v2860 = vadd.f32 %v2796, %v2852
        %v2861 = vadd.f32 %v2797, %v2853
        %2862 = vst [vmem:[#allocation2] sm:$0xff] %v2854
        %2863 = vst [vmem:[#allocation2 + $0x8] sm:$0xff] %v2855
        %2864 = vst [vmem:[#allocation2 + $0x10] sm:$0xff] %v2856
        %2865 = vst [vmem:[#allocation2 + $0x18] sm:$0xff] %v2857
        %2866 = vst [vmem:[#allocation2 + $0x20] sm:$0xff] %v2858
        %2867 = vst [vmem:[#allocation2 + $0x28] sm:$0xff] %v2859
        %2868 = vst [vmem:[#allocation2 + $0x30] sm:$0xff] %v2860
        %2869 = vst [vmem:[#allocation2 + $0x38] sm:$0xff] %v2861
        %v2870 = vld [vmem:[%s341 + $0x180] sm:$0xff]
        %v2871 = vld [vmem:[%s341 + $0x188] sm:$0xff]
        %v2872 = vld [vmem:[%s341 + $0x190] sm:$0xff]
        %v2873 = vld [vmem:[%s341 + $0x198] sm:$0xff]
        %v2874 = vld [vmem:[%s341 + $0x1a0] sm:$0xff]
        %v2875 = vld [vmem:[%s341 + $0x1a8] sm:$0xff]
        %v2876 = vld [vmem:[%s341 + $0x1b0] sm:$0xff]
        %v2877 = vld [vmem:[%s341 + $0x1b8] sm:$0xff]
        %v2878 = vand.u32 %v2870, 15
        %v2879 = vand.u32 %v2871, 15
        %v2880 = vand.u32 %v2872, 15
        %v2881 = vand.u32 %v2873, 15
        %v2882 = vand.u32 %v2874, 15
        %v2883 = vand.u32 %v2875, 15
        %v2884 = vand.u32 %v2876, 15
        %v2885 = vand.u32 %v2877, 15
        %v2886 = vshra.s32 %v2870, 4
        %v2887 = vshra.s32 %v2871, 4
        %v2888 = vshra.s32 %v2872, 4
        %v2889 = vshra.s32 %v2873, 4
        %v2890 = vshra.s32 %v2874, 4
        %v2891 = vshra.s32 %v2875, 4
        %v2892 = vshra.s32 %v2876, 4
        %v2893 = vshra.s32 %v2877, 4
        %v2894 = vand.u32 %v2886, 15
        %v2895 = vand.u32 %v2887, 15
        %v2896 = vand.u32 %v2888, 15
        %v2897 = vand.u32 %v2889, 15
        %v2898 = vand.u32 %v2890, 15
        %v2899 = vand.u32 %v2891, 15
        %v2900 = vand.u32 %v2892, 15
        %v2901 = vand.u32 %v2893, 15
        %v2902 = vshra.s32 %v2870, 8
        %v2903 = vshra.s32 %v2871, 8
        %v2904 = vshra.s32 %v2872, 8
        %v2905 = vshra.s32 %v2873, 8
        %v2906 = vshra.s32 %v2874, 8
        %v2907 = vshra.s32 %v2875, 8
        %v2908 = vshra.s32 %v2876, 8
        %v2909 = vshra.s32 %v2877, 8
        %v2910 = vand.u32 %v2902, 15
        %v2911 = vand.u32 %v2903, 15
        %v2912 = vand.u32 %v2904, 15
        %v2913 = vand.u32 %v2905, 15
        %v2914 = vand.u32 %v2906, 15
        %v2915 = vand.u32 %v2907, 15
        %v2916 = vand.u32 %v2908, 15
        %v2917 = vand.u32 %v2909, 15
        %v2918 = vshra.s32 %v2870, 12
        %v2919 = vshra.s32 %v2871, 12
        %v2920 = vshra.s32 %v2872, 12
        %v2921 = vshra.s32 %v2873, 12
        %v2922 = vshra.s32 %v2874, 12
        %v2923 = vshra.s32 %v2875, 12
        %v2924 = vshra.s32 %v2876, 12
        %v2925 = vshra.s32 %v2877, 12
        %v2926 = vand.u32 %v2918, 15
        %v2927 = vand.u32 %v2919, 15
        %v2928 = vand.u32 %v2920, 15
        %v2929 = vand.u32 %v2921, 15
        %v2930 = vand.u32 %v2922, 15
        %v2931 = vand.u32 %v2923, 15
        %v2932 = vand.u32 %v2924, 15
        %v2933 = vand.u32 %v2925, 15
        %v2934 = vshra.s32 %v2870, 16
        %v2935 = vshra.s32 %v2871, 16
        %v2936 = vshra.s32 %v2872, 16
        %v2937 = vshra.s32 %v2873, 16
        %v2938 = vshra.s32 %v2874, 16
        %v2939 = vshra.s32 %v2875, 16
        %v2940 = vshra.s32 %v2876, 16
        %v2941 = vshra.s32 %v2877, 16
        %v2942 = vand.u32 %v2934, 15
        %v2943 = vand.u32 %v2935, 15
        %v2944 = vand.u32 %v2936, 15
        %v2945 = vand.u32 %v2937, 15
        %v2946 = vand.u32 %v2938, 15
        %v2947 = vand.u32 %v2939, 15
        %v2948 = vand.u32 %v2940, 15
        %v2949 = vand.u32 %v2941, 15
        %v2950 = vshra.s32 %v2870, 20
        %v2951 = vshra.s32 %v2871, 20
        %v2952 = vshra.s32 %v2872, 20
        %v2953 = vshra.s32 %v2873, 20
        %v2954 = vshra.s32 %v2874, 20
        %v2955 = vshra.s32 %v2875, 20
        %v2956 = vshra.s32 %v2876, 20
        %v2957 = vshra.s32 %v2877, 20
        %v2958 = vand.u32 %v2950, 15
        %v2959 = vand.u32 %v2951, 15
        %v2960 = vand.u32 %v2952, 15
        %v2961 = vand.u32 %v2953, 15
        %v2962 = vand.u32 %v2954, 15
        %v2963 = vand.u32 %v2955, 15
        %v2964 = vand.u32 %v2956, 15
        %v2965 = vand.u32 %v2957, 15
        %v2966 = vshra.s32 %v2870, 24
        %v2967 = vshra.s32 %v2871, 24
        %v2968 = vshra.s32 %v2872, 24
        %v2969 = vshra.s32 %v2873, 24
        %v2970 = vshra.s32 %v2874, 24
        %v2971 = vshra.s32 %v2875, 24
        %v2972 = vshra.s32 %v2876, 24
        %v2973 = vshra.s32 %v2877, 24
        %v2974 = vand.u32 %v2966, 15
        %v2975 = vand.u32 %v2967, 15
        %v2976 = vand.u32 %v2968, 15
        %v2977 = vand.u32 %v2969, 15
        %v2978 = vand.u32 %v2970, 15
        %v2979 = vand.u32 %v2971, 15
        %v2980 = vand.u32 %v2972, 15
        %v2981 = vand.u32 %v2973, 15
        %v2982 = vshra.s32 %v2870, 28
        %v2983 = vshra.s32 %v2871, 28
        %v2984 = vshra.s32 %v2872, 28
        %v2985 = vshra.s32 %v2873, 28
        %v2986 = vshra.s32 %v2874, 28
        %v2987 = vshra.s32 %v2875, 28
        %v2988 = vshra.s32 %v2876, 28
        %v2989 = vshra.s32 %v2877, 28
        %v2990 = vand.u32 %v2982, 15
        %v2991 = vand.u32 %v2983, 15
        %v2992 = vand.u32 %v2984, 15
        %v2993 = vand.u32 %v2985, 15
        %v2994 = vand.u32 %v2986, 15
        %v2995 = vand.u32 %v2987, 15
        %v2996 = vand.u32 %v2988, 15
        %v2997 = vand.u32 %v2989, 15
        %v2998 = vcvt.s32.f32 %v2878
        %v2999 = vcvt.s32.f32 %v2879
        %v3000 = vcvt.s32.f32 %v2880
        %v3001 = vcvt.s32.f32 %v2881
        %v3002 = vcvt.s32.f32 %v2882
        %v3003 = vcvt.s32.f32 %v2883
        %v3004 = vcvt.s32.f32 %v2884
        %v3005 = vcvt.s32.f32 %v2885
        %v3006 = vcvt.s32.f32 %v2894
        %v3007 = vcvt.s32.f32 %v2895
        %v3008 = vcvt.s32.f32 %v2896
        %v3009 = vcvt.s32.f32 %v2897
        %v3010 = vcvt.s32.f32 %v2898
        %v3011 = vcvt.s32.f32 %v2899
        %v3012 = vcvt.s32.f32 %v2900
        %v3013 = vcvt.s32.f32 %v2901
        %v3014 = vcvt.s32.f32 %v2910
        %v3015 = vcvt.s32.f32 %v2911
        %v3016 = vcvt.s32.f32 %v2912
        %v3017 = vcvt.s32.f32 %v2913
        %v3018 = vcvt.s32.f32 %v2914
        %v3019 = vcvt.s32.f32 %v2915
        %v3020 = vcvt.s32.f32 %v2916
        %v3021 = vcvt.s32.f32 %v2917
        %v3022 = vcvt.s32.f32 %v2926
        %v3023 = vcvt.s32.f32 %v2927
        %v3024 = vcvt.s32.f32 %v2928
        %v3025 = vcvt.s32.f32 %v2929
        %v3026 = vcvt.s32.f32 %v2930
        %v3027 = vcvt.s32.f32 %v2931
        %v3028 = vcvt.s32.f32 %v2932
        %v3029 = vcvt.s32.f32 %v2933
        %v3030 = vcvt.s32.f32 %v2942
        %v3031 = vcvt.s32.f32 %v2943
        %v3032 = vcvt.s32.f32 %v2944
        %v3033 = vcvt.s32.f32 %v2945
        %v3034 = vcvt.s32.f32 %v2946
        %v3035 = vcvt.s32.f32 %v2947
        %v3036 = vcvt.s32.f32 %v2948
        %v3037 = vcvt.s32.f32 %v2949
        %v3038 = vcvt.s32.f32 %v2958
        %v3039 = vcvt.s32.f32 %v2959
        %v3040 = vcvt.s32.f32 %v2960
        %v3041 = vcvt.s32.f32 %v2961
        %v3042 = vcvt.s32.f32 %v2962
        %v3043 = vcvt.s32.f32 %v2963
        %v3044 = vcvt.s32.f32 %v2964
        %v3045 = vcvt.s32.f32 %v2965
        %v3046 = vcvt.s32.f32 %v2974
        %v3047 = vcvt.s32.f32 %v2975
        %v3048 = vcvt.s32.f32 %v2976
        %v3049 = vcvt.s32.f32 %v2977
        %v3050 = vcvt.s32.f32 %v2978
        %v3051 = vcvt.s32.f32 %v2979
        %v3052 = vcvt.s32.f32 %v2980
        %v3053 = vcvt.s32.f32 %v2981
        %v3054 = vcvt.s32.f32 %v2990
        %v3055 = vcvt.s32.f32 %v2991
        %v3056 = vcvt.s32.f32 %v2992
        %v3057 = vcvt.s32.f32 %v2993
        %v3058 = vcvt.s32.f32 %v2994
        %v3059 = vcvt.s32.f32 %v2995
        %v3060 = vcvt.s32.f32 %v2996
        %v3061 = vcvt.s32.f32 %v2997
        %v3062 = vpack.c.bf16 %v3002, %v2998
        %v3063 = vpack.c.bf16 %v3003, %v2999
        %v3064 = vpack.c.bf16 %v3004, %v3000
        %v3065 = vpack.c.bf16 %v3005, %v3001
        %v3066 = vpack.c.bf16 %v3010, %v3006
        %v3067 = vpack.c.bf16 %v3011, %v3007
        %v3068 = vpack.c.bf16 %v3012, %v3008
        %v3069 = vpack.c.bf16 %v3013, %v3009
        %v3070 = vpack.c.bf16 %v3018, %v3014
        %v3071 = vpack.c.bf16 %v3019, %v3015
        %v3072 = vpack.c.bf16 %v3020, %v3016
        %v3073 = vpack.c.bf16 %v3021, %v3017
        %v3074 = vpack.c.bf16 %v3026, %v3022
        %v3075 = vpack.c.bf16 %v3027, %v3023
        %v3076 = vpack.c.bf16 %v3028, %v3024
        %v3077 = vpack.c.bf16 %v3029, %v3025
        %v3078 = vpack.c.bf16 %v3034, %v3030
        %v3079 = vpack.c.bf16 %v3035, %v3031
        %v3080 = vpack.c.bf16 %v3036, %v3032
        %v3081 = vpack.c.bf16 %v3037, %v3033
        %v3082 = vpack.c.bf16 %v3042, %v3038
        %v3083 = vpack.c.bf16 %v3043, %v3039
        %v3084 = vpack.c.bf16 %v3044, %v3040
        %v3085 = vpack.c.bf16 %v3045, %v3041
        %v3086 = vpack.c.bf16 %v3050, %v3046
        %v3087 = vpack.c.bf16 %v3051, %v3047
        %v3088 = vpack.c.bf16 %v3052, %v3048
        %v3089 = vpack.c.bf16 %v3053, %v3049
        %v3090 = vpack.c.bf16 %v3058, %v3054
        %v3091 = vpack.c.bf16 %v3059, %v3055
        %v3092 = vpack.c.bf16 %v3060, %v3056
        %v3093 = vpack.c.bf16 %v3061, %v3057
        %v3094 = vld [vmem:[%s333 + $0x18] sm:$0xf]
        %v3095 = vld [vmem:[%s333 + $0x38] sm:$0xf]
        %v3098 = vunpack.c.l.b16 %v3094
        %v3099 = vunpack.c.l.b16 %v3095
        %v3100 = vpack.c.b16 %v3099, %v3098
        %3102 = vmatprep.subr.bf16.mxu0 %v3063
        %3103 = vmatpush1.bf16.msra.mxu0 %v3062
        %3104 = vmatprep.subr.bf16.mxu0 %v3067
        %3105 = vmatpush1.bf16.msra.mxu0 %v3066
        %3106 = vmatprep.subr.bf16.mxu0 %v3071
        %3107 = vmatpush1.bf16.msra.mxu0 %v3070
        %3108 = vmatprep.subr.bf16.mxu0 %v3075
        %3109 = vmatpush1.bf16.msra.mxu0 %v3074
        %3110 = vmatprep.subr.bf16.mxu0 %v3079
        %3111 = vmatpush1.bf16.msra.mxu0 %v3078
        %3112 = vmatprep.subr.bf16.mxu0 %v3083
        %3113 = vmatpush1.bf16.msra.mxu0 %v3082
        %3114 = vmatprep.subr.bf16.mxu0 %v3087
        %3115 = vmatpush1.bf16.msra.mxu0 %v3086
        %3116 = vmatprep.subr.bf16.mxu0 %v3091
        %3117 = vmatpush1.bf16.msra.mxu0 %v3090
        %3118 = vmatprep.subr.bf16.mxu0 0
        %3119 = vmatpush1.bf16.msra.mxu0 0
        %3120 = vmatprep.subr.bf16.mxu0 0
        %3121 = vmatpush1.bf16.msra.mxu0 0
        %3122 = vmatprep.subr.bf16.mxu0 0
        %3123 = vmatpush1.bf16.msra.mxu0 0
        %3124 = vmatprep.subr.bf16.mxu0 0
        %3125 = vmatpush1.bf16.msra.mxu0 0
        %3126 = vmatprep.subr.bf16.mxu0 0
        %3127 = vmatpush1.bf16.msra.mxu0 0
        %3128 = vmatprep.subr.bf16.mxu0 0
        %3129 = vmatpush1.bf16.msra.mxu0 0
        %3130 = vmatprep.subr.bf16.mxu0 0
        %3131 = vmatpush1.bf16.msra.mxu0 0
        %3132 = vmatprep.subr.bf16.mxu0 0
        %3133 = vmatpush1.bf16.msra.mxu0 0
        %3134 = vmatprep.mubr.bf16.mxu0 0
        %3135 = vmatmul.mubr.bf16.gmra.mrb[0].mxu0 %v3100
        %v3136 = vpop.f32.mrb[0].mxu0
        %v3137 = vadd.f32 0.0, %v3136
        %v3138 = vpop.f32.mrb[0].mxu0
        %v3139 = vadd.f32 0.0, %v3138
        %v3140 = vpop.f32.mrb[0].mxu0
        %v3141 = vadd.f32 0.0, %v3140
        %v3142 = vpop.f32.mrb[0].mxu0
        %v3143 = vadd.f32 0.0, %v3142
        %3144 = vdwg.mxu0
        %3145 = vmatprep.subr.bf16.mxu0 %v3065
        %3146 = vmatpush1.bf16.msra.mxu0 %v3064
        %3147 = vmatprep.subr.bf16.mxu0 %v3069
        %3148 = vmatpush1.bf16.msra.mxu0 %v3068
        %3149 = vmatprep.subr.bf16.mxu0 %v3073
        %3150 = vmatpush1.bf16.msra.mxu0 %v3072
        %3151 = vmatprep.subr.bf16.mxu0 %v3077
        %3152 = vmatpush1.bf16.msra.mxu0 %v3076
        %3153 = vmatprep.subr.bf16.mxu0 %v3081
        %3154 = vmatpush1.bf16.msra.mxu0 %v3080
        %3155 = vmatprep.subr.bf16.mxu0 %v3085
        %3156 = vmatpush1.bf16.msra.mxu0 %v3084
        %3157 = vmatprep.subr.bf16.mxu0 %v3089
        %3158 = vmatpush1.bf16.msra.mxu0 %v3088
        %3159 = vmatprep.subr.bf16.mxu0 %v3093
        %3160 = vmatpush1.bf16.msra.mxu0 %v3092
        %3161 = vmatprep.subr.bf16.mxu0 0
        %3162 = vmatpush1.bf16.msra.mxu0 0
        %3163 = vmatprep.subr.bf16.mxu0 0
        %3164 = vmatpush1.bf16.msra.mxu0 0
        %3165 = vmatprep.subr.bf16.mxu0 0
        %3166 = vmatpush1.bf16.msra.mxu0 0
        %3167 = vmatprep.subr.bf16.mxu0 0
        %3168 = vmatpush1.bf16.msra.mxu0 0
        %3169 = vmatprep.subr.bf16.mxu0 0
        %3170 = vmatpush1.bf16.msra.mxu0 0
        %3171 = vmatprep.subr.bf16.mxu0 0
        %3172 = vmatpush1.bf16.msra.mxu0 0
        %3173 = vmatprep.subr.bf16.mxu0 0
        %3174 = vmatpush1.bf16.msra.mxu0 0
        %3175 = vmatprep.subr.bf16.mxu0 0
        %3176 = vmatpush1.bf16.msra.mxu0 0
        %3177 = vmatprep.mubr.bf16.mxu0 0
        %3178 = vmatmul.mubr.bf16.gmra.mrb[0].mxu0 %v3100
        %v3179 = vpop.f32.mrb[0].mxu0
        %v3180 = vadd.f32 0.0, %v3179
        %v3181 = vpop.f32.mrb[0].mxu0
        %v3182 = vadd.f32 0.0, %v3181
        %v3183 = vpop.f32.mrb[0].mxu0
        %v3184 = vadd.f32 0.0, %v3183
        %v3185 = vpop.f32.mrb[0].mxu0
        %v3186 = vadd.f32 0.0, %v3185
        %3187 = vdwg.mxu0
        %v3188 = vunpack.c.l.bf16 %v3094
        %v3189 = vunpack.c.l.bf16 %v3095
        %3190 = vadd.xlane.f32.xlu0 %v3188
        %v3191 = vpop.xlane.xlu0 %3190
        %3192 = vadd.xlane.f32.xlu0 %v3189
        %v3193 = vpop.xlane.xlu0 %3192
        %v3194 = vld [vmem:[#allocation2] sm:$0xff]
        %v3195 = vld [vmem:[#allocation2 + $0x8] sm:$0xff]
        %v3196 = vld [vmem:[#allocation2 + $0x10] sm:$0xff]
        %v3197 = vld [vmem:[#allocation2 + $0x18] sm:$0xff]
        %v3198 = vld [vmem:[#allocation2 + $0x20] sm:$0xff]
        %v3199 = vld [vmem:[#allocation2 + $0x28] sm:$0xff]
        %v3200 = vld [vmem:[#allocation2 + $0x30] sm:$0xff]
        %v3201 = vld [vmem:[#allocation2 + $0x38] sm:$0xff]
        %v3202 = vlaneseq
        %v3203 = vshrl.u32 %v3202, 7
        %v3204 = vsub.s32 6, %v3203
        %v3205 = vrot.slane %v438, %v3204
        %v3206 = vlaneseq
        %v3207 = vshrl.u32 %v3206, 7
        %v3208 = vsub.s32 6, %v3207
        %v3209 = vrot.slane %v439, %v3208
        %v3210 = vlaneseq
        %v3211 = vshrl.u32 %v3210, 7
        %v3212 = vsub.s32 6, %v3211
        %v3213 = vrot.slane %v440, %v3212
        %v3214 = vlaneseq
        %v3215 = vshrl.u32 %v3214, 7
        %v3216 = vsub.s32 6, %v3215
        %v3217 = vrot.slane %v441, %v3216
        %v3218 = vmul.f32 %v3205, %v3137
        %v3219 = vmul.f32 %v3209, %v3139
        %v3220 = vmul.f32 %v3213, %v3180
        %v3221 = vmul.f32 %v3217, %v3182
        %v3222 = vmul.f32 %v3205, %v3141
        %v3223 = vmul.f32 %v3209, %v3143
        %v3224 = vmul.f32 %v3213, %v3184
        %v3225 = vmul.f32 %v3217, %v3186
        %v3226 = vlaneseq
        %v3227 = vshrl.u32 %v3226, 7
        %v3228 = vsub.s32 6, %v3227
        %v3229 = vrot.slane %v442, %v3228
        %v3230 = vlaneseq
        %v3231 = vshrl.u32 %v3230, 7
        %v3232 = vsub.s32 6, %v3231
        %v3233 = vrot.slane %v443, %v3232
        %v3234 = vlaneseq
        %v3235 = vshrl.u32 %v3234, 7
        %v3236 = vsub.s32 6, %v3235
        %v3237 = vrot.slane %v444, %v3236
        %v3238 = vlaneseq
        %v3239 = vshrl.u32 %v3238, 7
        %v3240 = vsub.s32 6, %v3239
        %v3241 = vrot.slane %v445, %v3240
        %v3242 = vmul.f32 %v3229, %v3191
        %v3243 = vmul.f32 %v3233, %v3191
        %v3244 = vmul.f32 %v3237, %v3191
        %v3245 = vmul.f32 %v3241, %v3191
        %v3246 = vmul.f32 %v3229, %v3193
        %v3247 = vmul.f32 %v3233, %v3193
        %v3248 = vmul.f32 %v3237, %v3193
        %v3249 = vmul.f32 %v3241, %v3193
        %v3250 = vsub.f32 %v3218, %v3242
        %v3251 = vsub.f32 %v3219, %v3243
        %v3252 = vsub.f32 %v3220, %v3244
        %v3253 = vsub.f32 %v3221, %v3245
        %v3254 = vsub.f32 %v3222, %v3246
        %v3255 = vsub.f32 %v3223, %v3247
        %v3256 = vsub.f32 %v3224, %v3248
        %v3257 = vsub.f32 %v3225, %v3249
        %v3258 = vadd.f32 %v3194, %v3250
        %v3259 = vadd.f32 %v3195, %v3251
        %v3260 = vadd.f32 %v3196, %v3252
        %v3261 = vadd.f32 %v3197, %v3253
        %v3262 = vadd.f32 %v3198, %v3254
        %v3263 = vadd.f32 %v3199, %v3255
        %v3264 = vadd.f32 %v3200, %v3256
        %v3265 = vadd.f32 %v3201, %v3257
        %3266 = vst [vmem:[#allocation2] sm:$0xff] %v3258
        %3267 = vst [vmem:[#allocation2 + $0x8] sm:$0xff] %v3259
        %3268 = vst [vmem:[#allocation2 + $0x10] sm:$0xff] %v3260
        %3269 = vst [vmem:[#allocation2 + $0x18] sm:$0xff] %v3261
        %3270 = vst [vmem:[#allocation2 + $0x20] sm:$0xff] %v3262
        %3271 = vst [vmem:[#allocation2 + $0x28] sm:$0xff] %v3263
        %3272 = vst [vmem:[#allocation2 + $0x30] sm:$0xff] %v3264
        %3273 = vst [vmem:[#allocation2 + $0x38] sm:$0xff] %v3265
        %v3274 = vld [vmem:[%s341 + $0x1c0] sm:$0xff]
        %v3275 = vld [vmem:[%s341 + $0x1c8] sm:$0xff]
        %v3276 = vld [vmem:[%s341 + $0x1d0] sm:$0xff]
        %v3277 = vld [vmem:[%s341 + $0x1d8] sm:$0xff]
        %v3278 = vld [vmem:[%s341 + $0x1e0] sm:$0xff]
        %v3279 = vld [vmem:[%s341 + $0x1e8] sm:$0xff]
        %v3280 = vld [vmem:[%s341 + $0x1f0] sm:$0xff]
        %v3281 = vld [vmem:[%s341 + $0x1f8] sm:$0xff]
        %v3282 = vand.u32 %v3274, 15
        %v3283 = vand.u32 %v3275, 15
        %v3284 = vand.u32 %v3276, 15
        %v3285 = vand.u32 %v3277, 15
        %v3286 = vand.u32 %v3278, 15
        %v3287 = vand.u32 %v3279, 15
        %v3288 = vand.u32 %v3280, 15
        %v3289 = vand.u32 %v3281, 15
        %v3290 = vshra.s32 %v3274, 4
        %v3291 = vshra.s32 %v3275, 4
        %v3292 = vshra.s32 %v3276, 4
        %v3293 = vshra.s32 %v3277, 4
        %v3294 = vshra.s32 %v3278, 4
        %v3295 = vshra.s32 %v3279, 4
        %v3296 = vshra.s32 %v3280, 4
        %v3297 = vshra.s32 %v3281, 4
        %v3298 = vand.u32 %v3290, 15
        %v3299 = vand.u32 %v3291, 15
        %v3300 = vand.u32 %v3292, 15
        %v3301 = vand.u32 %v3293, 15
        %v3302 = vand.u32 %v3294, 15
        %v3303 = vand.u32 %v3295, 15
        %v3304 = vand.u32 %v3296, 15
        %v3305 = vand.u32 %v3297, 15
        %v3306 = vshra.s32 %v3274, 8
        %v3307 = vshra.s32 %v3275, 8
        %v3308 = vshra.s32 %v3276, 8
        %v3309 = vshra.s32 %v3277, 8
        %v3310 = vshra.s32 %v3278, 8
        %v3311 = vshra.s32 %v3279, 8
        %v3312 = vshra.s32 %v3280, 8
        %v3313 = vshra.s32 %v3281, 8
        %v3314 = vand.u32 %v3306, 15
        %v3315 = vand.u32 %v3307, 15
        %v3316 = vand.u32 %v3308, 15
        %v3317 = vand.u32 %v3309, 15
        %v3318 = vand.u32 %v3310, 15
        %v3319 = vand.u32 %v3311, 15
        %v3320 = vand.u32 %v3312, 15
        %v3321 = vand.u32 %v3313, 15
        %v3322 = vshra.s32 %v3274, 12
        %v3323 = vshra.s32 %v3275, 12
        %v3324 = vshra.s32 %v3276, 12
        %v3325 = vshra.s32 %v3277, 12
        %v3326 = vshra.s32 %v3278, 12
        %v3327 = vshra.s32 %v3279, 12
        %v3328 = vshra.s32 %v3280, 12
        %v3329 = vshra.s32 %v3281, 12
        %v3330 = vand.u32 %v3322, 15
        %v3331 = vand.u32 %v3323, 15
        %v3332 = vand.u32 %v3324, 15
        %v3333 = vand.u32 %v3325, 15
        %v3334 = vand.u32 %v3326, 15
        %v3335 = vand.u32 %v3327, 15
        %v3336 = vand.u32 %v3328, 15
        %v3337 = vand.u32 %v3329, 15
        %v3338 = vshra.s32 %v3274, 16
        %v3339 = vshra.s32 %v3275, 16
        %v3340 = vshra.s32 %v3276, 16
        %v3341 = vshra.s32 %v3277, 16
        %v3342 = vshra.s32 %v3278, 16
        %v3343 = vshra.s32 %v3279, 16
        %v3344 = vshra.s32 %v3280, 16
        %v3345 = vshra.s32 %v3281, 16
        %v3346 = vand.u32 %v3338, 15
        %v3347 = vand.u32 %v3339, 15
        %v3348 = vand.u32 %v3340, 15
        %v3349 = vand.u32 %v3341, 15
        %v3350 = vand.u32 %v3342, 15
        %v3351 = vand.u32 %v3343, 15
        %v3352 = vand.u32 %v3344, 15
        %v3353 = vand.u32 %v3345, 15
        %v3354 = vshra.s32 %v3274, 20
        %v3355 = vshra.s32 %v3275, 20
        %v3356 = vshra.s32 %v3276, 20
        %v3357 = vshra.s32 %v3277, 20
        %v3358 = vshra.s32 %v3278, 20
        %v3359 = vshra.s32 %v3279, 20
        %v3360 = vshra.s32 %v3280, 20
        %v3361 = vshra.s32 %v3281, 20
        %v3362 = vand.u32 %v3354, 15
        %v3363 = vand.u32 %v3355, 15
        %v3364 = vand.u32 %v3356, 15
        %v3365 = vand.u32 %v3357, 15
        %v3366 = vand.u32 %v3358, 15
        %v3367 = vand.u32 %v3359, 15
        %v3368 = vand.u32 %v3360, 15
        %v3369 = vand.u32 %v3361, 15
        %v3370 = vshra.s32 %v3274, 24
        %v3371 = vshra.s32 %v3275, 24
        %v3372 = vshra.s32 %v3276, 24
        %v3373 = vshra.s32 %v3277, 24
        %v3374 = vshra.s32 %v3278, 24
        %v3375 = vshra.s32 %v3279, 24
        %v3376 = vshra.s32 %v3280, 24
        %v3377 = vshra.s32 %v3281, 24
        %v3378 = vand.u32 %v3370, 15
        %v3379 = vand.u32 %v3371, 15
        %v3380 = vand.u32 %v3372, 15
        %v3381 = vand.u32 %v3373, 15
        %v3382 = vand.u32 %v3374, 15
        %v3383 = vand.u32 %v3375, 15
        %v3384 = vand.u32 %v3376, 15
        %v3385 = vand.u32 %v3377, 15
        %v3386 = vshra.s32 %v3274, 28
        %v3387 = vshra.s32 %v3275, 28
        %v3388 = vshra.s32 %v3276, 28
        %v3389 = vshra.s32 %v3277, 28
        %v3390 = vshra.s32 %v3278, 28
        %v3391 = vshra.s32 %v3279, 28
        %v3392 = vshra.s32 %v3280, 28
        %v3393 = vshra.s32 %v3281, 28
        %v3394 = vand.u32 %v3386, 15
        %v3395 = vand.u32 %v3387, 15
        %v3396 = vand.u32 %v3388, 15
        %v3397 = vand.u32 %v3389, 15
        %v3398 = vand.u32 %v3390, 15
        %v3399 = vand.u32 %v3391, 15
        %v3400 = vand.u32 %v3392, 15
        %v3401 = vand.u32 %v3393, 15
        %v3402 = vcvt.s32.f32 %v3282
        %v3403 = vcvt.s32.f32 %v3283
        %v3404 = vcvt.s32.f32 %v3284
        %v3405 = vcvt.s32.f32 %v3285
        %v3406 = vcvt.s32.f32 %v3286
        %v3407 = vcvt.s32.f32 %v3287
        %v3408 = vcvt.s32.f32 %v3288
        %v3409 = vcvt.s32.f32 %v3289
        %v3410 = vcvt.s32.f32 %v3298
        %v3411 = vcvt.s32.f32 %v3299
        %v3412 = vcvt.s32.f32 %v3300
        %v3413 = vcvt.s32.f32 %v3301
        %v3414 = vcvt.s32.f32 %v3302
        %v3415 = vcvt.s32.f32 %v3303
        %v3416 = vcvt.s32.f32 %v3304
        %v3417 = vcvt.s32.f32 %v3305
        %v3418 = vcvt.s32.f32 %v3314
        %v3419 = vcvt.s32.f32 %v3315
        %v3420 = vcvt.s32.f32 %v3316
        %v3421 = vcvt.s32.f32 %v3317
        %v3422 = vcvt.s32.f32 %v3318
        %v3423 = vcvt.s32.f32 %v3319
        %v3424 = vcvt.s32.f32 %v3320
        %v3425 = vcvt.s32.f32 %v3321
        %v3426 = vcvt.s32.f32 %v3330
        %v3427 = vcvt.s32.f32 %v3331
        %v3428 = vcvt.s32.f32 %v3332
        %v3429 = vcvt.s32.f32 %v3333
        %v3430 = vcvt.s32.f32 %v3334
        %v3431 = vcvt.s32.f32 %v3335
        %v3432 = vcvt.s32.f32 %v3336
        %v3433 = vcvt.s32.f32 %v3337
        %v3434 = vcvt.s32.f32 %v3346
        %v3435 = vcvt.s32.f32 %v3347
        %v3436 = vcvt.s32.f32 %v3348
        %v3437 = vcvt.s32.f32 %v3349
        %v3438 = vcvt.s32.f32 %v3350
        %v3439 = vcvt.s32.f32 %v3351
        %v3440 = vcvt.s32.f32 %v3352
        %v3441 = vcvt.s32.f32 %v3353
        %v3442 = vcvt.s32.f32 %v3362
        %v3443 = vcvt.s32.f32 %v3363
        %v3444 = vcvt.s32.f32 %v3364
        %v3445 = vcvt.s32.f32 %v3365
        %v3446 = vcvt.s32.f32 %v3366
        %v3447 = vcvt.s32.f32 %v3367
        %v3448 = vcvt.s32.f32 %v3368
        %v3449 = vcvt.s32.f32 %v3369
        %v3450 = vcvt.s32.f32 %v3378
        %v3451 = vcvt.s32.f32 %v3379
        %v3452 = vcvt.s32.f32 %v3380
        %v3453 = vcvt.s32.f32 %v3381
        %v3454 = vcvt.s32.f32 %v3382
        %v3455 = vcvt.s32.f32 %v3383
        %v3456 = vcvt.s32.f32 %v3384
        %v3457 = vcvt.s32.f32 %v3385
        %v3458 = vcvt.s32.f32 %v3394
        %v3459 = vcvt.s32.f32 %v3395
        %v3460 = vcvt.s32.f32 %v3396
        %v3461 = vcvt.s32.f32 %v3397
        %v3462 = vcvt.s32.f32 %v3398
        %v3463 = vcvt.s32.f32 %v3399
        %v3464 = vcvt.s32.f32 %v3400
        %v3465 = vcvt.s32.f32 %v3401
        %v3466 = vpack.c.bf16 %v3406, %v3402
        %v3467 = vpack.c.bf16 %v3407, %v3403
        %v3468 = vpack.c.bf16 %v3408, %v3404
        %v3469 = vpack.c.bf16 %v3409, %v3405
        %v3470 = vpack.c.bf16 %v3414, %v3410
        %v3471 = vpack.c.bf16 %v3415, %v3411
        %v3472 = vpack.c.bf16 %v3416, %v3412
        %v3473 = vpack.c.bf16 %v3417, %v3413
        %v3474 = vpack.c.bf16 %v3422, %v3418
        %v3475 = vpack.c.bf16 %v3423, %v3419
        %v3476 = vpack.c.bf16 %v3424, %v3420
        %v3477 = vpack.c.bf16 %v3425, %v3421
        %v3478 = vpack.c.bf16 %v3430, %v3426
        %v3479 = vpack.c.bf16 %v3431, %v3427
        %v3480 = vpack.c.bf16 %v3432, %v3428
        %v3481 = vpack.c.bf16 %v3433, %v3429
        %v3482 = vpack.c.bf16 %v3438, %v3434
        %v3483 = vpack.c.bf16 %v3439, %v3435
        %v3484 = vpack.c.bf16 %v3440, %v3436
        %v3485 = vpack.c.bf16 %v3441, %v3437
        %v3486 = vpack.c.bf16 %v3446, %v3442
        %v3487 = vpack.c.bf16 %v3447, %v3443
        %v3488 = vpack.c.bf16 %v3448, %v3444
        %v3489 = vpack.c.bf16 %v3449, %v3445
        %v3490 = vpack.c.bf16 %v3454, %v3450
        %v3491 = vpack.c.bf16 %v3455, %v3451
        %v3492 = vpack.c.bf16 %v3456, %v3452
        %v3493 = vpack.c.bf16 %v3457, %v3453
        %v3494 = vpack.c.bf16 %v3462, %v3458
        %v3495 = vpack.c.bf16 %v3463, %v3459
        %v3496 = vpack.c.bf16 %v3464, %v3460
        %v3497 = vpack.c.bf16 %v3465, %v3461
        %v3498 = vld [vmem:[%s333 + $0x1c] sm:$0xf]
        %v3499 = vld [vmem:[%s333 + $0x3c] sm:$0xf]
        %v3502 = vunpack.c.l.b16 %v3498
        %v3503 = vunpack.c.l.b16 %v3499
        %v3504 = vpack.c.b16 %v3503, %v3502
        %3506 = vmatprep.subr.bf16.mxu0 %v3467
        %3507 = vmatpush1.bf16.msra.mxu0 %v3466
        %3508 = vmatprep.subr.bf16.mxu0 %v3471
        %3509 = vmatpush1.bf16.msra.mxu0 %v3470
        %3510 = vmatprep.subr.bf16.mxu0 %v3475
        %3511 = vmatpush1.bf16.msra.mxu0 %v3474
        %3512 = vmatprep.subr.bf16.mxu0 %v3479
        %3513 = vmatpush1.bf16.msra.mxu0 %v3478
        %3514 = vmatprep.subr.bf16.mxu0 %v3483
        %3515 = vmatpush1.bf16.msra.mxu0 %v3482
        %3516 = vmatprep.subr.bf16.mxu0 %v3487
        %3517 = vmatpush1.bf16.msra.mxu0 %v3486
        %3518 = vmatprep.subr.bf16.mxu0 %v3491
        %3519 = vmatpush1.bf16.msra.mxu0 %v3490
        %3520 = vmatprep.subr.bf16.mxu0 %v3495
        %3521 = vmatpush1.bf16.msra.mxu0 %v3494
        %3522 = vmatprep.subr.bf16.mxu0 0
        %3523 = vmatpush1.bf16.msra.mxu0 0
        %3524 = vmatprep.subr.bf16.mxu0 0
        %3525 = vmatpush1.bf16.msra.mxu0 0
        %3526 = vmatprep.subr.bf16.mxu0 0
        %3527 = vmatpush1.bf16.msra.mxu0 0
        %3528 = vmatprep.subr.bf16.mxu0 0
        %3529 = vmatpush1.bf16.msra.mxu0 0
        %3530 = vmatprep.subr.bf16.mxu0 0
        %3531 = vmatpush1.bf16.msra.mxu0 0
        %3532 = vmatprep.subr.bf16.mxu0 0
        %3533 = vmatpush1.bf16.msra.mxu0 0
        %3534 = vmatprep.subr.bf16.mxu0 0
        %3535 = vmatpush1.bf16.msra.mxu0 0
        %3536 = vmatprep.subr.bf16.mxu0 0
        %3537 = vmatpush1.bf16.msra.mxu0 0
        %3538 = vmatprep.mubr.bf16.mxu0 0
        %3539 = vmatmul.mubr.bf16.gmra.mrb[0].mxu0 %v3504
        %v3540 = vpop.f32.mrb[0].mxu0
        %v3541 = vadd.f32 0.0, %v3540
        %v3542 = vpop.f32.mrb[0].mxu0
        %v3543 = vadd.f32 0.0, %v3542
        %v3544 = vpop.f32.mrb[0].mxu0
        %v3545 = vadd.f32 0.0, %v3544
        %v3546 = vpop.f32.mrb[0].mxu0
        %v3547 = vadd.f32 0.0, %v3546
        %3548 = vdwg.mxu0
        %3549 = vmatprep.subr.bf16.mxu0 %v3469
        %3550 = vmatpush1.bf16.msra.mxu0 %v3468
        %3551 = vmatprep.subr.bf16.mxu0 %v3473
        %3552 = vmatpush1.bf16.msra.mxu0 %v3472
        %3553 = vmatprep.subr.bf16.mxu0 %v3477
        %3554 = vmatpush1.bf16.msra.mxu0 %v3476
        %3555 = vmatprep.subr.bf16.mxu0 %v3481
        %3556 = vmatpush1.bf16.msra.mxu0 %v3480
        %3557 = vmatprep.subr.bf16.mxu0 %v3485
        %3558 = vmatpush1.bf16.msra.mxu0 %v3484
        %3559 = vmatprep.subr.bf16.mxu0 %v3489
        %3560 = vmatpush1.bf16.msra.mxu0 %v3488
        %3561 = vmatprep.subr.bf16.mxu0 %v3493
        %3562 = vmatpush1.bf16.msra.mxu0 %v3492
        %3563 = vmatprep.subr.bf16.mxu0 %v3497
        %3564 = vmatpush1.bf16.msra.mxu0 %v3496
        %3565 = vmatprep.subr.bf16.mxu0 0
        %3566 = vmatpush1.bf16.msra.mxu0 0
        %3567 = vmatprep.subr.bf16.mxu0 0
        %3568 = vmatpush1.bf16.msra.mxu0 0
        %3569 = vmatprep.subr.bf16.mxu0 0
        %3570 = vmatpush1.bf16.msra.mxu0 0
        %3571 = vmatprep.subr.bf16.mxu0 0
        %3572 = vmatpush1.bf16.msra.mxu0 0
        %3573 = vmatprep.subr.bf16.mxu0 0
        %3574 = vmatpush1.bf16.msra.mxu0 0
        %3575 = vmatprep.subr.bf16.mxu0 0
        %3576 = vmatpush1.bf16.msra.mxu0 0
        %3577 = vmatprep.subr.bf16.mxu0 0
        %3578 = vmatpush1.bf16.msra.mxu0 0
        %3579 = vmatprep.subr.bf16.mxu0 0
        %3580 = vmatpush1.bf16.msra.mxu0 0
        %3581 = vmatprep.mubr.bf16.mxu0 0
        %3582 = vmatmul.mubr.bf16.gmra.mrb[0].mxu0 %v3504
        %v3583 = vpop.f32.mrb[0].mxu0
        %v3584 = vadd.f32 0.0, %v3583
        %v3585 = vpop.f32.mrb[0].mxu0
        %v3586 = vadd.f32 0.0, %v3585
        %v3587 = vpop.f32.mrb[0].mxu0
        %v3588 = vadd.f32 0.0, %v3587
        %v3589 = vpop.f32.mrb[0].mxu0
        %v3590 = vadd.f32 0.0, %v3589
        %3591 = vdwg.mxu0
        %v3592 = vunpack.c.l.bf16 %v3498
        %v3593 = vunpack.c.l.bf16 %v3499
        %3594 = vadd.xlane.f32.xlu0 %v3592
        %v3595 = vpop.xlane.xlu0 %3594
        %3596 = vadd.xlane.f32.xlu0 %v3593
        %v3597 = vpop.xlane.xlu0 %3596
        %v3598 = vld [vmem:[#allocation2] sm:$0xff]
        %v3599 = vld [vmem:[#allocation2 + $0x8] sm:$0xff]
        %v3600 = vld [vmem:[#allocation2 + $0x10] sm:$0xff]
        %v3601 = vld [vmem:[#allocation2 + $0x18] sm:$0xff]
        %v3602 = vld [vmem:[#allocation2 + $0x20] sm:$0xff]
        %v3603 = vld [vmem:[#allocation2 + $0x28] sm:$0xff]
        %v3604 = vld [vmem:[#allocation2 + $0x30] sm:$0xff]
        %v3605 = vld [vmem:[#allocation2 + $0x38] sm:$0xff]
        %v3606 = vlaneseq
        %v3607 = vshrl.u32 %v3606, 7
        %v3608 = vsub.s32 7, %v3607
        %v3609 = vrot.slane %v438, %v3608
        %v3610 = vlaneseq
        %v3611 = vshrl.u32 %v3610, 7
        %v3612 = vsub.s32 7, %v3611
        %v3613 = vrot.slane %v439, %v3612
        %v3614 = vlaneseq
        %v3615 = vshrl.u32 %v3614, 7
        %v3616 = vsub.s32 7, %v3615
        %v3617 = vrot.slane %v440, %v3616
        %v3618 = vlaneseq
        %v3619 = vshrl.u32 %v3618, 7
        %v3620 = vsub.s32 7, %v3619
        %v3621 = vrot.slane %v441, %v3620
        %v3622 = vmul.f32 %v3609, %v3541
        %v3623 = vmul.f32 %v3613, %v3543
        %v3624 = vmul.f32 %v3617, %v3584
        %v3625 = vmul.f32 %v3621, %v3586
        %v3626 = vmul.f32 %v3609, %v3545
        %v3627 = vmul.f32 %v3613, %v3547
        %v3628 = vmul.f32 %v3617, %v3588
        %v3629 = vmul.f32 %v3621, %v3590
        %v3630 = vlaneseq
        %v3631 = vshrl.u32 %v3630, 7
        %v3632 = vsub.s32 7, %v3631
        %v3633 = vrot.slane %v442, %v3632
        %v3634 = vlaneseq
        %v3635 = vshrl.u32 %v3634, 7
        %v3636 = vsub.s32 7, %v3635
        %v3637 = vrot.slane %v443, %v3636
        %v3638 = vlaneseq
        %v3639 = vshrl.u32 %v3638, 7
        %v3640 = vsub.s32 7, %v3639
        %v3641 = vrot.slane %v444, %v3640
        %v3642 = vlaneseq
        %v3643 = vshrl.u32 %v3642, 7
        %v3644 = vsub.s32 7, %v3643
        %v3645 = vrot.slane %v445, %v3644
        %v3646 = vmul.f32 %v3633, %v3595
        %v3647 = vmul.f32 %v3637, %v3595
        %v3648 = vmul.f32 %v3641, %v3595
        %v3649 = vmul.f32 %v3645, %v3595
        %v3650 = vmul.f32 %v3633, %v3597
        %v3651 = vmul.f32 %v3637, %v3597
        %v3652 = vmul.f32 %v3641, %v3597
        %v3653 = vmul.f32 %v3645, %v3597
        %v3654 = vsub.f32 %v3622, %v3646
        %v3655 = vsub.f32 %v3623, %v3647
        %v3656 = vsub.f32 %v3624, %v3648
        %v3657 = vsub.f32 %v3625, %v3649
        %v3658 = vsub.f32 %v3626, %v3650
        %v3659 = vsub.f32 %v3627, %v3651
        %v3660 = vsub.f32 %v3628, %v3652
        %v3661 = vsub.f32 %v3629, %v3653
        %v3662 = vadd.f32 %v3598, %v3654
        %v3663 = vadd.f32 %v3599, %v3655
        %v3664 = vadd.f32 %v3600, %v3656
        %v3665 = vadd.f32 %v3601, %v3657
        %v3666 = vadd.f32 %v3602, %v3658
        %v3667 = vadd.f32 %v3603, %v3659
        %v3668 = vadd.f32 %v3604, %v3660
        %v3669 = vadd.f32 %v3605, %v3661
        %3670 = vst [vmem:[#allocation2] sm:$0xff] %v3662
        %3671 = vst [vmem:[#allocation2 + $0x8] sm:$0xff] %v3663
        %3672 = vst [vmem:[#allocation2 + $0x10] sm:$0xff] %v3664
        %3673 = vst [vmem:[#allocation2 + $0x18] sm:$0xff] %v3665
        %3674 = vst [vmem:[#allocation2 + $0x20] sm:$0xff] %v3666
        %3675 = vst [vmem:[#allocation2 + $0x28] sm:$0xff] %v3667
        %3676 = vst [vmem:[#allocation2 + $0x30] sm:$0xff] %v3668
        %3677 = vst [vmem:[#allocation2 + $0x38] sm:$0xff] %v3669
        %p3678 = scmp.eq.s32.totalorder %s29, 1
        // Predicated region
        $region72: #{_int4_forward.1} parent=58 // pred_check
          %p3679 = pneg %p3678
        $region73: #{_int4_forward.1} parent=58 // pred_check_branch
          %3681 = sbr.rel (%p3679) target = $region75
        $region74: #{_int4_forward.1} parent=58 // pred_region
          %v3682 = vld [vmem:[#allocation2] sm:$0xff]
          %v3683 = vld [vmem:[#allocation2 + $0x8] sm:$0xff]
          %v3684 = vld [vmem:[#allocation2 + $0x10] sm:$0xff]
          %v3685 = vld [vmem:[#allocation2 + $0x18] sm:$0xff]
          %v3686 = vld [vmem:[#allocation2 + $0x20] sm:$0xff]
          %v3687 = vld [vmem:[#allocation2 + $0x28] sm:$0xff]
          %v3688 = vld [vmem:[#allocation2 + $0x30] sm:$0xff]
          %v3689 = vld [vmem:[#allocation2 + $0x38] sm:$0xff]
          %v3690 = vld [vmem:[%s421] sm:$0xf]
          %v3692 = vlaneseq
          %v3693 = vshrl.u32 %v3692, 7
          %v3694 = vsub.s32 0, %v3693
          %v3695 = vrot.slane %v3690, %v3694
          %v3696 = vlaneseq
          %v3697 = vshrl.u32 %v3696, 7
          %v3698 = vsub.s32 1, %v3697
          %v3699 = vrot.slane %v3690, %v3698
          %v3700 = vlaneseq
          %v3701 = vshrl.u32 %v3700, 7
          %v3702 = vsub.s32 2, %v3701
          %v3703 = vrot.slane %v3690, %v3702
          %v3704 = vlaneseq
          %v3705 = vshrl.u32 %v3704, 7
          %v3706 = vsub.s32 3, %v3705
          %v3707 = vrot.slane %v3690, %v3706
          %v3712 = vadd.f32 %v3682, %v3695
          %v3713 = vadd.f32 %v3683, %v3699
          %v3714 = vadd.f32 %v3684, %v3703
          %v3715 = vadd.f32 %v3685, %v3707
          %v3716 = vadd.f32 %v3686, %v3695
          %v3717 = vadd.f32 %v3687, %v3699
          %v3718 = vadd.f32 %v3688, %v3703
          %v3719 = vadd.f32 %v3689, %v3707
          %3720 = vst [vmem:[%s393] sm:$0xff] %v3712
          %3721 = vst [vmem:[%s393 + $0x8] sm:$0xff] %v3713
          %3722 = vst [vmem:[%s393 + $0x10] sm:$0xff] %v3714
          %3723 = vst [vmem:[%s393 + $0x18] sm:$0xff] %v3715
          %3724 = vst [vmem:[%s393 + $0x20] sm:$0xff] %v3716
          %3725 = vst [vmem:[%s393 + $0x28] sm:$0xff] %v3717
          %3726 = vst [vmem:[%s393 + $0x30] sm:$0xff] %v3718
          %3727 = vst [vmem:[%s393 + $0x38] sm:$0xff] %v3719
        $region75: #{_int4_forward.1} parent=58 // pred_fallthru
          _
        %s3728 = sand.u32 %s189, 1
        %s3729 = scalar_lea.sflag [#allocation6], %s3728
        %s3730 = sand.u32 %s189, 1
        %s3731 = smul.addr %s3730, 64
        %s3732 = scalar_lea.vmem [#allocation7], %s3731
        // Predicated region
        $region76: #{_int4_forward.1} parent=58 // pred_check
          %p3733 = pneg %p199
        $region77: #{_int4_forward.1} parent=58 // pred_check_branch
          %3735 = sbr.rel (%p3733) target = $region79
        $region78: #{_int4_forward.1} parent=58 // pred_region
          %s3736 = smul.u32 2, %s27
          %s3737 = smul.u32 4, %s28
          %s3739 = ssub.s32 1024, 1024
          %3740 = vsyncadd %s3729, %s3739
          %s3741 = smul.addr %s3736, 8
          %s3742 = sadd.s32 %s3737, %s3741
          %s3743 = smul.addr %s3742, 128
          %s3744 = scalar_lea.hbm %s5, %s3743
          %s3745 = sshll.u32 %s3732, 4
          %s3746 = int_to_ptr.vmem [resolvable:$true] %s3745
          %3751 = dma.vmem_to_hbm [thread:$0]  %s3746, 1024, %s3744, %s3729, 512, 1024, 32
        $region79: #{_int4_forward.1} parent=58 // pred_fallthru
          _
      $region59: #{_int4_forward.1} parent=5 // pred_fallthru
        _
      %p3752 = scmp.le.s32.totalorder 2, %s17
      // Predicated region
      $region80: #{_int4_forward.1} parent=5 // pred_check
        %p3753 = pneg %p3752
      $region81: #{_int4_forward.1} parent=5 // pred_check_branch
        %3755 = sbr.rel (%p3753) target = $region83
      $region82: #{_int4_forward.1} parent=5 // pred_region
        %s3756 = ssub.s32 %s17, 2
        // Predicated region
        $region84: #{_int4_forward.1} parent=82 // pred_check
          %p3757 = pneg %p205
        $region85: #{_int4_forward.1} parent=82 // pred_check_branch
          %3759 = sbr.rel (%p3757) target = $region87
        $region86: #{_int4_forward.1} parent=82 // pred_region
          %s3760 = sand.u32 %s190, 1
          %s3761 = scalar_lea.sflag [#allocation6], %s3760
          %s3762 = sand.u32 %s190, 1
          %s3763 = smul.addr %s3762, 64
          %s3764 = scalar_lea.vmem [#allocation7], %s3763
          %3765 = dma.done %s3761, 1024
        $region87: #{_int4_forward.1} parent=82 // pred_fallthru
          _
      $region83: #{_int4_forward.1} parent=5 // pred_fallthru
        _
    $region6: #{_int4_forward.1} parent=1 // loop_footer
      %s21 = sadd.s32 1, %s17
    $region7: #{_int4_forward.1} parent=1 // loop_footer_branch
      %16 = sbr.rel target = $region3
    $region8: #{_int4_forward.1} parent=1 // loop_exit
      _
    %3766 = vsyncpa [#allocation5], 1
    %s3767 = scalar_lea.sflag [#allocation5], 1
    %3768 = vsyncpa %s3767, 1
    %3769 = vsyncpa [#allocation6], 1
    %s3770 = scalar_lea.sflag [#allocation6], 1
    %3771 = vsyncpa %s3770, 1

</llo_original>
